<compile_context>
chip_gen: v7x
topology: tpu7x:2x2x1
jax: 0.10.0
libtpu: 0.0.40
codegen_flags: <defaults>
</compile_context>

<pallas_src>
import functools

import jax
import jax.numpy as jnp
from jax import lax
from jax.experimental import pallas as pl
from jax.experimental.pallas import tpu as pltpu

KS = (1, 3, 7, 11)          # conv branch kernel sizes ("same" padding, stride 1)
N_BRANCH = len(KS)
MAX_SHIFT = max(KS) // 2    # 5
PAD = 16                    # halo per side: >= MAX_SHIFT, multiple of 16 (bf16 sublane pack)
EPS = 1e-5


def _offset_meta():
    """Per distinct shift: (shift, first participating branch idx, #branches).
    Branch k participates iff k//2 >= |shift|; since KS is ascending this is a
    contiguous suffix of the branch list."""
    meta = []
    for s in range(-MAX_SHIFT, MAX_SHIFT + 1):
        members = [i for i, k in enumerate(KS) if k // 2 >= abs(s)]
        meta.append((s, members[0], len(members)))
    return tuple(meta)


OFF_META = _offset_meta()
N_OFF = len(OFF_META)       # 11


def _round_up(x, m):
    return ((x + m - 1) // m) * m


# ----------------------------- Pallas kernel ------------------------------- #
def _agg_bneck_kernel(*refs, tT, cp):
    x_ref = refs[0]                                   # (tT, Cp) bf16 main block
    halo_ref = refs[1]                                # (2*PAD, Cp) bf16 [left|right]
    w_off = refs[2:2 + N_OFF]                         # (Cp, m*Cp) bf16, per shift
    b_br = refs[2 + N_OFF:2 + N_OFF + N_BRANCH]       # (1, Cp) f32, per branch
    wcat_ref = refs[2 + N_OFF + N_BRANCH]             # (5*Cp, Coutp) bf16
    bbn_ref = refs[3 + N_OFF + N_BRANCH]              # (1, Coutp) f32
    out_ref = refs[4 + N_OFF + N_BRANCH]              # (tT, Coutp)
    win_ref = refs[5 + N_OFF + N_BRANCH]              # (tT + 2*PAD, Cp) bf16 scratch

    x = x_ref[...]                                    # identity feature / center taps

    # Assemble the halo'd window in VMEM (stores are 16-row aligned: PAD=16, tT%16==0).
    win_ref[0:PAD, :] = halo_ref[0:PAD, :]
    win_ref[PAD:PAD + tT, :] = x
    win_ref[PAD + tT:PAD + 2 * PAD + tT - PAD, :] = halo_ref[PAD:2 * PAD, :]

    # Grouped-by-shift conv taps: 11 slices, 11 MXU matmuls (f32 accumulation).
    accs = [jnp.zeros((tT, cp), jnp.float32) for _ in range(N_BRANCH)]
    for j, (s, b0, m) in enumerate(OFF_META):
        lhs = x if s == 0 else win_ref[PAD + s:PAD + s + tT, :]
        r = jnp.dot(lhs, w_off[j][...], preferred_element_type=jnp.float32)
        for i in range(m):
            accs[b0 + i] = accs[b0 + i] + r[:, i * cp:(i + 1) * cp]

    # Folded BN bias + SiLU (one EUP tanh per branch), then the 1x1 bottleneck
    # as a single wide matmul over the lane-concatenated features.
    feats = [x]
    for b in range(N_BRANCH):
        y = accs[b] + b_br[b][...]
        y = 0.5 * y * (jnp.tanh(0.5 * y) + 1.0)       # SiLU
        feats.append(y.astype(jnp.bfloat16))
    cat = jnp.concatenate(feats, axis=-1)             # (tT, 5*Cp) bf16
    out = jnp.dot(cat, wcat_ref[...], preferred_element_type=jnp.float32) + bbn_ref[...]
    out_ref[...] = out.astype(out_ref.dtype)


# ------------------------------ VMEM planning ------------------------------ #
def _vmem_capacity_bytes():
    try:
        return int(pltpu.get_tpu_info().vmem_capacity_bytes)
    except Exception:
        return 64 * 2**20        # conservative: v7x per-TC physical VMEM


def _vmem_bytes_needed(tT, cp, coutp, weight_bytes, out_itemsize):
    blocks = (2 * tT * cp * 2              # double-buffered bf16 main block
              + 2 * (2 * PAD) * cp * 2     # double-buffered bf16 halo
              + 2 * tT * coutp * out_itemsize)
    window = (tT + 2 * PAD) * cp * 2       # scratch window
    live = tT * cp * (4 * 4 + 5 * 2 + 4 * 4) + tT * coutp * 4   # accs, cat, matmul temps
    return weight_bytes + blocks + window + live


def _pick_time_tile(T, cp, coutp, weight_bytes, out_itemsize, target=512):
    n = max(1, -(-T // target))                                  # balanced tiles
    tT = max(16, min(_round_up(-(-T // n), 16), _round_up(T, 16)))
    budget = _vmem_capacity_bytes() - (8 << 20)
    while tT > 16 and 5 * _vmem_bytes_needed(tT, cp, coutp, weight_bytes,
                                             out_itemsize) // 4 > budget:
        tT = max(16, _round_up(tT // 2, 16))
    return tT


# ------------------------------ JAX wrappers -------------------------------- #
def multihop_conv_ntc(x_ntc, params, *, time_tile=None, out_dtype=jnp.bfloat16):
    """Channels-last entry point: (N, T, C) -> (N, T, Cout).  No transposes."""
    N, T, C = x_ntc.shape
    cp, coutp, cout = params["Cp"], params["Coutp"], params["Cout"]
    assert C == params["C"], (C, params["C"])

    weights = list(params["w_off"]) + list(params["b"]) + [params["wcat"], params["bbn"]]
    weight_bytes = sum(int(a.size) * a.dtype.itemsize for a in weights)
    out_itemsize = jnp.dtype(out_dtype).itemsize

    if time_tile is not None:
        tT = max(16, _round_up(time_tile, 16))
    else:
        tT = _pick_time_tile(T, cp, coutp, weight_bytes, out_itemsize)
    nT = -(-T // tT)
    Tp = nT * tT

    # Main input: one cast + zero-pad pass (time to Tp, channels to Cp).
    xm = jnp.pad(x_ntc.astype(jnp.bfloat16), ((0, 0), (0, Tp - T), (0, cp - C)))

    # Halo sidecar (N, nT, 2*PAD, Cp): left = tail of previous tile, right = head
    # of next tile, zeros at the sequence edges.  Only ~2*PAD/tT duplication.
    xr = xm.reshape(N, nT, tT, cp)
    zero = jnp.zeros((N, 1, PAD, cp), jnp.bfloat16)
    left = jnp.concatenate([zero, xr[:, :-1, tT - PAD:, :]], axis=1)
    right = jnp.concatenate([xr[:, 1:, :PAD, :], zero], axis=1)
    halo = jnp.concatenate([left, right], axis=2)

    # Constant weights: whole-array, single-buffered VMEM residents.
    const_vmem = pl.BlockSpec(memory_space=pltpu.MemorySpace.VMEM)
    in_specs = ([pl.BlockSpec((None, tT, cp), lambda n, t: (n, t, 0)),
                 pl.BlockSpec((None, None, 2 * PAD, cp), lambda n, t: (n, t, 0, 0))]
                + [const_vmem] * (N_OFF + N_BRANCH + 2))

    vmem_need = _vmem_bytes_needed(tT, cp, coutp, weight_bytes, out_itemsize)
    vmem_limit = int(min(_vmem_capacity_bytes() - (8 << 20),
                         max(32 << 20, vmem_need * 5 // 4)))

    out = pl.pallas_call(
        functools.partial(_agg_bneck_kernel, tT=tT, cp=cp),
        out_shape=jax.ShapeDtypeStruct((N, Tp, coutp), out_dtype),
        grid_spec=pltpu.PrefetchScalarGridSpec(
            num_scalar_prefetch=0,
            grid=(N, nT),
            in_specs=in_specs,
            out_specs=pl.BlockSpec((None, tT, coutp), lambda n, t: (n, t, 0)),
            scratch_shapes=[pltpu.VMEM((tT + 2 * PAD, cp), jnp.bfloat16)]),
        compiler_params=pltpu.CompilerParams(
            dimension_semantics=("parallel", "parallel"),
            vmem_limit_bytes=vmem_limit),
    )(xm, halo, *params["w_off"], *params["b"], params["wcat"], params["bbn"])

    return out[:, :T, :cout]


def multihop_conv(x_nct, params, *, time_tile=None, out_dtype=jnp.bfloat16):
    """PyTorch-layout entry point: (N, C, T) -> (N, Cout, T)."""
    out = multihop_conv_ntc(jnp.transpose(x_nct, (0, 2, 1)), params,
                            time_tile=time_tile, out_dtype=out_dtype)
    return jnp.transpose(out, (0, 2, 1))


# ------------------------ deterministic parameters ------------------------- #
def init_raw_params(key, C, Cout):
    raw = {}
    keys = jax.random.split(key, 6 * len(KS) + 2)
    i = 0
    for k in KS:
        raw[f"conv{k}_w"] = 0.2 * jax.random.normal(keys[i], (C, C, k), jnp.float32); i += 1
        raw[f"conv{k}_b"] = 0.1 * jax.random.normal(keys[i], (C,), jnp.float32); i += 1
        raw[f"bn{k}_g"] = 1.0 + 0.1 * jax.random.normal(keys[i], (C,), jnp.float32); i += 1
        raw[f"bn{k}_b"] = 0.1 * jax.random.normal(keys[i], (C,), jnp.float32); i += 1
        raw[f"bn{k}_m"] = 0.1 * jax.random.normal(keys[i], (C,), jnp.float32); i += 1
        raw[f"bn{k}_v"] = jnp.abs(1.0 + 0.1 * jax.random.normal(keys[i], (C,), jnp.float32)); i += 1
    raw["bneck_w"] = 0.1 * jax.random.normal(keys[i], (Cout, 5 * C, 1), jnp.float32); i += 1
    raw["bneck_b"] = 0.05 * jax.random.normal(keys[i], (Cout,), jnp.float32); i += 1
    return raw


def fold_params(raw):
    """Fold eval-mode BatchNorm into the conv weights, zero-pad channels to
    multiples of 128 (lane-dense), and pack per-shift weight groups."""
    C = raw["conv1_w"].shape[0]
    Cout = raw["bneck_b"].shape[0]
    cp = _round_up(C, 128)
    coutp = _round_up(Cout, 128)

    folded, biases = {}, []
    for k in KS:
        w = raw[f"conv{k}_w"]                                    # (O, I, k)
        scale = raw[f"bn{k}_g"] / jnp.sqrt(raw[f"bn{k}_v"] + EPS)
        wk = jnp.transpose(w, (2, 1, 0)) * scale[None, None, :]  # (k, I, O)
        wk = jnp.pad(wk, ((0, 0), (0, cp - C), (0, cp - C)))
        folded[k] = wk.astype(jnp.bfloat16)
        bk = (raw[f"conv{k}_b"] - raw[f"bn{k}_m"]) * scale + raw[f"bn{k}_b"]
        biases.append(jnp.pad(bk, (0, cp - C))[None, :].astype(jnp.float32))

    # Per-shift packed weights: concat (along out-channels) of every branch's
    # tap that lands on this shift (branches form a suffix of KS).
    w_off = []
    for (s, b0, m) in OFF_META:
        blocks = [folded[KS[i]][s + KS[i] // 2] for i in range(b0, b0 + m)]
        w_off.append(jnp.concatenate(blocks, axis=1))            # (Cp, m*Cp)

    wbn = jnp.transpose(raw["bneck_w"][:, :, 0], (1, 0))         # (5C, Cout)
    wcat = jnp.zeros((5 * cp, coutp), jnp.float32)
    for i in range(1 + N_BRANCH):
        wcat = wcat.at[i * cp:i * cp + C, :Cout].set(wbn[i * C:(i + 1) * C, :])
    bbn = jnp.pad(raw["bneck_b"], (0, coutp - Cout))[None, :].astype(jnp.float32)

    return dict(w_off=tuple(w_off), b=tuple(biases),
                wcat=wcat.astype(jnp.bfloat16), bbn=bbn,
                C=C, Cout=Cout, Cp=cp, Coutp=coutp)


# --------------------------- pure-JAX reference ----------------------------- #
def reference(x_nct, raw):
    dn = ("NCH", "OIH", "NCH")
    feats = [x_nct]
    for k in KS:
        y = lax.conv_general_dilated(x_nct, raw[f"conv{k}_w"], (1,),
                                     [(k // 2, k // 2)], dimension_numbers=dn)
        y = y + raw[f"conv{k}_b"][None, :, None]
        g, bt = raw[f"bn{k}_g"], raw[f"bn{k}_b"]
        m, v = raw[f"bn{k}_m"], raw[f"bn{k}_v"]
        y = (y - m[None, :, None]) / jnp.sqrt(v[None, :, None] + EPS)
        y = y * g[None, :, None] + bt[None, :, None]
        y = y * jax.nn.sigmoid(y)
        feats.append(y)
    cat = jnp.concatenate(feats, axis=1)
    out = lax.conv_general_dilated(cat, raw["bneck_w"], (1,), [(0, 0)],
                                   dimension_numbers=dn)
    return out + raw["bneck_b"][None, :, None]


if __name__ == "__main__":
    key = jax.random.PRNGKey(0)
    kx, kp = jax.random.split(key)
    N, C, T, Cout = 2, 8, 16, 16          # small test shapes (in_chns=C, out_chns=Cout)

    x = jax.random.normal(kx, (N, C, T), jnp.float32)
    raw = init_raw_params(kp, C, Cout)
    params = fold_params(raw)

    out = jax.block_until_ready(multihop_conv(x, params))       # bf16 output
    assert out.shape == (N, Cout, T), out.shape

    ref = jax.block_until_ready(reference(x, raw))
    err = float(jnp.max(jnp.abs(out.astype(jnp.float32) - ref)))
    scale = float(jnp.max(jnp.abs(ref))) + 1e-6
    # bf16 matmul operands / bf16 output (f32 accumulation) -> bf16-level tolerance.
    if err > 3e-2 * scale + 1e-2:
        raise AssertionError(
            f"Pallas vs reference mismatch: max abs err = {err}, ref scale = {scale}")

    print("KERNEL_OK")
</pallas_src>

<mosaic_0001>
module attributes {stable_mosaic.version = 11 : i64} {
  func.func @_agg_bneck_kernel(%arg0: i32, %arg1: i32, %arg2: memref<1x16x128xbf16, #tpu.memory_space<vmem>>, %arg3: memref<1x1x32x128xbf16, #tpu.memory_space<vmem>>, %arg4: memref<128x128xbf16, #tpu.memory_space<vmem>>, %arg5: memref<128x128xbf16, #tpu.memory_space<vmem>>, %arg6: memref<128x256xbf16, #tpu.memory_space<vmem>>, %arg7: memref<128x256xbf16, #tpu.memory_space<vmem>>, %arg8: memref<128x384xbf16, #tpu.memory_space<vmem>>, %arg9: memref<128x512xbf16, #tpu.memory_space<vmem>>, %arg10: memref<128x384xbf16, #tpu.memory_space<vmem>>, %arg11: memref<128x256xbf16, #tpu.memory_space<vmem>>, %arg12: memref<128x256xbf16, #tpu.memory_space<vmem>>, %arg13: memref<128x128xbf16, #tpu.memory_space<vmem>>, %arg14: memref<128x128xbf16, #tpu.memory_space<vmem>>, %arg15: memref<1x128xf32, #tpu.memory_space<vmem>>, %arg16: memref<1x128xf32, #tpu.memory_space<vmem>>, %arg17: memref<1x128xf32, #tpu.memory_space<vmem>>, %arg18: memref<1x128xf32, #tpu.memory_space<vmem>>, %arg19: memref<640x128xbf16, #tpu.memory_space<vmem>>, %arg20: memref<1x128xf32, #tpu.memory_space<vmem>>, %arg21: memref<1x16x128xbf16, #tpu.memory_space<vmem>>, %arg22: memref<48x128xbf16, #tpu.memory_space<vmem>>) attributes {dimension_semantics = [#tpu.dimension_semantics<parallel>, #tpu.dimension_semantics<parallel>], iteration_bounds = array<i64: 2, 1>, scalar_prefetch = 0 : i64, scratch_operands = 1 : i64, tpu.core_type = #tpu.core_type<tc>, window_params = [{transform_indices = @transform_0, window_bounds = array<i64: 1, 16, 128>}, {transform_indices = @transform_1, window_bounds = array<i64: 1, 1, 32, 128>}, {pipeline_mode = #tpu.pipeline_mode<synchronous>, transform_indices = @transform_2, window_bounds = array<i64: 128, 128>}, {pipeline_mode = #tpu.pipeline_mode<synchronous>, transform_indices = @transform_3, window_bounds = array<i64: 128, 128>}, {pipeline_mode = #tpu.pipeline_mode<synchronous>, transform_indices = @transform_4, window_bounds = array<i64: 128, 256>}, {pipeline_mode = #tpu.pipeline_mode<synchronous>, transform_indices = @transform_5, window_bounds = array<i64: 128, 256>}, {pipeline_mode = #tpu.pipeline_mode<synchronous>, transform_indices = @transform_6, window_bounds = array<i64: 128, 384>}, {pipeline_mode = #tpu.pipeline_mode<synchronous>, transform_indices = @transform_7, window_bounds = array<i64: 128, 512>}, {pipeline_mode = #tpu.pipeline_mode<synchronous>, transform_indices = @transform_8, window_bounds = array<i64: 128, 384>}, {pipeline_mode = #tpu.pipeline_mode<synchronous>, transform_indices = @transform_9, window_bounds = array<i64: 128, 256>}, {pipeline_mode = #tpu.pipeline_mode<synchronous>, transform_indices = @transform_10, window_bounds = array<i64: 128, 256>}, {pipeline_mode = #tpu.pipeline_mode<synchronous>, transform_indices = @transform_11, window_bounds = array<i64: 128, 128>}, {pipeline_mode = #tpu.pipeline_mode<synchronous>, transform_indices = @transform_12, window_bounds = array<i64: 128, 128>}, {pipeline_mode = #tpu.pipeline_mode<synchronous>, transform_indices = @transform_13, window_bounds = array<i64: 1, 128>}, {pipeline_mode = #tpu.pipeline_mode<synchronous>, transform_indices = @transform_14, window_bounds = array<i64: 1, 128>}, {pipeline_mode = #tpu.pipeline_mode<synchronous>, transform_indices = @transform_15, window_bounds = array<i64: 1, 128>}, {pipeline_mode = #tpu.pipeline_mode<synchronous>, transform_indices = @transform_16, window_bounds = array<i64: 1, 128>}, {pipeline_mode = #tpu.pipeline_mode<synchronous>, transform_indices = @transform_17, window_bounds = array<i64: 640, 128>}, {pipeline_mode = #tpu.pipeline_mode<synchronous>, transform_indices = @transform_18, window_bounds = array<i64: 1, 128>}, {transform_indices = @transform_19, window_bounds = array<i64: 1, 16, 128>}]} {
    %c0 = arith.constant 0 : index
    %c0_0 = arith.constant 0 : index
    %c0_1 = arith.constant 0 : index
    %0 = vector.load %arg2[%c0, %c0_0, %c0_1] : memref<1x16x128xbf16, #tpu.memory_space<vmem>>, vector<1x16x128xbf16>
    %1 = vector.shape_cast %0 : vector<1x16x128xbf16> to vector<16x128xbf16>
    %c0_2 = arith.constant 0 : index
    %c0_3 = arith.constant 0 : index
    %c0_4 = arith.constant 0 : index
    %c0_5 = arith.constant 0 : index
    %2 = vector.load %arg3[%c0_2, %c0_3, %c0_4, %c0_5] : memref<1x1x32x128xbf16, #tpu.memory_space<vmem>>, vector<1x1x16x128xbf16>
    %3 = vector.shape_cast %2 : vector<1x1x16x128xbf16> to vector<16x128xbf16>
    %c0_6 = arith.constant 0 : index
    %c0_7 = arith.constant 0 : index
    %4 = vector.load %arg22[%c0_6, %c0_7] : memref<48x128xbf16, #tpu.memory_space<vmem>>, vector<16x128xbf16>
    tpu.vector_store %arg22[%c0_6, %c0_7], %3 {strides = array<i32>} : memref<48x128xbf16, #tpu.memory_space<vmem>>, vector<16x128xbf16>,
    %c16 = arith.constant 16 : index
    %c0_8 = arith.constant 0 : index
    %5 = vector.load %arg22[%c16, %c0_8] : memref<48x128xbf16, #tpu.memory_space<vmem>>, vector<16x128xbf16>
    tpu.vector_store %arg22[%c16, %c0_8], %1 {strides = array<i32>} : memref<48x128xbf16, #tpu.memory_space<vmem>>, vector<16x128xbf16>,
    %c0_9 = arith.constant 0 : index
    %c0_10 = arith.constant 0 : index
    %c16_11 = arith.constant 16 : index
    %c0_12 = arith.constant 0 : index
    %6 = vector.load %arg3[%c0_9, %c0_10, %c16_11, %c0_12] : memref<1x1x32x128xbf16, #tpu.memory_space<vmem>>, vector<1x1x16x128xbf16>
    %7 = vector.shape_cast %6 : vector<1x1x16x128xbf16> to vector<16x128xbf16>
    %c32 = arith.constant 32 : index
    %c0_13 = arith.constant 0 : index
    %8 = vector.load %arg22[%c32, %c0_13] : memref<48x128xbf16, #tpu.memory_space<vmem>>, vector<16x128xbf16>
    tpu.vector_store %arg22[%c32, %c0_13], %7 {strides = array<i32>} : memref<48x128xbf16, #tpu.memory_space<vmem>>, vector<16x128xbf16>,
    %cst = arith.constant 0.000000e+00 : f32
    %9 = vector.broadcast %cst : f32 to vector<16x128xf32>
    %cst_14 = arith.constant 0.000000e+00 : f32
    %10 = vector.broadcast %cst_14 : f32 to vector<16x128xf32>
    %cst_15 = arith.constant 0.000000e+00 : f32
    %11 = vector.broadcast %cst_15 : f32 to vector<16x128xf32>
    %cst_16 = arith.constant 0.000000e+00 : f32
    %12 = vector.broadcast %cst_16 : f32 to vector<16x128xf32>
    %c11 = arith.constant 11 : index
    %c0_17 = arith.constant 0 : index
    %13 = vector.load %arg22[%c11, %c0_17] : memref<48x128xbf16, #tpu.memory_space<vmem>>, vector<16x128xbf16>
    %c0_18 = arith.constant 0 : index
    %c0_19 = arith.constant 0 : index
    %14 = vector.load %arg4[%c0_18, %c0_19] : memref<128x128xbf16, #tpu.memory_space<vmem>>, vector<128x128xbf16>
    %cst_20 = arith.constant dense<0.000000e+00> : vector<16x128xf32>
    %15 = tpu.matmul %13, %14, %cst_20 {dimension_numbers = #tpu.dot_dimension_numbers<[1], [0], [0], [1], [0, 0, 1, 1], [], []>} : vector<16x128xbf16>, vector<128x128xbf16>, vector<16x128xf32> -> vector<16x128xf32>
    %16 = arith.addf %12, %15 : vector<16x128xf32>
    %c12 = arith.constant 12 : index
    %c0_21 = arith.constant 0 : index
    %17 = vector.load %arg22[%c12, %c0_21] : memref<48x128xbf16, #tpu.memory_space<vmem>>, vector<16x128xbf16>
    %c0_22 = arith.constant 0 : index
    %c0_23 = arith.constant 0 : index
    %18 = vector.load %arg5[%c0_22, %c0_23] : memref<128x128xbf16, #tpu.memory_space<vmem>>, vector<128x128xbf16>
    %cst_24 = arith.constant dense<0.000000e+00> : vector<16x128xf32>
    %19 = tpu.matmul %17, %18, %cst_24 {dimension_numbers = #tpu.dot_dimension_numbers<[1], [0], [0], [1], [0, 0, 1, 1], [], []>} : vector<16x128xbf16>, vector<128x128xbf16>, vector<16x128xf32> -> vector<16x128xf32>
    %20 = arith.addf %16, %19 : vector<16x128xf32>
    %c13 = arith.constant 13 : index
    %c0_25 = arith.constant 0 : index
    %21 = vector.load %arg22[%c13, %c0_25] : memref<48x128xbf16, #tpu.memory_space<vmem>>, vector<16x128xbf16>
    %c0_26 = arith.constant 0 : index
    %c0_27 = arith.constant 0 : index
    %22 = vector.load %arg6[%c0_26, %c0_27] : memref<128x256xbf16, #tpu.memory_space<vmem>>, vector<128x256xbf16>
    %cst_28 = arith.constant dense<0.000000e+00> : vector<16x256xf32>
    %23 = tpu.matmul %21, %22, %cst_28 {dimension_numbers = #tpu.dot_dimension_numbers<[1], [0], [0], [1], [0, 0, 1, 1], [], []>} : vector<16x128xbf16>, vector<128x256xbf16>, vector<16x256xf32> -> vector<16x256xf32>
    %24 = vector.extract_strided_slice %23 {offsets = [0, 0], sizes = [16, 128], strides = [1, 1]} : vector<16x256xf32> to vector<16x128xf32>
    %25 = arith.addf %11, %24 : vector<16x128xf32>
    %26 = vector.extract_strided_slice %23 {offsets = [0, 128], sizes = [16, 128], strides = [1, 1]} : vector<16x256xf32> to vector<16x128xf32>
    %27 = arith.addf %20, %26 : vector<16x128xf32>
    %c14 = arith.constant 14 : index
    %c0_29 = arith.constant 0 : index
    %28 = vector.load %arg22[%c14, %c0_29] : memref<48x128xbf16, #tpu.memory_space<vmem>>, vector<16x128xbf16>
    %c0_30 = arith.constant 0 : index
    %c0_31 = arith.constant 0 : index
    %29 = vector.load %arg7[%c0_30, %c0_31] : memref<128x256xbf16, #tpu.memory_space<vmem>>, vector<128x256xbf16>
    %cst_32 = arith.constant dense<0.000000e+00> : vector<16x256xf32>
    %30 = tpu.matmul %28, %29, %cst_32 {dimension_numbers = #tpu.dot_dimension_numbers<[1], [0], [0], [1], [0, 0, 1, 1], [], []>} : vector<16x128xbf16>, vector<128x256xbf16>, vector<16x256xf32> -> vector<16x256xf32>
    %31 = vector.extract_strided_slice %30 {offsets = [0, 0], sizes = [16, 128], strides = [1, 1]} : vector<16x256xf32> to vector<16x128xf32>
    %32 = arith.addf %25, %31 : vector<16x128xf32>
    %33 = vector.extract_strided_slice %30 {offsets = [0, 128], sizes = [16, 128], strides = [1, 1]} : vector<16x256xf32> to vector<16x128xf32>
    %34 = arith.addf %27, %33 : vector<16x128xf32>
    %c15 = arith.constant 15 : index
    %c0_33 = arith.constant 0 : index
    %35 = vector.load %arg22[%c15, %c0_33] : memref<48x128xbf16, #tpu.memory_space<vmem>>, vector<16x128xbf16>
    %c0_34 = arith.constant 0 : index
    %c0_35 = arith.constant 0 : index
    %36 = vector.load %arg8[%c0_34, %c0_35] : memref<128x384xbf16, #tpu.memory_space<vmem>>, vector<128x384xbf16>
    %cst_36 = arith.constant dense<0.000000e+00> : vector<16x384xf32>
    %37 = tpu.matmul %35, %36, %cst_36 {dimension_numbers = #tpu.dot_dimension_numbers<[1], [0], [0], [1], [0, 0, 1, 1], [], []>} : vector<16x128xbf16>, vector<128x384xbf16>, vector<16x384xf32> -> vector<16x384xf32>
    %38 = vector.extract_strided_slice %37 {offsets = [0, 0], sizes = [16, 128], strides = [1, 1]} : vector<16x384xf32> to vector<16x128xf32>
    %39 = arith.addf %10, %38 : vector<16x128xf32>
    %40 = vector.extract_strided_slice %37 {offsets = [0, 128], sizes = [16, 128], strides = [1, 1]} : vector<16x384xf32> to vector<16x128xf32>
    %41 = arith.addf %32, %40 : vector<16x128xf32>
    %42 = vector.extract_strided_slice %37 {offsets = [0, 256], sizes = [16, 128], strides = [1, 1]} : vector<16x384xf32> to vector<16x128xf32>
    %43 = arith.addf %34, %42 : vector<16x128xf32>
    %c0_37 = arith.constant 0 : index
    %c0_38 = arith.constant 0 : index
    %44 = vector.load %arg9[%c0_37, %c0_38] : memref<128x512xbf16, #tpu.memory_space<vmem>>, vector<128x512xbf16>
    %cst_39 = arith.constant dense<0.000000e+00> : vector<16x512xf32>
    %45 = tpu.matmul %1, %44, %cst_39 {dimension_numbers = #tpu.dot_dimension_numbers<[1], [0], [0], [1], [0, 0, 1, 1], [], []>} : vector<16x128xbf16>, vector<128x512xbf16>, vector<16x512xf32> -> vector<16x512xf32>
    %46 = vector.extract_strided_slice %45 {offsets = [0, 0], sizes = [16, 128], strides = [1, 1]} : vector<16x512xf32> to vector<16x128xf32>
    %47 = arith.addf %9, %46 : vector<16x128xf32>
    %48 = vector.extract_strided_slice %45 {offsets = [0, 128], sizes = [16, 128], strides = [1, 1]} : vector<16x512xf32> to vector<16x128xf32>
    %49 = arith.addf %39, %48 : vector<16x128xf32>
    %50 = vector.extract_strided_slice %45 {offsets = [0, 256], sizes = [16, 128], strides = [1, 1]} : vector<16x512xf32> to vector<16x128xf32>
    %51 = arith.addf %41, %50 : vector<16x128xf32>
    %52 = vector.extract_strided_slice %45 {offsets = [0, 384], sizes = [16, 128], strides = [1, 1]} : vector<16x512xf32> to vector<16x128xf32>
    %53 = arith.addf %43, %52 : vector<16x128xf32>
    %c17 = arith.constant 17 : index
    %c0_40 = arith.constant 0 : index
    %54 = vector.load %arg22[%c17, %c0_40] : memref<48x128xbf16, #tpu.memory_space<vmem>>, vector<16x128xbf16>
    %c0_41 = arith.constant 0 : index
    %c0_42 = arith.constant 0 : index
    %55 = vector.load %arg10[%c0_41, %c0_42] : memref<128x384xbf16, #tpu.memory_space<vmem>>, vector<128x384xbf16>
    %cst_43 = arith.constant dense<0.000000e+00> : vector<16x384xf32>
    %56 = tpu.matmul %54, %55, %cst_43 {dimension_numbers = #tpu.dot_dimension_numbers<[1], [0], [0], [1], [0, 0, 1, 1], [], []>} : vector<16x128xbf16>, vector<128x384xbf16>, vector<16x384xf32> -> vector<16x384xf32>
    %57 = vector.extract_strided_slice %56 {offsets = [0, 0], sizes = [16, 128], strides = [1, 1]} : vector<16x384xf32> to vector<16x128xf32>
    %58 = arith.addf %49, %57 : vector<16x128xf32>
    %59 = vector.extract_strided_slice %56 {offsets = [0, 128], sizes = [16, 128], strides = [1, 1]} : vector<16x384xf32> to vector<16x128xf32>
    %60 = arith.addf %51, %59 : vector<16x128xf32>
    %61 = vector.extract_strided_slice %56 {offsets = [0, 256], sizes = [16, 128], strides = [1, 1]} : vector<16x384xf32> to vector<16x128xf32>
    %62 = arith.addf %53, %61 : vector<16x128xf32>
    %c18 = arith.constant 18 : index
    %c0_44 = arith.constant 0 : index
    %63 = vector.load %arg22[%c18, %c0_44] : memref<48x128xbf16, #tpu.memory_space<vmem>>, vector<16x128xbf16>
    %c0_45 = arith.constant 0 : index
    %c0_46 = arith.constant 0 : index
    %64 = vector.load %arg11[%c0_45, %c0_46] : memref<128x256xbf16, #tpu.memory_space<vmem>>, vector<128x256xbf16>
    %cst_47 = arith.constant dense<0.000000e+00> : vector<16x256xf32>
    %65 = tpu.matmul %63, %64, %cst_47 {dimension_numbers = #tpu.dot_dimension_numbers<[1], [0], [0], [1], [0, 0, 1, 1], [], []>} : vector<16x128xbf16>, vector<128x256xbf16>, vector<16x256xf32> -> vector<16x256xf32>
    %66 = vector.extract_strided_slice %65 {offsets = [0, 0], sizes = [16, 128], strides = [1, 1]} : vector<16x256xf32> to vector<16x128xf32>
    %67 = arith.addf %60, %66 : vector<16x128xf32>
    %68 = vector.extract_strided_slice %65 {offsets = [0, 128], sizes = [16, 128], strides = [1, 1]} : vector<16x256xf32> to vector<16x128xf32>
    %69 = arith.addf %62, %68 : vector<16x128xf32>
    %c19 = arith.constant 19 : index
    %c0_48 = arith.constant 0 : index
    %70 = vector.load %arg22[%c19, %c0_48] : memref<48x128xbf16, #tpu.memory_space<vmem>>, vector<16x128xbf16>
    %c0_49 = arith.constant 0 : index
    %c0_50 = arith.constant 0 : index
    %71 = vector.load %arg12[%c0_49, %c0_50] : memref<128x256xbf16, #tpu.memory_space<vmem>>, vector<128x256xbf16>
    %cst_51 = arith.constant dense<0.000000e+00> : vector<16x256xf32>
    %72 = tpu.matmul %70, %71, %cst_51 {dimension_numbers = #tpu.dot_dimension_numbers<[1], [0], [0], [1], [0, 0, 1, 1], [], []>} : vector<16x128xbf16>, vector<128x256xbf16>, vector<16x256xf32> -> vector<16x256xf32>
    %73 = vector.extract_strided_slice %72 {offsets = [0, 0], sizes = [16, 128], strides = [1, 1]} : vector<16x256xf32> to vector<16x128xf32>
    %74 = arith.addf %67, %73 : vector<16x128xf32>
    %75 = vector.extract_strided_slice %72 {offsets = [0, 128], sizes = [16, 128], strides = [1, 1]} : vector<16x256xf32> to vector<16x128xf32>
    %76 = arith.addf %69, %75 : vector<16x128xf32>
    %c20 = arith.constant 20 : index
    %c0_52 = arith.constant 0 : index
    %77 = vector.load %arg22[%c20, %c0_52] : memref<48x128xbf16, #tpu.memory_space<vmem>>, vector<16x128xbf16>
    %c0_53 = arith.constant 0 : index
    %c0_54 = arith.constant 0 : index
    %78 = vector.load %arg13[%c0_53, %c0_54] : memref<128x128xbf16, #tpu.memory_space<vmem>>, vector<128x128xbf16>
    %cst_55 = arith.constant dense<0.000000e+00> : vector<16x128xf32>
    %79 = tpu.matmul %77, %78, %cst_55 {dimension_numbers = #tpu.dot_dimension_numbers<[1], [0], [0], [1], [0, 0, 1, 1], [], []>} : vector<16x128xbf16>, vector<128x128xbf16>, vector<16x128xf32> -> vector<16x128xf32>
    %80 = arith.addf %76, %79 : vector<16x128xf32>
    %c21 = arith.constant 21 : index
    %c0_56 = arith.constant 0 : index
    %81 = vector.load %arg22[%c21, %c0_56] : memref<48x128xbf16, #tpu.memory_space<vmem>>, vector<16x128xbf16>
    %c0_57 = arith.constant 0 : index
    %c0_58 = arith.constant 0 : index
    %82 = vector.load %arg14[%c0_57, %c0_58] : memref<128x128xbf16, #tpu.memory_space<vmem>>, vector<128x128xbf16>
    %cst_59 = arith.constant dense<0.000000e+00> : vector<16x128xf32>
    %83 = tpu.matmul %81, %82, %cst_59 {dimension_numbers = #tpu.dot_dimension_numbers<[1], [0], [0], [1], [0, 0, 1, 1], [], []>} : vector<16x128xbf16>, vector<128x128xbf16>, vector<16x128xf32> -> vector<16x128xf32>
    %84 = arith.addf %80, %83 : vector<16x128xf32>
    %c0_60 = arith.constant 0 : index
    %c0_61 = arith.constant 0 : index
    %85 = vector.load %arg15[%c0_60, %c0_61] : memref<1x128xf32, #tpu.memory_space<vmem>>, vector<1x128xf32>
    %86 = vector.broadcast %85 : vector<1x128xf32> to vector<16x128xf32>
    %87 = arith.addf %47, %86 : vector<16x128xf32>
    %cst_62 = arith.constant 5.000000e-01 : f32
    %88 = vector.broadcast %cst_62 : f32 to vector<16x128xf32>
    %89 = arith.mulf %88, %87 : vector<16x128xf32>
    %cst_63 = arith.constant 5.000000e-01 : f32
    %90 = vector.broadcast %cst_63 : f32 to vector<16x128xf32>
    %91 = arith.mulf %90, %87 : vector<16x128xf32>
    %92 = math.tanh %91 : vector<16x128xf32>
    %cst_64 = arith.constant 1.000000e+00 : f32
    %93 = vector.broadcast %cst_64 : f32 to vector<16x128xf32>
    %94 = arith.addf %92, %93 : vector<16x128xf32>
    %95 = arith.mulf %89, %94 : vector<16x128xf32>
    %96 = arith.truncf %95 : vector<16x128xf32> to vector<16x128xbf16>
    %c0_65 = arith.constant 0 : index
    %c0_66 = arith.constant 0 : index
    %97 = vector.load %arg16[%c0_65, %c0_66] : memref<1x128xf32, #tpu.memory_space<vmem>>, vector<1x128xf32>
    %98 = vector.broadcast %97 : vector<1x128xf32> to vector<16x128xf32>
    %99 = arith.addf %58, %98 : vector<16x128xf32>
    %cst_67 = arith.constant 5.000000e-01 : f32
    %100 = vector.broadcast %cst_67 : f32 to vector<16x128xf32>
    %101 = arith.mulf %100, %99 : vector<16x128xf32>
    %cst_68 = arith.constant 5.000000e-01 : f32
    %102 = vector.broadcast %cst_68 : f32 to vector<16x128xf32>
    %103 = arith.mulf %102, %99 : vector<16x128xf32>
    %104 = math.tanh %103 : vector<16x128xf32>
    %cst_69 = arith.constant 1.000000e+00 : f32
    %105 = vector.broadcast %cst_69 : f32 to vector<16x128xf32>
    %106 = arith.addf %104, %105 : vector<16x128xf32>
    %107 = arith.mulf %101, %106 : vector<16x128xf32>
    %108 = arith.truncf %107 : vector<16x128xf32> to vector<16x128xbf16>
    %c0_70 = arith.constant 0 : index
    %c0_71 = arith.constant 0 : index
    %109 = vector.load %arg17[%c0_70, %c0_71] : memref<1x128xf32, #tpu.memory_space<vmem>>, vector<1x128xf32>
    %110 = vector.broadcast %109 : vector<1x128xf32> to vector<16x128xf32>
    %111 = arith.addf %74, %110 : vector<16x128xf32>
    %cst_72 = arith.constant 5.000000e-01 : f32
    %112 = vector.broadcast %cst_72 : f32 to vector<16x128xf32>
    %113 = arith.mulf %112, %111 : vector<16x128xf32>
    %cst_73 = arith.constant 5.000000e-01 : f32
    %114 = vector.broadcast %cst_73 : f32 to vector<16x128xf32>
    %115 = arith.mulf %114, %111 : vector<16x128xf32>
    %116 = math.tanh %115 : vector<16x128xf32>
    %cst_74 = arith.constant 1.000000e+00 : f32
    %117 = vector.broadcast %cst_74 : f32 to vector<16x128xf32>
    %118 = arith.addf %116, %117 : vector<16x128xf32>
    %119 = arith.mulf %113, %118 : vector<16x128xf32>
    %120 = arith.truncf %119 : vector<16x128xf32> to vector<16x128xbf16>
    %c0_75 = arith.constant 0 : index
    %c0_76 = arith.constant 0 : index
    %121 = vector.load %arg18[%c0_75, %c0_76] : memref<1x128xf32, #tpu.memory_space<vmem>>, vector<1x128xf32>
    %122 = vector.broadcast %121 : vector<1x128xf32> to vector<16x128xf32>
    %123 = arith.addf %84, %122 : vector<16x128xf32>
    %cst_77 = arith.constant 5.000000e-01 : f32
    %124 = vector.broadcast %cst_77 : f32 to vector<16x128xf32>
    %125 = arith.mulf %124, %123 : vector<16x128xf32>
    %cst_78 = arith.constant 5.000000e-01 : f32
    %126 = vector.broadcast %cst_78 : f32 to vector<16x128xf32>
    %127 = arith.mulf %126, %123 : vector<16x128xf32>
    %128 = math.tanh %127 : vector<16x128xf32>
    %cst_79 = arith.constant 1.000000e+00 : f32
    %129 = vector.broadcast %cst_79 : f32 to vector<16x128xf32>
    %130 = arith.addf %128, %129 : vector<16x128xf32>
    %131 = arith.mulf %125, %130 : vector<16x128xf32>
    %132 = arith.truncf %131 : vector<16x128xf32> to vector<16x128xbf16>
    %133 = tpu.concatenate %1, %96, %108, %120, %132 in 1 : vector<16x128xbf16>, vector<16x128xbf16>, vector<16x128xbf16>, vector<16x128xbf16>, vector<16x128xbf16> -> vector<16x640xbf16>
    %c0_80 = arith.constant 0 : index
    %c0_81 = arith.constant 0 : index
    %134 = vector.load %arg19[%c0_80, %c0_81] : memref<640x128xbf16, #tpu.memory_space<vmem>>, vector<640x128xbf16>
    %cst_82 = arith.constant dense<0.000000e+00> : vector<16x128xf32>
    %135 = tpu.matmul %133, %134, %cst_82 {dimension_numbers = #tpu.dot_dimension_numbers<[1], [0], [0], [1], [0, 0, 1, 1], [], []>} : vector<16x640xbf16>, vector<640x128xbf16>, vector<16x128xf32> -> vector<16x128xf32>
    %c0_83 = arith.constant 0 : index
    %c0_84 = arith.constant 0 : index
    %136 = vector.load %arg20[%c0_83, %c0_84] : memref<1x128xf32, #tpu.memory_space<vmem>>, vector<1x128xf32>
    %137 = vector.broadcast %136 : vector<1x128xf32> to vector<16x128xf32>
    %138 = arith.addf %135, %137 : vector<16x128xf32>
    %139 = arith.truncf %138 : vector<16x128xf32> to vector<16x128xbf16>
    %c0_85 = arith.constant 0 : index
    %c0_86 = arith.constant 0 : index
    %c0_87 = arith.constant 0 : index
    %140 = vector.load %arg21[%c0_85, %c0_86, %c0_87] : memref<1x16x128xbf16, #tpu.memory_space<vmem>>, vector<1x16x128xbf16>
    %141 = vector.shape_cast %140 : vector<1x16x128xbf16> to vector<16x128xbf16>
    %142 = vector.shape_cast %139 : vector<16x128xbf16> to vector<1x16x128xbf16>
    tpu.vector_store %arg21[%c0_85, %c0_86, %c0_87], %142 {strides = array<i32>} : memref<1x16x128xbf16, #tpu.memory_space<vmem>>, vector<1x16x128xbf16>,
    return
  }
  func.func @transform_0(%arg0: i32, %arg1: i32) -> (i32, i32, i32) {
    %c0_i32 = arith.constant 0 : i32
    %c0_i32_0 = arith.constant 0 : i32
    return %arg0, %arg1, %c0_i32 : i32, i32, i32
  }
  func.func @transform_1(%arg0: i32, %arg1: i32) -> (i32, i32, i32, i32) {
    %c0_i32 = arith.constant 0 : i32
    %c0_i32_0 = arith.constant 0 : i32
    %c0_i32_1 = arith.constant 0 : i32
    return %arg0, %arg1, %c0_i32, %c0_i32_0 : i32, i32, i32, i32
  }
  func.func @transform_2(%arg0: i32, %arg1: i32) -> (i32, i32) {
    %c0_i32 = arith.constant 0 : i32
    %c0_i32_0 = arith.constant 0 : i32
    %c0_i32_1 = arith.constant 0 : i32
    return %c0_i32, %c0_i32_0 : i32, i32
  }
  func.func @transform_3(%arg0: i32, %arg1: i32) -> (i32, i32) {
    %c0_i32 = arith.constant 0 : i32
    %c0_i32_0 = arith.constant 0 : i32
    %c0_i32_1 = arith.constant 0 : i32
    return %c0_i32, %c0_i32_0 : i32, i32
  }
  func.func @transform_4(%arg0: i32, %arg1: i32) -> (i32, i32) {
    %c0_i32 = arith.constant 0 : i32
    %c0_i32_0 = arith.constant 0 : i32
    %c0_i32_1 = arith.constant 0 : i32
    return %c0_i32, %c0_i32_0 : i32, i32
  }
  func.func @transform_5(%arg0: i32, %arg1: i32) -> (i32, i32) {
    %c0_i32 = arith.constant 0 : i32
    %c0_i32_0 = arith.constant 0 : i32
    %c0_i32_1 = arith.constant 0 : i32
    return %c0_i32, %c0_i32_0 : i32, i32
  }
  func.func @transform_6(%arg0: i32, %arg1: i32) -> (i32, i32) {
    %c0_i32 = arith.constant 0 : i32
    %c0_i32_0 = arith.constant 0 : i32
    %c0_i32_1 = arith.constant 0 : i32
    return %c0_i32, %c0_i32_0 : i32, i32
  }
  func.func @transform_7(%arg0: i32, %arg1: i32) -> (i32, i32) {
    %c0_i32 = arith.constant 0 : i32
    %c0_i32_0 = arith.constant 0 : i32
    %c0_i32_1 = arith.constant 0 : i32
    return %c0_i32, %c0_i32_0 : i32, i32
  }
  func.func @transform_8(%arg0: i32, %arg1: i32) -> (i32, i32) {
    %c0_i32 = arith.constant 0 : i32
    %c0_i32_0 = arith.constant 0 : i32
    %c0_i32_1 = arith.constant 0 : i32
    return %c0_i32, %c0_i32_0 : i32, i32
  }
  func.func @transform_9(%arg0: i32, %arg1: i32) -> (i32, i32) {
    %c0_i32 = arith.constant 0 : i32
    %c0_i32_0 = arith.constant 0 : i32
    %c0_i32_1 = arith.constant 0 : i32
    return %c0_i32, %c0_i32_0 : i32, i32
  }
  func.func @transform_10(%arg0: i32, %arg1: i32) -> (i32, i32) {
    %c0_i32 = arith.constant 0 : i32
    %c0_i32_0 = arith.constant 0 : i32
    %c0_i32_1 = arith.constant 0 : i32
    return %c0_i32, %c0_i32_0 : i32, i32
  }
  func.func @transform_11(%arg0: i32, %arg1: i32) -> (i32, i32) {
    %c0_i32 = arith.constant 0 : i32
    %c0_i32_0 = arith.constant 0 : i32
    %c0_i32_1 = arith.constant 0 : i32
    return %c0_i32, %c0_i32_0 : i32, i32
  }
  func.func @transform_12(%arg0: i32, %arg1: i32) -> (i32, i32) {
    %c0_i32 = arith.constant 0 : i32
    %c0_i32_0 = arith.constant 0 : i32
    %c0_i32_1 = arith.constant 0 : i32
    return %c0_i32, %c0_i32_0 : i32, i32
  }
  func.func @transform_13(%arg0: i32, %arg1: i32) -> (i32, i32) {
    %c0_i32 = arith.constant 0 : i32
    %c0_i32_0 = arith.constant 0 : i32
    %c0_i32_1 = arith.constant 0 : i32
    return %c0_i32, %c0_i32_0 : i32, i32
  }
  func.func @transform_14(%arg0: i32, %arg1: i32) -> (i32, i32) {
    %c0_i32 = arith.constant 0 : i32
    %c0_i32_0 = arith.constant 0 : i32
    %c0_i32_1 = arith.constant 0 : i32
    return %c0_i32, %c0_i32_0 : i32, i32
  }
  func.func @transform_15(%arg0: i32, %arg1: i32) -> (i32, i32) {
    %c0_i32 = arith.constant 0 : i32
    %c0_i32_0 = arith.constant 0 : i32
    %c0_i32_1 = arith.constant 0 : i32
    return %c0_i32, %c0_i32_0 : i32, i32
  }
  func.func @transform_16(%arg0: i32, %arg1: i32) -> (i32, i32) {
    %c0_i32 = arith.constant 0 : i32
    %c0_i32_0 = arith.constant 0 : i32
    %c0_i32_1 = arith.constant 0 : i32
    return %c0_i32, %c0_i32_0 : i32, i32
  }
  func.func @transform_17(%arg0: i32, %arg1: i32) -> (i32, i32) {
    %c0_i32 = arith.constant 0 : i32
    %c0_i32_0 = arith.constant 0 : i32
    %c0_i32_1 = arith.constant 0 : i32
    return %c0_i32, %c0_i32_0 : i32, i32
  }
  func.func @transform_18(%arg0: i32, %arg1: i32) -> (i32, i32) {
    %c0_i32 = arith.constant 0 : i32
    %c0_i32_0 = arith.constant 0 : i32
    %c0_i32_1 = arith.constant 0 : i32
    return %c0_i32, %c0_i32_0 : i32, i32
  }
  func.func @transform_19(%arg0: i32, %arg1: i32) -> (i32, i32, i32) {
    %c0_i32 = arith.constant 0 : i32
    %c0_i32_0 = arith.constant 0 : i32
    return %arg0, %arg1, %c0_i32 : i32, i32, i32
  }
}

</mosaic_0001>

<llo_original>
// kernel: tpu_custom_call.1
$region0: #{tpu_custom_call.1}
  #allocation0 [shape = 'u32[]', space=smem, size = 0x4, offset = 0x4, fixed_abs, tag = 'smem constant byte address 0x4 - core index']
  #allocation1 [shape = 'u32[144,128]{1,0:T(1,128)}', space=vmem, size = 0x12000, scoped, tag = 'internal scratch']
  #allocation2 [shape = 'bf16[48,128]{1,0:T(16,128)(2,1)}', space=vmem, size = 0x3000, scoped, tag = 'scratch operand']
  %s0 = inlined_call_operand.hbm [shape: bf16[2,16,128], index: 0, kind: input, shape index: {}]
  %s1 = inlined_call_operand.hbm [shape: bf16[2,1,32,128], index: 1, kind: input, shape index: {}]
  %s2 = inlined_call_operand.hbm [shape: bf16[128,128], index: 2, kind: input, shape index: {}]
  %s3 = inlined_call_operand.hbm [shape: bf16[128,128], index: 3, kind: input, shape index: {}]
  %s4 = inlined_call_operand.hbm [shape: bf16[128,256], index: 4, kind: input, shape index: {}]
  %s5 = inlined_call_operand.hbm [shape: bf16[128,256], index: 5, kind: input, shape index: {}]
  %s6 = inlined_call_operand.hbm [shape: bf16[128,384], index: 6, kind: input, shape index: {}]
  %s7 = inlined_call_operand.hbm [shape: bf16[128,512], index: 7, kind: input, shape index: {}]
  %s8 = inlined_call_operand.hbm [shape: bf16[128,384], index: 8, kind: input, shape index: {}]
  %s9 = inlined_call_operand.hbm [shape: bf16[128,256], index: 9, kind: input, shape index: {}]
  %s10 = inlined_call_operand.hbm [shape: bf16[128,256], index: 10, kind: input, shape index: {}]
  %s11 = inlined_call_operand.hbm [shape: bf16[128,128], index: 11, kind: input, shape index: {}]
  %s12 = inlined_call_operand.hbm [shape: bf16[128,128], index: 12, kind: input, shape index: {}]
  %s13 = inlined_call_operand.vmem [shape: f32[1,128], index: 13, kind: input, shape index: {}]
  %s14 = inlined_call_operand.vmem [shape: f32[1,128], index: 14, kind: input, shape index: {}]
  %s15 = inlined_call_operand.vmem [shape: f32[1,128], index: 15, kind: input, shape index: {}]
  %s16 = inlined_call_operand.vmem [shape: f32[1,128], index: 16, kind: input, shape index: {}]
  %s17 = inlined_call_operand.hbm [shape: bf16[640,128], index: 17, kind: input, shape index: {}]
  %s18 = inlined_call_operand.vmem [shape: f32[1,128], index: 18, kind: input, shape index: {}]
  %s19 = inlined_call_operand.hbm [shape: bf16[2,16,128], index: 19, kind: output, shape index: {}]
  %s20 = sld [smem:[#allocation0]]
  $region165: #{tpu_custom_call.1} parent=0
    _
  %s22 = ssub.s32 1, %s20
  %s23 = scalar_select 0, %s22, %s20
  $region1: #{tpu_custom_call.1} parent=0
    #allocation3 [shape = 'u8[8192]{0}', space=vmem, size = 0x2000, scoped, tag = 'input window, operand 0']
    #allocation4 [shape = 's32[2]{0}', space=sflag, size = 0x8, scoped, tag = 'scoped memory for tpu_custom_call.1']
    #allocation5 [shape = 's32[2]{0}', space=sflag, size = 0x8, scoped, tag = 'scoped memory for tpu_custom_call.1']
    #allocation6 [shape = 'u8[16384]{0}', space=vmem, size = 0x4000, scoped, tag = 'input window, operand 1']
    #allocation7 [shape = 's32[2]{0}', space=sflag, size = 0x8, scoped, tag = 'scoped memory for tpu_custom_call.1']
    #allocation8 [shape = 'u8[32768]{0}', space=vmem, size = 0x8000, scoped, tag = 'input window, operand 2, single buffered']
    #allocation9 [shape = 'u8[32768]{0}', space=vmem, size = 0x8000, scoped, tag = 'input window, operand 3, single buffered']
    #allocation10 [shape = 's32[1]{0}', space=sflag, size = 0x4, scoped, tag = 'scoped memory for tpu_custom_call.1']
    #allocation11 [shape = 'u8[65536]{0}', space=vmem, size = 0x10000, scoped, tag = 'input window, operand 4, single buffered']
    #allocation12 [shape = 'u8[65536]{0}', space=vmem, size = 0x10000, scoped, tag = 'input window, operand 5, single buffered']
    #allocation13 [shape = 's32[1]{0}', space=sflag, size = 0x4, scoped, tag = 'scoped memory for tpu_custom_call.1']
    #allocation14 [shape = 'u8[98304]{0}', space=vmem, size = 0x18000, scoped, tag = 'input window, operand 6, single buffered']
    #allocation15 [shape = 'u8[131072]{0}', space=vmem, size = 0x20000, scoped, tag = 'input window, operand 7, single buffered']
    #allocation16 [shape = 's32[1]{0}', space=sflag, size = 0x4, scoped, tag = 'scoped memory for tpu_custom_call.1']
    #allocation17 [shape = 'u8[98304]{0}', space=vmem, size = 0x18000, scoped, tag = 'input window, operand 8, single buffered']
    #allocation18 [shape = 'u8[65536]{0}', space=vmem, size = 0x10000, scoped, tag = 'input window, operand 9, single buffered']
    #allocation19 [shape = 's32[1]{0}', space=sflag, size = 0x4, scoped, tag = 'scoped memory for tpu_custom_call.1']
    #allocation20 [shape = 'u8[65536]{0}', space=vmem, size = 0x10000, scoped, tag = 'input window, operand 10, single buffered']
    #allocation21 [shape = 'u8[32768]{0}', space=vmem, size = 0x8000, scoped, tag = 'input window, operand 11, single buffered']
    #allocation22 [shape = 's32[1]{0}', space=sflag, size = 0x4, scoped, tag = 'scoped memory for tpu_custom_call.1']
    #allocation23 [shape = 'u8[32768]{0}', space=vmem, size = 0x8000, scoped, tag = 'input window, operand 12, single buffered']
    #allocation24 [shape = 'u8[163840]{0}', space=vmem, size = 0x28000, scoped, tag = 'input window, operand 17, single buffered']
    #allocation25 [shape = 's32[1]{0}', space=sflag, size = 0x4, scoped, tag = 'scoped memory for tpu_custom_call.1']
    #allocation26 [shape = 'u8[8192]{0}', space=vmem, size = 0x2000, scoped, tag = 'output window, operand 0']
    %24 = vsyncpa [#allocation4], 0
    %s25 = scalar_lea.sflag [#allocation4], 1
    %26 = vsyncpa %s25, 0
    %27 = vsyncpa [#allocation7], 0
    %s28 = scalar_lea.sflag [#allocation7], 1
    %29 = vsyncpa %s28, 0
    %30 = vsyncpa [#allocation10], 0
    %31 = vsyncpa [#allocation13], 0
    %32 = vsyncpa [#allocation16], 0
    %33 = vsyncpa [#allocation19], 0
    %34 = vsyncpa [#allocation22], 0
    %35 = vsyncpa [#allocation25], 0
    %36 = vsyncpa [#allocation5], 0
    %s37 = scalar_lea.sflag [#allocation5], 1
    %38 = vsyncpa %s37, 0
    loop: start=0, step=1, limit=4
    $region2: #{tpu_custom_call.1} parent=1 // loop_pre_header
      _
    $region3: #{tpu_custom_call.1} parent=1 // loop_header
      %s40 = sphi 0, %s44
      %p41 = scmp.ge.s32.totalorder %s40, 4
      %s47 = sphi 0, %s59
      %s48 = sphi 0, %s55
      %s49 = sphi 0, %s47
      %s50 = sphi 0, %s48
      %s51 = sphi 0, %s49
      %s52 = sphi 0, %s50
      %s64 = sphi 0, %s66
      %s67 = sphi 0, %s64
      %s68 = sphi 0, %s67
      %s84 = sphi 0, %s68
      %s92 = sphi 0, %s94
      %s95 = sphi 0, %s92
      %s96 = sphi 0, %s95
      %s112 = sphi 0, %s96
      %s116 = sphi 0, %s116
      %s118 = sphi 0, %s116
      %s119 = sphi 0, %s118
      %s133 = sphi 0, %s119
      %s137 = sphi 0, %s137
      %s139 = sphi 0, %s137
      %s140 = sphi 0, %s139
      %s154 = sphi 0, %s140
      %s158 = sphi 0, %s158
      %s160 = sphi 0, %s158
      %s161 = sphi 0, %s160
      %s175 = sphi 0, %s161
      %s179 = sphi 0, %s179
      %s181 = sphi 0, %s179
      %s182 = sphi 0, %s181
      %s196 = sphi 0, %s182
      %s200 = sphi 0, %s200
      %s202 = sphi 0, %s200
      %s203 = sphi 0, %s202
      %s217 = sphi 0, %s203
      %s221 = sphi 0, %s221
      %s223 = sphi 0, %s221
      %s224 = sphi 0, %s223
      %s238 = sphi 0, %s224
      %s242 = sphi 0, %s242
      %s244 = sphi 0, %s242
      %s245 = sphi 0, %s244
      %s259 = sphi 0, %s245
      %s263 = sphi 0, %s263
      %s265 = sphi 0, %s263
      %s266 = sphi 0, %s265
      %s280 = sphi 0, %s266
      %s284 = sphi 0, %s284
      %s286 = sphi 0, %s284
      %s287 = sphi 0, %s286
      %s301 = sphi 0, %s287
      %s305 = sphi 0, %s305
      %s307 = sphi 0, %s305
      %s308 = sphi 0, %s307
      %s322 = sphi 0, %s308
      %s326 = sphi 0, %s326
      %s328 = sphi 0, %s326
      %s329 = sphi 0, %s328
      %s343 = sphi 0, %s329
      %s347 = sphi 0, %s347
      %s349 = sphi 0, %s347
      %s350 = sphi 0, %s349
      %s364 = sphi 0, %s350
      %s368 = sphi 0, %s368
      %s370 = sphi 0, %s368
      %s371 = sphi 0, %s370
      %s385 = sphi 0, %s371
      %s389 = sphi 0, %s389
      %s391 = sphi 0, %s389
      %s392 = sphi 0, %s391
      %s406 = sphi 0, %s392
      %s410 = sphi 0, %s410
      %s412 = sphi 0, %s410
      %s413 = sphi 0, %s412
      %s427 = sphi 0, %s413
      %s431 = sphi 0, %s431
      %s433 = sphi 0, %s431
      %s434 = sphi 0, %s433
      %s448 = sphi 0, %s434
      %s452 = sphi 0, %s452
      %s454 = sphi 0, %s452
      %s455 = sphi 0, %s454
      %s469 = sphi 0, %s455
      %s477 = sphi 0, %s479
      %s480 = sphi 0, %s477
      %s481 = sphi 0, %s480
      %s497 = sphi 0, %s481
    $region4: #{tpu_custom_call.1} parent=1 // loop_header_branch
      %43 = sbr.rel (%p41) target = $region8
    $region5: #{tpu_custom_call.1} parent=1 // loop_body
      %s45 = ssub.s32 %s40, 1
      %s46 = ssub.s32 %s40, 2
      %s53 = sadd.s32 1, %s48
      %p54 = scmp.ge.s32.totalorder %s53, 1
      %s55 = scalar_select %p54, 0, %s53
      %s56 = sadd.s32 1, %s47
      %s57 = scalar_select %p54, %s56, %s47
      %p58 = scmp.ge.s32.totalorder %s57, 2
      %s59 = scalar_select %p58, 0, %s57
      %s60 = ssub.s32 %s47, %s59
      %s61 = ssub.s32 %s48, %s55
      %s62 = sor.u32 %s60, %s61
      %p63 = scmp.eq.s32.totalorder %s62, 0
      %s65 = sadd.s32 %s64, 1
      %s66 = scalar_select %p63, %s64, %s65
      %p69 = pneg %p63
      %p70 = scmp.eq.s32.totalorder %s40, 1
      %p71 = por %p69, %p70
      %p72 = scmp.ne.s32.totalorder %s64, %s67
      %p73 = scmp.eq.s32.totalorder %s40, 0
      %p74 = por %p72, %p73
      %p75 = scmp.ne.s32.totalorder %s64, %s67
      %p76 = scmp.eq.s32.totalorder %s45, 1
      %p77 = por %p75, %p76
      %p78 = scmp.ne.s32.totalorder %s67, %s68
      %p79 = scmp.eq.s32.totalorder %s45, 0
      %p80 = por %p78, %p79
      %p81 = scmp.ne.s32.totalorder %s67, %s68
      %p82 = scmp.eq.s32.totalorder %s46, 1
      %p83 = por %p81, %p82
      %p85 = scmp.ne.s32.totalorder %s68, %s84
      %p86 = scmp.eq.s32.totalorder %s46, 0
      %p87 = por %p85, %p86
      %s88 = ssub.s32 %s47, %s59
      %s89 = ssub.s32 %s48, %s55
      %s90 = sor.u32 %s88, %s89
      %p91 = scmp.eq.s32.totalorder %s90, 0
      %s93 = sadd.s32 %s92, 1
      %s94 = scalar_select %p91, %s92, %s93
      %p97 = pneg %p91
      %p98 = scmp.eq.s32.totalorder %s40, 1
      %p99 = por %p97, %p98
      %p100 = scmp.ne.s32.totalorder %s92, %s95
      %p101 = scmp.eq.s32.totalorder %s40, 0
      %p102 = por %p100, %p101
      %p103 = scmp.ne.s32.totalorder %s92, %s95
      %p104 = scmp.eq.s32.totalorder %s45, 1
      %p105 = por %p103, %p104
      %p106 = scmp.ne.s32.totalorder %s95, %s96
      %p107 = scmp.eq.s32.totalorder %s45, 0
      %p108 = por %p106, %p107
      %p109 = scmp.ne.s32.totalorder %s95, %s96
      %p110 = scmp.eq.s32.totalorder %s46, 1
      %p111 = por %p109, %p110
      %p113 = scmp.ne.s32.totalorder %s96, %s112
      %p114 = scmp.eq.s32.totalorder %s46, 0
      %p115 = por %p113, %p114
      %s117 = sadd.s32 %s116, 1
      %p120 = scmp.eq.s32.totalorder %s40, 1
      %p121 = scmp.ne.s32.totalorder %s116, %s118
      %p122 = scmp.eq.s32.totalorder %s40, 0
      %p123 = por %p121, %p122
      %p124 = scmp.ne.s32.totalorder %s116, %s118
      %p125 = scmp.eq.s32.totalorder %s45, 1
      %p126 = por %p124, %p125
      %p127 = scmp.ne.s32.totalorder %s118, %s119
      %p128 = scmp.eq.s32.totalorder %s45, 0
      %p129 = por %p127, %p128
      %p130 = scmp.ne.s32.totalorder %s118, %s119
      %p131 = scmp.eq.s32.totalorder %s46, 1
      %p132 = por %p130, %p131
      %p134 = scmp.ne.s32.totalorder %s119, %s133
      %p135 = scmp.eq.s32.totalorder %s46, 0
      %p136 = por %p134, %p135
      %s138 = sadd.s32 %s137, 1
      %p141 = scmp.eq.s32.totalorder %s40, 1
      %p142 = scmp.ne.s32.totalorder %s137, %s139
      %p143 = scmp.eq.s32.totalorder %s40, 0
      %p144 = por %p142, %p143
      %p145 = scmp.ne.s32.totalorder %s137, %s139
      %p146 = scmp.eq.s32.totalorder %s45, 1
      %p147 = por %p145, %p146
      %p148 = scmp.ne.s32.totalorder %s139, %s140
      %p149 = scmp.eq.s32.totalorder %s45, 0
      %p150 = por %p148, %p149
      %p151 = scmp.ne.s32.totalorder %s139, %s140
      %p152 = scmp.eq.s32.totalorder %s46, 1
      %p153 = por %p151, %p152
      %p155 = scmp.ne.s32.totalorder %s140, %s154
      %p156 = scmp.eq.s32.totalorder %s46, 0
      %p157 = por %p155, %p156
      %s159 = sadd.s32 %s158, 1
      %p162 = scmp.eq.s32.totalorder %s40, 1
      %p163 = scmp.ne.s32.totalorder %s158, %s160
      %p164 = scmp.eq.s32.totalorder %s40, 0
      %p165 = por %p163, %p164
      %p166 = scmp.ne.s32.totalorder %s158, %s160
      %p167 = scmp.eq.s32.totalorder %s45, 1
      %p168 = por %p166, %p167
      %p169 = scmp.ne.s32.totalorder %s160, %s161
      %p170 = scmp.eq.s32.totalorder %s45, 0
      %p171 = por %p169, %p170
      %p172 = scmp.ne.s32.totalorder %s160, %s161
      %p173 = scmp.eq.s32.totalorder %s46, 1
      %p174 = por %p172, %p173
      %p176 = scmp.ne.s32.totalorder %s161, %s175
      %p177 = scmp.eq.s32.totalorder %s46, 0
      %p178 = por %p176, %p177
      %s180 = sadd.s32 %s179, 1
      %p183 = scmp.eq.s32.totalorder %s40, 1
      %p184 = scmp.ne.s32.totalorder %s179, %s181
      %p185 = scmp.eq.s32.totalorder %s40, 0
      %p186 = por %p184, %p185
      %p187 = scmp.ne.s32.totalorder %s179, %s181
      %p188 = scmp.eq.s32.totalorder %s45, 1
      %p189 = por %p187, %p188
      %p190 = scmp.ne.s32.totalorder %s181, %s182
      %p191 = scmp.eq.s32.totalorder %s45, 0
      %p192 = por %p190, %p191
      %p193 = scmp.ne.s32.totalorder %s181, %s182
      %p194 = scmp.eq.s32.totalorder %s46, 1
      %p195 = por %p193, %p194
      %p197 = scmp.ne.s32.totalorder %s182, %s196
      %p198 = scmp.eq.s32.totalorder %s46, 0
      %p199 = por %p197, %p198
      %s201 = sadd.s32 %s200, 1
      %p204 = scmp.eq.s32.totalorder %s40, 1
      %p205 = scmp.ne.s32.totalorder %s200, %s202
      %p206 = scmp.eq.s32.totalorder %s40, 0
      %p207 = por %p205, %p206
      %p208 = scmp.ne.s32.totalorder %s200, %s202
      %p209 = scmp.eq.s32.totalorder %s45, 1
      %p210 = por %p208, %p209
      %p211 = scmp.ne.s32.totalorder %s202, %s203
      %p212 = scmp.eq.s32.totalorder %s45, 0
      %p213 = por %p211, %p212
      %p214 = scmp.ne.s32.totalorder %s202, %s203
      %p215 = scmp.eq.s32.totalorder %s46, 1
      %p216 = por %p214, %p215
      %p218 = scmp.ne.s32.totalorder %s203, %s217
      %p219 = scmp.eq.s32.totalorder %s46, 0
      %p220 = por %p218, %p219
      %s222 = sadd.s32 %s221, 1
      %p225 = scmp.eq.s32.totalorder %s40, 1
      %p226 = scmp.ne.s32.totalorder %s221, %s223
      %p227 = scmp.eq.s32.totalorder %s40, 0
      %p228 = por %p226, %p227
      %p229 = scmp.ne.s32.totalorder %s221, %s223
      %p230 = scmp.eq.s32.totalorder %s45, 1
      %p231 = por %p229, %p230
      %p232 = scmp.ne.s32.totalorder %s223, %s224
      %p233 = scmp.eq.s32.totalorder %s45, 0
      %p234 = por %p232, %p233
      %p235 = scmp.ne.s32.totalorder %s223, %s224
      %p236 = scmp.eq.s32.totalorder %s46, 1
      %p237 = por %p235, %p236
      %p239 = scmp.ne.s32.totalorder %s224, %s238
      %p240 = scmp.eq.s32.totalorder %s46, 0
      %p241 = por %p239, %p240
      %s243 = sadd.s32 %s242, 1
      %p246 = scmp.eq.s32.totalorder %s40, 1
      %p247 = scmp.ne.s32.totalorder %s242, %s244
      %p248 = scmp.eq.s32.totalorder %s40, 0
      %p249 = por %p247, %p248
      %p250 = scmp.ne.s32.totalorder %s242, %s244
      %p251 = scmp.eq.s32.totalorder %s45, 1
      %p252 = por %p250, %p251
      %p253 = scmp.ne.s32.totalorder %s244, %s245
      %p254 = scmp.eq.s32.totalorder %s45, 0
      %p255 = por %p253, %p254
      %p256 = scmp.ne.s32.totalorder %s244, %s245
      %p257 = scmp.eq.s32.totalorder %s46, 1
      %p258 = por %p256, %p257
      %p260 = scmp.ne.s32.totalorder %s245, %s259
      %p261 = scmp.eq.s32.totalorder %s46, 0
      %p262 = por %p260, %p261
      %s264 = sadd.s32 %s263, 1
      %p267 = scmp.eq.s32.totalorder %s40, 1
      %p268 = scmp.ne.s32.totalorder %s263, %s265
      %p269 = scmp.eq.s32.totalorder %s40, 0
      %p270 = por %p268, %p269
      %p271 = scmp.ne.s32.totalorder %s263, %s265
      %p272 = scmp.eq.s32.totalorder %s45, 1
      %p273 = por %p271, %p272
      %p274 = scmp.ne.s32.totalorder %s265, %s266
      %p275 = scmp.eq.s32.totalorder %s45, 0
      %p276 = por %p274, %p275
      %p277 = scmp.ne.s32.totalorder %s265, %s266
      %p278 = scmp.eq.s32.totalorder %s46, 1
      %p279 = por %p277, %p278
      %p281 = scmp.ne.s32.totalorder %s266, %s280
      %p282 = scmp.eq.s32.totalorder %s46, 0
      %p283 = por %p281, %p282
      %s285 = sadd.s32 %s284, 1
      %p288 = scmp.eq.s32.totalorder %s40, 1
      %p289 = scmp.ne.s32.totalorder %s284, %s286
      %p290 = scmp.eq.s32.totalorder %s40, 0
      %p291 = por %p289, %p290
      %p292 = scmp.ne.s32.totalorder %s284, %s286
      %p293 = scmp.eq.s32.totalorder %s45, 1
      %p294 = por %p292, %p293
      %p295 = scmp.ne.s32.totalorder %s286, %s287
      %p296 = scmp.eq.s32.totalorder %s45, 0
      %p297 = por %p295, %p296
      %p298 = scmp.ne.s32.totalorder %s286, %s287
      %p299 = scmp.eq.s32.totalorder %s46, 1
      %p300 = por %p298, %p299
      %p302 = scmp.ne.s32.totalorder %s287, %s301
      %p303 = scmp.eq.s32.totalorder %s46, 0
      %p304 = por %p302, %p303
      %s306 = sadd.s32 %s305, 1
      %p309 = scmp.eq.s32.totalorder %s40, 1
      %p310 = scmp.ne.s32.totalorder %s305, %s307
      %p311 = scmp.eq.s32.totalorder %s40, 0
      %p312 = por %p310, %p311
      %p313 = scmp.ne.s32.totalorder %s305, %s307
      %p314 = scmp.eq.s32.totalorder %s45, 1
      %p315 = por %p313, %p314
      %p316 = scmp.ne.s32.totalorder %s307, %s308
      %p317 = scmp.eq.s32.totalorder %s45, 0
      %p318 = por %p316, %p317
      %p319 = scmp.ne.s32.totalorder %s307, %s308
      %p320 = scmp.eq.s32.totalorder %s46, 1
      %p321 = por %p319, %p320
      %p323 = scmp.ne.s32.totalorder %s308, %s322
      %p324 = scmp.eq.s32.totalorder %s46, 0
      %p325 = por %p323, %p324
      %s327 = sadd.s32 %s326, 1
      %p330 = scmp.eq.s32.totalorder %s40, 1
      %p331 = scmp.ne.s32.totalorder %s326, %s328
      %p332 = scmp.eq.s32.totalorder %s40, 0
      %p333 = por %p331, %p332
      %p334 = scmp.ne.s32.totalorder %s326, %s328
      %p335 = scmp.eq.s32.totalorder %s45, 1
      %p336 = por %p334, %p335
      %p337 = scmp.ne.s32.totalorder %s328, %s329
      %p338 = scmp.eq.s32.totalorder %s45, 0
      %p339 = por %p337, %p338
      %p340 = scmp.ne.s32.totalorder %s328, %s329
      %p341 = scmp.eq.s32.totalorder %s46, 1
      %p342 = por %p340, %p341
      %p344 = scmp.ne.s32.totalorder %s329, %s343
      %p345 = scmp.eq.s32.totalorder %s46, 0
      %p346 = por %p344, %p345
      %s348 = sadd.s32 %s347, 1
      %p351 = scmp.eq.s32.totalorder %s40, 1
      %p352 = scmp.ne.s32.totalorder %s347, %s349
      %p353 = scmp.eq.s32.totalorder %s40, 0
      %p354 = por %p352, %p353
      %p355 = scmp.ne.s32.totalorder %s347, %s349
      %p356 = scmp.eq.s32.totalorder %s45, 1
      %p357 = por %p355, %p356
      %p358 = scmp.ne.s32.totalorder %s349, %s350
      %p359 = scmp.eq.s32.totalorder %s45, 0
      %p360 = por %p358, %p359
      %p361 = scmp.ne.s32.totalorder %s349, %s350
      %p362 = scmp.eq.s32.totalorder %s46, 1
      %p363 = por %p361, %p362
      %p365 = scmp.ne.s32.totalorder %s350, %s364
      %p366 = scmp.eq.s32.totalorder %s46, 0
      %p367 = por %p365, %p366
      %s369 = sadd.s32 %s368, 1
      %p372 = scmp.eq.s32.totalorder %s40, 1
      %p373 = scmp.ne.s32.totalorder %s368, %s370
      %p374 = scmp.eq.s32.totalorder %s40, 0
      %p375 = por %p373, %p374
      %p376 = scmp.ne.s32.totalorder %s368, %s370
      %p377 = scmp.eq.s32.totalorder %s45, 1
      %p378 = por %p376, %p377
      %p379 = scmp.ne.s32.totalorder %s370, %s371
      %p380 = scmp.eq.s32.totalorder %s45, 0
      %p381 = por %p379, %p380
      %p382 = scmp.ne.s32.totalorder %s370, %s371
      %p383 = scmp.eq.s32.totalorder %s46, 1
      %p384 = por %p382, %p383
      %p386 = scmp.ne.s32.totalorder %s371, %s385
      %p387 = scmp.eq.s32.totalorder %s46, 0
      %p388 = por %p386, %p387
      %s390 = sadd.s32 %s389, 1
      %p393 = scmp.eq.s32.totalorder %s40, 1
      %p394 = scmp.ne.s32.totalorder %s389, %s391
      %p395 = scmp.eq.s32.totalorder %s40, 0
      %p396 = por %p394, %p395
      %p397 = scmp.ne.s32.totalorder %s389, %s391
      %p398 = scmp.eq.s32.totalorder %s45, 1
      %p399 = por %p397, %p398
      %p400 = scmp.ne.s32.totalorder %s391, %s392
      %p401 = scmp.eq.s32.totalorder %s45, 0
      %p402 = por %p400, %p401
      %p403 = scmp.ne.s32.totalorder %s391, %s392
      %p404 = scmp.eq.s32.totalorder %s46, 1
      %p405 = por %p403, %p404
      %p407 = scmp.ne.s32.totalorder %s392, %s406
      %p408 = scmp.eq.s32.totalorder %s46, 0
      %p409 = por %p407, %p408
      %s411 = sadd.s32 %s410, 1
      %p414 = scmp.eq.s32.totalorder %s40, 1
      %p415 = scmp.ne.s32.totalorder %s410, %s412
      %p416 = scmp.eq.s32.totalorder %s40, 0
      %p417 = por %p415, %p416
      %p418 = scmp.ne.s32.totalorder %s410, %s412
      %p419 = scmp.eq.s32.totalorder %s45, 1
      %p420 = por %p418, %p419
      %p421 = scmp.ne.s32.totalorder %s412, %s413
      %p422 = scmp.eq.s32.totalorder %s45, 0
      %p423 = por %p421, %p422
      %p424 = scmp.ne.s32.totalorder %s412, %s413
      %p425 = scmp.eq.s32.totalorder %s46, 1
      %p426 = por %p424, %p425
      %p428 = scmp.ne.s32.totalorder %s413, %s427
      %p429 = scmp.eq.s32.totalorder %s46, 0
      %p430 = por %p428, %p429
      %s432 = sadd.s32 %s431, 1
      %p435 = scmp.eq.s32.totalorder %s40, 1
      %p436 = scmp.ne.s32.totalorder %s431, %s433
      %p437 = scmp.eq.s32.totalorder %s40, 0
      %p438 = por %p436, %p437
      %p439 = scmp.ne.s32.totalorder %s431, %s433
      %p440 = scmp.eq.s32.totalorder %s45, 1
      %p441 = por %p439, %p440
      %p442 = scmp.ne.s32.totalorder %s433, %s434
      %p443 = scmp.eq.s32.totalorder %s45, 0
      %p444 = por %p442, %p443
      %p445 = scmp.ne.s32.totalorder %s433, %s434
      %p446 = scmp.eq.s32.totalorder %s46, 1
      %p447 = por %p445, %p446
      %p449 = scmp.ne.s32.totalorder %s434, %s448
      %p450 = scmp.eq.s32.totalorder %s46, 0
      %p451 = por %p449, %p450
      %s453 = sadd.s32 %s452, 1
      %p456 = scmp.eq.s32.totalorder %s40, 1
      %p457 = scmp.ne.s32.totalorder %s452, %s454
      %p458 = scmp.eq.s32.totalorder %s40, 0
      %p459 = por %p457, %p458
      %p460 = scmp.ne.s32.totalorder %s452, %s454
      %p461 = scmp.eq.s32.totalorder %s45, 1
      %p462 = por %p460, %p461
      %p463 = scmp.ne.s32.totalorder %s454, %s455
      %p464 = scmp.eq.s32.totalorder %s45, 0
      %p465 = por %p463, %p464
      %p466 = scmp.ne.s32.totalorder %s454, %s455
      %p467 = scmp.eq.s32.totalorder %s46, 1
      %p468 = por %p466, %p467
      %p470 = scmp.ne.s32.totalorder %s455, %s469
      %p471 = scmp.eq.s32.totalorder %s46, 0
      %p472 = por %p470, %p471
      %s473 = ssub.s32 %s47, %s59
      %s474 = ssub.s32 %s48, %s55
      %s475 = sor.u32 %s473, %s474
      %p476 = scmp.eq.s32.totalorder %s475, 0
      %s478 = sadd.s32 %s477, 1
      %s479 = scalar_select %p476, %s477, %s478
      %p482 = pneg %p476
      %p483 = scmp.eq.s32.totalorder %s40, 1
      %p484 = por %p482, %p483
      %p485 = scmp.ne.s32.totalorder %s477, %s480
      %p486 = scmp.eq.s32.totalorder %s40, 0
      %p487 = por %p485, %p486
      %p488 = scmp.ne.s32.totalorder %s477, %s480
      %p489 = scmp.eq.s32.totalorder %s45, 1
      %p490 = por %p488, %p489
      %p491 = scmp.ne.s32.totalorder %s480, %s481
      %p492 = scmp.eq.s32.totalorder %s45, 0
      %p493 = por %p491, %p492
      %p494 = scmp.ne.s32.totalorder %s480, %s481
      %p495 = scmp.eq.s32.totalorder %s46, 1
      %p496 = por %p494, %p495
      %p498 = scmp.ne.s32.totalorder %s481, %s497
      %p499 = scmp.eq.s32.totalorder %s46, 0
      %p500 = por %p498, %p499
      %p501 = scmp.le.s32.totalorder 1, %s40
      %p502 = scmp.lt.s32.totalorder %s40, 3
      %p503 = pnand %p501, %p502
      %p504 = pneg %p503
      // Predicated region
      $region9: #{tpu_custom_call.1} parent=5 // pred_check
        _
      $region10: #{tpu_custom_call.1} parent=5 // pred_check_branch
        %506 = sbr.rel (%p503) target = $region12
      $region11: #{tpu_custom_call.1} parent=5 // pred_region
        %s507 = ssub.s32 %s40, 1
        // Predicated region
        $region13: #{tpu_custom_call.1} parent=11 // pred_check
          %p508 = pneg %p129
        $region14: #{tpu_custom_call.1} parent=11 // pred_check_branch
          %510 = sbr.rel (%p508) target = $region16
        $region15: #{tpu_custom_call.1} parent=11 // pred_region
          %s512 = ssub.s32 1024, 1024
          %513 = vsyncadd [#allocation7], %s512
          %s514 = sshll.u32 [#allocation8], 4
          %s515 = int_to_ptr.vmem [resolvable:$true] %s514
          %520 = dma.hbm_to_vmem [thread:$0]  %s2, 1024, %s515, [#allocation7], 64, 64, 4
        $region16: #{tpu_custom_call.1} parent=11 // pred_fallthru
          _
        // Predicated region
        $region17: #{tpu_custom_call.1} parent=11 // pred_check
          %p521 = pneg %p150
        $region18: #{tpu_custom_call.1} parent=11 // pred_check_branch
          %523 = sbr.rel (%p521) target = $region20
        $region19: #{tpu_custom_call.1} parent=11 // pred_region
          %s525 = ssub.s32 1024, 1024
          %526 = vsyncadd [#allocation10], %s525
          %s527 = sshll.u32 [#allocation9], 4
          %s528 = int_to_ptr.vmem [resolvable:$true] %s527
          %533 = dma.hbm_to_vmem [thread:$0]  %s3, 1024, %s528, [#allocation10], 64, 64, 4
        $region20: #{tpu_custom_call.1} parent=11 // pred_fallthru
          _
        // Predicated region
        $region21: #{tpu_custom_call.1} parent=11 // pred_check
          %p534 = pneg %p171
        $region22: #{tpu_custom_call.1} parent=11 // pred_check_branch
          %536 = sbr.rel (%p534) target = $region24
        $region23: #{tpu_custom_call.1} parent=11 // pred_region
          %s538 = ssub.s32 2048, 2048
          %539 = vsyncadd [#allocation10], %s538
          %s540 = sshll.u32 [#allocation11], 4
          %s541 = int_to_ptr.vmem [resolvable:$true] %s540
          %546 = dma.hbm_to_vmem [thread:$0]  %s4, 2048, %s541, [#allocation10], 128, 128, 8
        $region24: #{tpu_custom_call.1} parent=11 // pred_fallthru
          _
        // Predicated region
        $region25: #{tpu_custom_call.1} parent=11 // pred_check
          %p547 = pneg %p192
        $region26: #{tpu_custom_call.1} parent=11 // pred_check_branch
          %549 = sbr.rel (%p547) target = $region28
        $region27: #{tpu_custom_call.1} parent=11 // pred_region
          %s551 = ssub.s32 2048, 2048
          %552 = vsyncadd [#allocation13], %s551
          %s553 = sshll.u32 [#allocation12], 4
          %s554 = int_to_ptr.vmem [resolvable:$true] %s553
          %559 = dma.hbm_to_vmem [thread:$0]  %s5, 2048, %s554, [#allocation13], 128, 128, 8
        $region28: #{tpu_custom_call.1} parent=11 // pred_fallthru
          _
        // Predicated region
        $region29: #{tpu_custom_call.1} parent=11 // pred_check
          %p560 = pneg %p213
        $region30: #{tpu_custom_call.1} parent=11 // pred_check_branch
          %562 = sbr.rel (%p560) target = $region32
        $region31: #{tpu_custom_call.1} parent=11 // pred_region
          %s564 = ssub.s32 3072, 3072
          %565 = vsyncadd [#allocation13], %s564
          %s566 = sshll.u32 [#allocation14], 4
          %s567 = int_to_ptr.vmem [resolvable:$true] %s566
          %572 = dma.hbm_to_vmem [thread:$0]  %s6, 3072, %s567, [#allocation13], 192, 192, 12
        $region32: #{tpu_custom_call.1} parent=11 // pred_fallthru
          _
        // Predicated region
        $region33: #{tpu_custom_call.1} parent=11 // pred_check
          %p573 = pneg %p234
        $region34: #{tpu_custom_call.1} parent=11 // pred_check_branch
          %575 = sbr.rel (%p573) target = $region36
        $region35: #{tpu_custom_call.1} parent=11 // pred_region
          %s577 = ssub.s32 4096, 4096
          %578 = vsyncadd [#allocation16], %s577
          %s579 = sshll.u32 [#allocation15], 4
          %s580 = int_to_ptr.vmem [resolvable:$true] %s579
          %585 = dma.hbm_to_vmem [thread:$0]  %s7, 4096, %s580, [#allocation16], 256, 256, 16
        $region36: #{tpu_custom_call.1} parent=11 // pred_fallthru
          _
        // Predicated region
        $region37: #{tpu_custom_call.1} parent=11 // pred_check
          %p586 = pneg %p255
        $region38: #{tpu_custom_call.1} parent=11 // pred_check_branch
          %588 = sbr.rel (%p586) target = $region40
        $region39: #{tpu_custom_call.1} parent=11 // pred_region
          %s590 = ssub.s32 3072, 3072
          %591 = vsyncadd [#allocation16], %s590
          %s592 = sshll.u32 [#allocation17], 4
          %s593 = int_to_ptr.vmem [resolvable:$true] %s592
          %598 = dma.hbm_to_vmem [thread:$0]  %s8, 3072, %s593, [#allocation16], 192, 192, 12
        $region40: #{tpu_custom_call.1} parent=11 // pred_fallthru
          _
        // Predicated region
        $region41: #{tpu_custom_call.1} parent=11 // pred_check
          %p599 = pneg %p276
        $region42: #{tpu_custom_call.1} parent=11 // pred_check_branch
          %601 = sbr.rel (%p599) target = $region44
        $region43: #{tpu_custom_call.1} parent=11 // pred_region
          %s603 = ssub.s32 2048, 2048
          %604 = vsyncadd [#allocation19], %s603
          %s605 = sshll.u32 [#allocation18], 4
          %s606 = int_to_ptr.vmem [resolvable:$true] %s605
          %611 = dma.hbm_to_vmem [thread:$0]  %s9, 2048, %s606, [#allocation19], 128, 128, 8
        $region44: #{tpu_custom_call.1} parent=11 // pred_fallthru
          _
        // Predicated region
        $region45: #{tpu_custom_call.1} parent=11 // pred_check
          %p612 = pneg %p297
        $region46: #{tpu_custom_call.1} parent=11 // pred_check_branch
          %614 = sbr.rel (%p612) target = $region48
        $region47: #{tpu_custom_call.1} parent=11 // pred_region
          %s616 = ssub.s32 2048, 2048
          %617 = vsyncadd [#allocation19], %s616
          %s618 = sshll.u32 [#allocation20], 4
          %s619 = int_to_ptr.vmem [resolvable:$true] %s618
          %624 = dma.hbm_to_vmem [thread:$0]  %s10, 2048, %s619, [#allocation19], 128, 128, 8
        $region48: #{tpu_custom_call.1} parent=11 // pred_fallthru
          _
        // Predicated region
        $region49: #{tpu_custom_call.1} parent=11 // pred_check
          %p625 = pneg %p318
        $region50: #{tpu_custom_call.1} parent=11 // pred_check_branch
          %627 = sbr.rel (%p625) target = $region52
        $region51: #{tpu_custom_call.1} parent=11 // pred_region
          %s629 = ssub.s32 1024, 1024
          %630 = vsyncadd [#allocation22], %s629
          %s631 = sshll.u32 [#allocation21], 4
          %s632 = int_to_ptr.vmem [resolvable:$true] %s631
          %637 = dma.hbm_to_vmem [thread:$0]  %s11, 1024, %s632, [#allocation22], 64, 64, 4
        $region52: #{tpu_custom_call.1} parent=11 // pred_fallthru
          _
        // Predicated region
        $region53: #{tpu_custom_call.1} parent=11 // pred_check
          %p638 = pneg %p339
        $region54: #{tpu_custom_call.1} parent=11 // pred_check_branch
          %640 = sbr.rel (%p638) target = $region56
        $region55: #{tpu_custom_call.1} parent=11 // pred_region
          %s642 = ssub.s32 1024, 1024
          %643 = vsyncadd [#allocation22], %s642
          %s644 = sshll.u32 [#allocation23], 4
          %s645 = int_to_ptr.vmem [resolvable:$true] %s644
          %650 = dma.hbm_to_vmem [thread:$0]  %s12, 1024, %s645, [#allocation22], 64, 64, 4
        $region56: #{tpu_custom_call.1} parent=11 // pred_fallthru
          _
        // Predicated region
        $region57: #{tpu_custom_call.1} parent=11 // pred_check
          %p651 = pneg %p360
        $region58: #{tpu_custom_call.1} parent=11 // pred_check_branch
          %653 = sbr.rel (%p651) target = $region60
        $region59: #{tpu_custom_call.1} parent=11 // pred_region
          _
        $region60: #{tpu_custom_call.1} parent=11 // pred_fallthru
          _
        // Predicated region
        $region61: #{tpu_custom_call.1} parent=11 // pred_check
          %p654 = pneg %p381
        $region62: #{tpu_custom_call.1} parent=11 // pred_check_branch
          %656 = sbr.rel (%p654) target = $region64
        $region63: #{tpu_custom_call.1} parent=11 // pred_region
          _
        $region64: #{tpu_custom_call.1} parent=11 // pred_fallthru
          _
        // Predicated region
        $region65: #{tpu_custom_call.1} parent=11 // pred_check
          %p657 = pneg %p402
        $region66: #{tpu_custom_call.1} parent=11 // pred_check_branch
          %659 = sbr.rel (%p657) target = $region68
        $region67: #{tpu_custom_call.1} parent=11 // pred_region
          _
        $region68: #{tpu_custom_call.1} parent=11 // pred_fallthru
          _
        // Predicated region
        $region69: #{tpu_custom_call.1} parent=11 // pred_check
          %p660 = pneg %p423
        $region70: #{tpu_custom_call.1} parent=11 // pred_check_branch
          %662 = sbr.rel (%p660) target = $region72
        $region71: #{tpu_custom_call.1} parent=11 // pred_region
          _
        $region72: #{tpu_custom_call.1} parent=11 // pred_fallthru
          _
        // Predicated region
        $region73: #{tpu_custom_call.1} parent=11 // pred_check
          %p663 = pneg %p444
        $region74: #{tpu_custom_call.1} parent=11 // pred_check_branch
          %665 = sbr.rel (%p663) target = $region76
        $region75: #{tpu_custom_call.1} parent=11 // pred_region
          %s667 = ssub.s32 5120, 5120
          %668 = vsyncadd [#allocation25], %s667
          %s669 = sshll.u32 [#allocation24], 4
          %s670 = int_to_ptr.vmem [resolvable:$true] %s669
          %675 = dma.hbm_to_vmem [thread:$0]  %s17, 5120, %s670, [#allocation25], 64, 64, 4
        $region76: #{tpu_custom_call.1} parent=11 // pred_fallthru
          _
        // Predicated region
        $region77: #{tpu_custom_call.1} parent=11 // pred_check
          %p676 = pneg %p465
        $region78: #{tpu_custom_call.1} parent=11 // pred_check_branch
          %678 = sbr.rel (%p676) target = $region80
        $region79: #{tpu_custom_call.1} parent=11 // pred_region
          _
        $region80: #{tpu_custom_call.1} parent=11 // pred_fallthru
          _
      $region12: #{tpu_custom_call.1} parent=5 // pred_fallthru
        _
      %p679 = scmp.lt.s32.totalorder %s40, 2
      // Predicated region
      $region81: #{tpu_custom_call.1} parent=5 // pred_check
        %p680 = pneg %p679
      $region82: #{tpu_custom_call.1} parent=5 // pred_check_branch
        %682 = sbr.rel (%p680) target = $region84
      $region83: #{tpu_custom_call.1} parent=5 // pred_region
        // Predicated region
        $region85: #{tpu_custom_call.1} parent=83 // pred_check
          %p683 = pneg %p74
        $region86: #{tpu_custom_call.1} parent=83 // pred_check_branch
          %685 = sbr.rel (%p683) target = $region88
        $region87: #{tpu_custom_call.1} parent=83 // pred_region
          %s686 = sand.u32 %s64, 1
          %s687 = scalar_lea.sflag [#allocation4], %s686
          %s688 = sand.u32 %s64, 1
          %s689 = smul.addr %s688, 8
          %s690 = scalar_lea.vmem [#allocation3], %s689
          %s691 = smul.u32 2, %s48
          %s693 = ssub.s32 128, 128
          %694 = vsyncadd %s687, %s693
          %s695 = smul.addr %s47, 2
          %s696 = sadd.s32 %s691, %s695
          %s697 = smul.addr %s696, 64
          %s698 = scalar_lea.hbm %s0, %s697
          %s699 = sshll.u32 %s690, 4
          %s700 = int_to_ptr.vmem [resolvable:$true] %s699
          %705 = dma.hbm_to_vmem [thread:$0]  %s698, 128, %s700, %s687, 64, 64, 4
        $region88: #{tpu_custom_call.1} parent=83 // pred_fallthru
          _
        // Predicated region
        $region89: #{tpu_custom_call.1} parent=83 // pred_check
          %p706 = pneg %p102
        $region90: #{tpu_custom_call.1} parent=83 // pred_check_branch
          %708 = sbr.rel (%p706) target = $region92
        $region91: #{tpu_custom_call.1} parent=83 // pred_region
          %s709 = sand.u32 %s40, 1
          %s710 = scalar_lea.sflag [#allocation7], %s709
          %s711 = sand.u32 %s92, 1
          %s712 = smul.addr %s711, 16
          %s713 = scalar_lea.vmem [#allocation6], %s712
          %s715 = ssub.s32 256, 256
          %716 = vsyncadd %s710, %s715
          %s717 = smul.addr %s48, 4
          %s718 = smul.addr %s47, 4
          %s719 = sadd.s32 %s717, %s718
          %s720 = smul.addr %s719, 64
          %s721 = scalar_lea.hbm %s1, %s720
          %s722 = sshll.u32 %s713, 4
          %s723 = int_to_ptr.vmem [resolvable:$true] %s722
          %728 = dma.hbm_to_vmem [thread:$0]  %s721, 256, %s723, %s710, 64, 64, 4
        $region92: #{tpu_custom_call.1} parent=83 // pred_fallthru
          _
      $region84: #{tpu_custom_call.1} parent=5 // pred_fallthru
        _
      %p729 = scmp.le.s32.totalorder 1, %s40
      %p730 = scmp.lt.s32.totalorder %s40, 3
      %p731 = pnand %p729, %p730
      %p732 = pneg %p731
      // Predicated region
      $region93: #{tpu_custom_call.1} parent=5 // pred_check
        _
      $region94: #{tpu_custom_call.1} parent=5 // pred_check_branch
        %734 = sbr.rel (%p731) target = $region96
      $region95: #{tpu_custom_call.1} parent=5 // pred_region
        %s735 = ssub.s32 %s40, 1
        %s736 = sand.u32 %s67, 1
        %s737 = scalar_lea.sflag [#allocation4], %s736
        %s738 = sand.u32 %s67, 1
        %s739 = smul.addr %s738, 8
        %s740 = scalar_lea.vmem [#allocation3], %s739
        // Predicated region
        $region97: #{tpu_custom_call.1} parent=95 // pred_check
          %p741 = pneg %p80
        $region98: #{tpu_custom_call.1} parent=95 // pred_check_branch
          %743 = sbr.rel (%p741) target = $region100
        $region99: #{tpu_custom_call.1} parent=95 // pred_region
          %744 = dma.done %s737, 128
        $region100: #{tpu_custom_call.1} parent=95 // pred_fallthru
          _
        %s745 = sand.u32 %s45, 1
        %s746 = scalar_lea.sflag [#allocation7], %s745
        %s747 = sand.u32 %s95, 1
        %s748 = smul.addr %s747, 16
        %s749 = scalar_lea.vmem [#allocation6], %s748
        // Predicated region
        $region101: #{tpu_custom_call.1} parent=95 // pred_check
          %p750 = pneg %p108
        $region102: #{tpu_custom_call.1} parent=95 // pred_check_branch
          %752 = sbr.rel (%p750) target = $region104
        $region103: #{tpu_custom_call.1} parent=95 // pred_region
          %753 = dma.done %s746, 256
        $region104: #{tpu_custom_call.1} parent=95 // pred_fallthru
          _
        // Predicated region
        $region105: #{tpu_custom_call.1} parent=95 // pred_check
          %p754 = pneg %p129
        $region106: #{tpu_custom_call.1} parent=95 // pred_check_branch
          %756 = sbr.rel (%p754) target = $region108
        $region107: #{tpu_custom_call.1} parent=95 // pred_region
          %757 = dma.done [#allocation7], 1024
        $region108: #{tpu_custom_call.1} parent=95 // pred_fallthru
          _
        // Predicated region
        $region109: #{tpu_custom_call.1} parent=95 // pred_check
          %p758 = pneg %p150
        $region110: #{tpu_custom_call.1} parent=95 // pred_check_branch
          %760 = sbr.rel (%p758) target = $region112
        $region111: #{tpu_custom_call.1} parent=95 // pred_region
          %761 = dma.done [#allocation10], 1024
        $region112: #{tpu_custom_call.1} parent=95 // pred_fallthru
          _
        // Predicated region
        $region113: #{tpu_custom_call.1} parent=95 // pred_check
          %p762 = pneg %p171
        $region114: #{tpu_custom_call.1} parent=95 // pred_check_branch
          %764 = sbr.rel (%p762) target = $region116
        $region115: #{tpu_custom_call.1} parent=95 // pred_region
          %765 = dma.done [#allocation10], 2048
        $region116: #{tpu_custom_call.1} parent=95 // pred_fallthru
          _
        // Predicated region
        $region117: #{tpu_custom_call.1} parent=95 // pred_check
          %p766 = pneg %p192
        $region118: #{tpu_custom_call.1} parent=95 // pred_check_branch
          %768 = sbr.rel (%p766) target = $region120
        $region119: #{tpu_custom_call.1} parent=95 // pred_region
          %769 = dma.done [#allocation13], 2048
        $region120: #{tpu_custom_call.1} parent=95 // pred_fallthru
          _
        // Predicated region
        $region121: #{tpu_custom_call.1} parent=95 // pred_check
          %p770 = pneg %p213
        $region122: #{tpu_custom_call.1} parent=95 // pred_check_branch
          %772 = sbr.rel (%p770) target = $region124
        $region123: #{tpu_custom_call.1} parent=95 // pred_region
          %773 = dma.done [#allocation13], 3072
        $region124: #{tpu_custom_call.1} parent=95 // pred_fallthru
          _
        // Predicated region
        $region125: #{tpu_custom_call.1} parent=95 // pred_check
          %p774 = pneg %p234
        $region126: #{tpu_custom_call.1} parent=95 // pred_check_branch
          %776 = sbr.rel (%p774) target = $region128
        $region127: #{tpu_custom_call.1} parent=95 // pred_region
          %777 = dma.done [#allocation16], 4096
        $region128: #{tpu_custom_call.1} parent=95 // pred_fallthru
          _
        // Predicated region
        $region129: #{tpu_custom_call.1} parent=95 // pred_check
          %p778 = pneg %p255
        $region130: #{tpu_custom_call.1} parent=95 // pred_check_branch
          %780 = sbr.rel (%p778) target = $region132
        $region131: #{tpu_custom_call.1} parent=95 // pred_region
          %781 = dma.done [#allocation16], 3072
        $region132: #{tpu_custom_call.1} parent=95 // pred_fallthru
          _
        // Predicated region
        $region133: #{tpu_custom_call.1} parent=95 // pred_check
          %p782 = pneg %p276
        $region134: #{tpu_custom_call.1} parent=95 // pred_check_branch
          %784 = sbr.rel (%p782) target = $region136
        $region135: #{tpu_custom_call.1} parent=95 // pred_region
          %785 = dma.done [#allocation19], 2048
        $region136: #{tpu_custom_call.1} parent=95 // pred_fallthru
          _
        // Predicated region
        $region137: #{tpu_custom_call.1} parent=95 // pred_check
          %p786 = pneg %p297
        $region138: #{tpu_custom_call.1} parent=95 // pred_check_branch
          %788 = sbr.rel (%p786) target = $region140
        $region139: #{tpu_custom_call.1} parent=95 // pred_region
          %789 = dma.done [#allocation19], 2048
        $region140: #{tpu_custom_call.1} parent=95 // pred_fallthru
          _
        // Predicated region
        $region141: #{tpu_custom_call.1} parent=95 // pred_check
          %p790 = pneg %p318
        $region142: #{tpu_custom_call.1} parent=95 // pred_check_branch
          %792 = sbr.rel (%p790) target = $region144
        $region143: #{tpu_custom_call.1} parent=95 // pred_region
          %793 = dma.done [#allocation22], 1024
        $region144: #{tpu_custom_call.1} parent=95 // pred_fallthru
          _
        // Predicated region
        $region145: #{tpu_custom_call.1} parent=95 // pred_check
          %p794 = pneg %p339
        $region146: #{tpu_custom_call.1} parent=95 // pred_check_branch
          %796 = sbr.rel (%p794) target = $region148
        $region147: #{tpu_custom_call.1} parent=95 // pred_region
          %797 = dma.done [#allocation22], 1024
        $region148: #{tpu_custom_call.1} parent=95 // pred_fallthru
          _
        // Predicated region
        $region149: #{tpu_custom_call.1} parent=95 // pred_check
          %p798 = pneg %p444
        $region150: #{tpu_custom_call.1} parent=95 // pred_check_branch
          %800 = sbr.rel (%p798) target = $region152
        $region151: #{tpu_custom_call.1} parent=95 // pred_region
          %801 = dma.done [#allocation25], 5120
        $region152: #{tpu_custom_call.1} parent=95 // pred_fallthru
          _
        %s802 = sand.u32 %s67, 1
        %s803 = scalar_lea.sflag [#allocation4], %s802
        %s804 = sand.u32 %s67, 1
        %s805 = smul.addr %s804, 8
        %s806 = scalar_lea.vmem [#allocation3], %s805
        %p807 = pneg %p80
        %p808 = pneg %p77
        %s809 = sand.u32 %s45, 1
        %s810 = scalar_lea.sflag [#allocation7], %s809
        %s811 = sand.u32 %s95, 1
        %s812 = smul.addr %s811, 16
        %s813 = scalar_lea.vmem [#allocation6], %s812
        %p814 = pneg %p108
        %p815 = pneg %p105
        %p816 = pneg %p129
        %p817 = pneg %p126
        %p818 = pneg %p150
        %p819 = pneg %p147
        %p820 = pneg %p171
        %p821 = pneg %p168
        %p822 = pneg %p192
        %p823 = pneg %p189
        %p824 = pneg %p213
        %p825 = pneg %p210
        %p826 = pneg %p234
        %p827 = pneg %p231
        %p828 = pneg %p255
        %p829 = pneg %p252
        %p830 = pneg %p276
        %p831 = pneg %p273
        %p832 = pneg %p297
        %p833 = pneg %p294
        %p834 = pneg %p318
        %p835 = pneg %p315
        %p836 = pneg %p339
        %p837 = pneg %p336
        %p838 = pneg %p360
        %p839 = pneg %p357
        %p840 = pneg %p381
        %p841 = pneg %p378
        %p842 = pneg %p402
        %p843 = pneg %p399
        %p844 = pneg %p423
        %p845 = pneg %p420
        %p846 = pneg %p444
        %p847 = pneg %p441
        %p848 = pneg %p465
        %p849 = pneg %p462
        %p850 = pneg %p493
        %p851 = pneg %p490
        %s852 = sand.u32 %s480, 1
        %s853 = scalar_lea.sflag [#allocation5], %s852
        %s854 = sand.u32 %s480, 1
        %s855 = smul.addr %s854, 8
        %s856 = scalar_lea.vmem [#allocation26], %s855
        %s857 = smul.u32 2, %s50
        %s858 = smul.u32 2, %s50
        %v860 = vld [vmem:[%s740] sm:$0xf]
        %v861 = vld [vmem:[%s740 + $0x4] sm:$0xf]
        %v862 = vld [vmem:[%s749] sm:$0xf]
        %v863 = vld [vmem:[%s749 + $0x4] sm:$0xf]
        %v866 = vunpack.c.l.b16 %v862
        %v867 = vunpack.c.l.b16 %v863
        %v868 = vpack.c.b16 %v867, %v866
        %870 = vst [vmem:[#allocation2] sm:$0xff] %v868
        %v873 = vunpack.c.l.b16 %v860
        %v874 = vunpack.c.l.b16 %v861
        %v875 = vpack.c.b16 %v874, %v873
        %877 = vst [vmem:[#allocation2 + $0x8] sm:$0xff] %v875
        %v878 = vld [vmem:[%s749 + $0x8] sm:$0xf]
        %v879 = vld [vmem:[%s749 + $0xc] sm:$0xf]
        %v882 = vunpack.c.l.b16 %v878
        %v883 = vunpack.c.l.b16 %v879
        %v884 = vpack.c.b16 %v883, %v882
        %886 = vst [vmem:[#allocation2 + $0x10] sm:$0xff] %v884
        %v887 = vld [vmem:[#allocation2] sm:$0xe0]
        %v888 = vld [vmem:[#allocation2 + $0x8] sm:$0x3f]
        %v889 = vld [vmem:[#allocation8] sm:$0xf]
        %v890 = vld [vmem:[#allocation8 + $0x4] sm:$0xf]
        %v891 = vld [vmem:[#allocation8 + $0x8] sm:$0xf]
        %v892 = vld [vmem:[#allocation8 + $0xc] sm:$0xf]
        %v893 = vld [vmem:[#allocation8 + $0x10] sm:$0xf]
        %v894 = vld [vmem:[#allocation8 + $0x14] sm:$0xf]
        %v895 = vld [vmem:[#allocation8 + $0x18] sm:$0xf]
        %v896 = vld [vmem:[#allocation8 + $0x1c] sm:$0xf]
        %v897 = vld [vmem:[#allocation8 + $0x20] sm:$0xf]
        %v898 = vld [vmem:[#allocation8 + $0x24] sm:$0xf]
        %v899 = vld [vmem:[#allocation8 + $0x28] sm:$0xf]
        %v900 = vld [vmem:[#allocation8 + $0x2c] sm:$0xf]
        %v901 = vld [vmem:[#allocation8 + $0x30] sm:$0xf]
        %v902 = vld [vmem:[#allocation8 + $0x34] sm:$0xf]
        %v903 = vld [vmem:[#allocation8 + $0x38] sm:$0xf]
        %v904 = vld [vmem:[#allocation8 + $0x3c] sm:$0xf]
        %v905 = vld [vmem:[#allocation2] sm:$0xc0]
        %v906 = vld [vmem:[#allocation9] sm:$0xf]
        %v907 = vld [vmem:[#allocation9 + $0x4] sm:$0xf]
        %v908 = vld [vmem:[#allocation9 + $0x8] sm:$0xf]
        %v909 = vld [vmem:[#allocation9 + $0xc] sm:$0xf]
        %v910 = vld [vmem:[#allocation9 + $0x10] sm:$0xf]
        %v911 = vld [vmem:[#allocation9 + $0x14] sm:$0xf]
        %v912 = vld [vmem:[#allocation9 + $0x18] sm:$0xf]
        %v913 = vld [vmem:[#allocation9 + $0x1c] sm:$0xf]
        %v914 = vld [vmem:[#allocation9 + $0x20] sm:$0xf]
        %v915 = vld [vmem:[#allocation9 + $0x24] sm:$0xf]
        %v916 = vld [vmem:[#allocation9 + $0x28] sm:$0xf]
        %v917 = vld [vmem:[#allocation9 + $0x2c] sm:$0xf]
        %v918 = vld [vmem:[#allocation9 + $0x30] sm:$0xf]
        %v919 = vld [vmem:[#allocation9 + $0x34] sm:$0xf]
        %v920 = vld [vmem:[#allocation9 + $0x38] sm:$0xf]
        %v921 = vld [vmem:[#allocation9 + $0x3c] sm:$0xf]
        %vm924 = vcmask 1041408
        %v925 = vrot.slane %v905, 6
        %v926 = vrot.slane %v888, 6
        %v927 = vsel %vm924, %v925, %v926
        %v945 = vunpack.c.l.b16 %v906
        %v946 = vunpack.c.l.b16 %v907
        %v947 = vunpack.c.l.b16 %v908
        %v948 = vunpack.c.l.b16 %v909
        %v949 = vunpack.c.l.b16 %v910
        %v950 = vunpack.c.l.b16 %v911
        %v951 = vunpack.c.l.b16 %v912
        %v952 = vunpack.c.l.b16 %v913
        %v953 = vunpack.c.l.b16 %v914
        %v954 = vunpack.c.l.b16 %v915
        %v955 = vunpack.c.l.b16 %v916
        %v956 = vunpack.c.l.b16 %v917
        %v957 = vunpack.c.l.b16 %v918
        %v958 = vunpack.c.l.b16 %v919
        %v959 = vunpack.c.l.b16 %v920
        %v960 = vunpack.c.l.b16 %v921
        %v961 = vpack.c.b16 %v946, %v945
        %v962 = vpack.c.b16 %v948, %v947
        %v963 = vpack.c.b16 %v950, %v949
        %v964 = vpack.c.b16 %v952, %v951
        %v965 = vpack.c.b16 %v954, %v953
        %v966 = vpack.c.b16 %v956, %v955
        %v967 = vpack.c.b16 %v958, %v957
        %v968 = vpack.c.b16 %v960, %v959
        %977 = vmatprep.subr.bf16.mxu0 0
        %978 = vmatpush1.bf16.msra.mxu0 %v961
        %979 = vmatprep.subr.bf16.mxu0 0
        %980 = vmatpush1.bf16.msra.mxu0 %v962
        %981 = vmatprep.subr.bf16.mxu0 0
        %982 = vmatpush1.bf16.msra.mxu0 %v963
        %983 = vmatprep.subr.bf16.mxu0 0
        %984 = vmatpush1.bf16.msra.mxu0 %v964
        %985 = vmatprep.subr.bf16.mxu0 0
        %986 = vmatpush1.bf16.msra.mxu0 %v965
        %987 = vmatprep.subr.bf16.mxu0 0
        %988 = vmatpush1.bf16.msra.mxu0 %v966
        %989 = vmatprep.subr.bf16.mxu0 0
        %990 = vmatpush1.bf16.msra.mxu0 %v967
        %991 = vmatprep.subr.bf16.mxu0 0
        %992 = vmatpush1.bf16.msra.mxu0 %v968
        %993 = vmatprep.subr.bf16.mxu0 0
        %994 = vmatpush1.bf16.msra.mxu0 0
        %995 = vmatprep.subr.bf16.mxu0 0
        %996 = vmatpush1.bf16.msra.mxu0 0
        %997 = vmatprep.subr.bf16.mxu0 0
        %998 = vmatpush1.bf16.msra.mxu0 0
        %999 = vmatprep.subr.bf16.mxu0 0
        %1000 = vmatpush1.bf16.msra.mxu0 0
        %1001 = vmatprep.subr.bf16.mxu0 0
        %1002 = vmatpush1.bf16.msra.mxu0 0
        %1003 = vmatprep.subr.bf16.mxu0 0
        %1004 = vmatpush1.bf16.msra.mxu0 0
        %1005 = vmatprep.subr.bf16.mxu0 0
        %1006 = vmatpush1.bf16.msra.mxu0 0
        %1007 = vmatprep.subr.bf16.mxu0 0
        %1008 = vmatpush1.bf16.msra.mxu0 0
        %1009 = vmatprep.mubr.bf16.mxu0 0
        %1010 = vmatmul.mubr.bf16.gmra.mrb[0].mxu0 %v927
        %v1011 = vpop.f32.mrb[0].mxu0
        %v1012 = vadd.f32 0.0, %v1011
        %v1013 = vpop.f32.mrb[0].mxu0
        %v1014 = vpop.f32.mrb[0].mxu0
        %v1015 = vadd.f32 0.0, %v1014
        %v1016 = vpop.f32.mrb[0].mxu0
        %1017 = vdwg.mxu0
        %vm1018 = vsmask.f32 2304
        %v1020 = vshrl.u32 %v887, 16
        %v1022 = vrot.slane %v1020, 5
        %v1023 = vshll.u32 %v887, 16
        %v1025 = vrot.slane %v1023, 6
        %v1026 = vor.u32 %v1022, %v1025
        %v1028 = vshrl.u32 %v888, 16
        %v1030 = vrot.slane %v1028, 5
        %v1031 = vshll.u32 %v888, 16
        %v1033 = vrot.slane %v1031, 6
        %v1034 = vor.u32 %v1030, %v1033
        %v1035 = vsel %vm1018, %v1026, %v1034
        %v1053 = vunpack.c.l.b16 %v889
        %v1054 = vunpack.c.l.b16 %v890
        %v1055 = vunpack.c.l.b16 %v891
        %v1056 = vunpack.c.l.b16 %v892
        %v1057 = vunpack.c.l.b16 %v893
        %v1058 = vunpack.c.l.b16 %v894
        %v1059 = vunpack.c.l.b16 %v895
        %v1060 = vunpack.c.l.b16 %v896
        %v1061 = vunpack.c.l.b16 %v897
        %v1062 = vunpack.c.l.b16 %v898
        %v1063 = vunpack.c.l.b16 %v899
        %v1064 = vunpack.c.l.b16 %v900
        %v1065 = vunpack.c.l.b16 %v901
        %v1066 = vunpack.c.l.b16 %v902
        %v1067 = vunpack.c.l.b16 %v903
        %v1068 = vunpack.c.l.b16 %v904
        %v1069 = vpack.c.b16 %v1054, %v1053
        %v1070 = vpack.c.b16 %v1056, %v1055
        %v1071 = vpack.c.b16 %v1058, %v1057
        %v1072 = vpack.c.b16 %v1060, %v1059
        %v1073 = vpack.c.b16 %v1062, %v1061
        %v1074 = vpack.c.b16 %v1064, %v1063
        %v1075 = vpack.c.b16 %v1066, %v1065
        %v1076 = vpack.c.b16 %v1068, %v1067
        %1085 = vmatprep.subr.bf16.mxu0 0
        %1086 = vmatpush1.bf16.msra.mxu0 %v1069
        %1087 = vmatprep.subr.bf16.mxu0 0
        %1088 = vmatpush1.bf16.msra.mxu0 %v1070
        %1089 = vmatprep.subr.bf16.mxu0 0
        %1090 = vmatpush1.bf16.msra.mxu0 %v1071
        %1091 = vmatprep.subr.bf16.mxu0 0
        %1092 = vmatpush1.bf16.msra.mxu0 %v1072
        %1093 = vmatprep.subr.bf16.mxu0 0
        %1094 = vmatpush1.bf16.msra.mxu0 %v1073
        %1095 = vmatprep.subr.bf16.mxu0 0
        %1096 = vmatpush1.bf16.msra.mxu0 %v1074
        %1097 = vmatprep.subr.bf16.mxu0 0
        %1098 = vmatpush1.bf16.msra.mxu0 %v1075
        %1099 = vmatprep.subr.bf16.mxu0 0
        %1100 = vmatpush1.bf16.msra.mxu0 %v1076
        %1101 = vmatprep.subr.bf16.mxu0 0
        %1102 = vmatpush1.bf16.msra.mxu0 0
        %1103 = vmatprep.subr.bf16.mxu0 0
        %1104 = vmatpush1.bf16.msra.mxu0 0
        %1105 = vmatprep.subr.bf16.mxu0 0
        %1106 = vmatpush1.bf16.msra.mxu0 0
        %1107 = vmatprep.subr.bf16.mxu0 0
        %1108 = vmatpush1.bf16.msra.mxu0 0
        %1109 = vmatprep.subr.bf16.mxu0 0
        %1110 = vmatpush1.bf16.msra.mxu0 0
        %1111 = vmatprep.subr.bf16.mxu0 0
        %1112 = vmatpush1.bf16.msra.mxu0 0
        %1113 = vmatprep.subr.bf16.mxu0 0
        %1114 = vmatpush1.bf16.msra.mxu0 0
        %1115 = vmatprep.subr.bf16.mxu0 0
        %1116 = vmatpush1.bf16.msra.mxu0 0
        %1117 = vmatprep.mubr.bf16.mxu0 0
        %1118 = vmatmul.mubr.bf16.gmra.mrb[0].mxu0 %v1035
        %v1119 = vpop.f32.mrb[0].mxu0
        %v1120 = vadd.f32 %v1012, %v1119
        %v1121 = vpop.f32.mrb[0].mxu0
        %v1122 = vpop.f32.mrb[0].mxu0
        %v1123 = vadd.f32 %v1015, %v1122
        %v1124 = vpop.f32.mrb[0].mxu0
        %1125 = vdwg.mxu0
        %v1126 = vld [vmem:[#allocation2 + $0x8] sm:$0x7f]
        %v1127 = vld [vmem:[#allocation11] sm:$0xff]
        %v1128 = vld [vmem:[#allocation11 + $0x8] sm:$0xff]
        %v1129 = vld [vmem:[#allocation11 + $0x10] sm:$0xff]
        %v1130 = vld [vmem:[#allocation11 + $0x18] sm:$0xff]
        %v1131 = vld [vmem:[#allocation11 + $0x20] sm:$0xff]
        %v1132 = vld [vmem:[#allocation11 + $0x28] sm:$0xff]
        %v1133 = vld [vmem:[#allocation11 + $0x30] sm:$0xff]
        %v1134 = vld [vmem:[#allocation11 + $0x38] sm:$0xff]
        %v1135 = vld [vmem:[#allocation11 + $0x40] sm:$0xff]
        %v1136 = vld [vmem:[#allocation11 + $0x48] sm:$0xff]
        %v1137 = vld [vmem:[#allocation11 + $0x50] sm:$0xff]
        %v1138 = vld [vmem:[#allocation11 + $0x58] sm:$0xff]
        %v1139 = vld [vmem:[#allocation11 + $0x60] sm:$0xff]
        %v1140 = vld [vmem:[#allocation11 + $0x68] sm:$0xff]
        %v1141 = vld [vmem:[#allocation11 + $0x70] sm:$0xff]
        %v1142 = vld [vmem:[#allocation11 + $0x78] sm:$0xff]
        %vm1143 = vsmask.f32 1280
        %v1145 = vshrl.u32 %v905, 16
        %v1147 = vrot.slane %v1145, 6
        %v1148 = vshll.u32 %v905, 16
        %v1150 = vrot.slane %v1148, 7
        %v1151 = vor.u32 %v1147, %v1150
        %v1153 = vshrl.u32 %v1126, 16
        %v1155 = vrot.slane %v1153, 6
        %v1156 = vshll.u32 %v1126, 16
        %v1158 = vrot.slane %v1156, 7
        %v1159 = vor.u32 %v1155, %v1158
        %v1160 = vsel %vm1143, %v1151, %v1159
        %v1178 = vunpack.c.l.b16 %v1127
        %v1179 = vunpack.c.h.b16 %v1127
        %v1180 = vunpack.c.l.b16 %v1128
        %v1181 = vunpack.c.h.b16 %v1128
        %v1182 = vunpack.c.l.b16 %v1129
        %v1183 = vunpack.c.h.b16 %v1129
        %v1184 = vunpack.c.l.b16 %v1130
        %v1185 = vunpack.c.h.b16 %v1130
        %v1186 = vunpack.c.l.b16 %v1131
        %v1187 = vunpack.c.h.b16 %v1131
        %v1188 = vunpack.c.l.b16 %v1132
        %v1189 = vunpack.c.h.b16 %v1132
        %v1190 = vunpack.c.l.b16 %v1133
        %v1191 = vunpack.c.h.b16 %v1133
        %v1192 = vunpack.c.l.b16 %v1134
        %v1193 = vunpack.c.h.b16 %v1134
        %v1194 = vunpack.c.l.b16 %v1135
        %v1195 = vunpack.c.h.b16 %v1135
        %v1196 = vunpack.c.l.b16 %v1136
        %v1197 = vunpack.c.h.b16 %v1136
        %v1198 = vunpack.c.l.b16 %v1137
        %v1199 = vunpack.c.h.b16 %v1137
        %v1200 = vunpack.c.l.b16 %v1138
        %v1201 = vunpack.c.h.b16 %v1138
        %v1202 = vunpack.c.l.b16 %v1139
        %v1203 = vunpack.c.h.b16 %v1139
        %v1204 = vunpack.c.l.b16 %v1140
        %v1205 = vunpack.c.h.b16 %v1140
        %v1206 = vunpack.c.l.b16 %v1141
        %v1207 = vunpack.c.h.b16 %v1141
        %v1208 = vunpack.c.l.b16 %v1142
        %v1209 = vunpack.c.h.b16 %v1142
        %v1210 = vpack.c.b16 %v1180, %v1178
        %v1211 = vpack.c.b16 %v1181, %v1179
        %v1212 = vpack.c.b16 %v1184, %v1182
        %v1213 = vpack.c.b16 %v1185, %v1183
        %v1214 = vpack.c.b16 %v1188, %v1186
        %v1215 = vpack.c.b16 %v1189, %v1187
        %v1216 = vpack.c.b16 %v1192, %v1190
        %v1217 = vpack.c.b16 %v1193, %v1191
        %v1218 = vpack.c.b16 %v1196, %v1194
        %v1219 = vpack.c.b16 %v1197, %v1195
        %v1220 = vpack.c.b16 %v1200, %v1198
        %v1221 = vpack.c.b16 %v1201, %v1199
        %v1222 = vpack.c.b16 %v1204, %v1202
        %v1223 = vpack.c.b16 %v1205, %v1203
        %v1224 = vpack.c.b16 %v1208, %v1206
        %v1225 = vpack.c.b16 %v1209, %v1207
        %1242 = vmatprep.subr.bf16.mxu0 %v1211
        %1243 = vmatpush1.bf16.msra.mxu0 %v1210
        %1244 = vmatprep.subr.bf16.mxu0 %v1213
        %1245 = vmatpush1.bf16.msra.mxu0 %v1212
        %1246 = vmatprep.subr.bf16.mxu0 %v1215
        %1247 = vmatpush1.bf16.msra.mxu0 %v1214
        %1248 = vmatprep.subr.bf16.mxu0 %v1217
        %1249 = vmatpush1.bf16.msra.mxu0 %v1216
        %1250 = vmatprep.subr.bf16.mxu0 %v1219
        %1251 = vmatpush1.bf16.msra.mxu0 %v1218
        %1252 = vmatprep.subr.bf16.mxu0 %v1221
        %1253 = vmatpush1.bf16.msra.mxu0 %v1220
        %1254 = vmatprep.subr.bf16.mxu0 %v1223
        %1255 = vmatpush1.bf16.msra.mxu0 %v1222
        %1256 = vmatprep.subr.bf16.mxu0 %v1225
        %1257 = vmatpush1.bf16.msra.mxu0 %v1224
        %1258 = vmatprep.subr.bf16.mxu0 0
        %1259 = vmatpush1.bf16.msra.mxu0 0
        %1260 = vmatprep.subr.bf16.mxu0 0
        %1261 = vmatpush1.bf16.msra.mxu0 0
        %1262 = vmatprep.subr.bf16.mxu0 0
        %1263 = vmatpush1.bf16.msra.mxu0 0
        %1264 = vmatprep.subr.bf16.mxu0 0
        %1265 = vmatpush1.bf16.msra.mxu0 0
        %1266 = vmatprep.subr.bf16.mxu0 0
        %1267 = vmatpush1.bf16.msra.mxu0 0
        %1268 = vmatprep.subr.bf16.mxu0 0
        %1269 = vmatpush1.bf16.msra.mxu0 0
        %1270 = vmatprep.subr.bf16.mxu0 0
        %1271 = vmatpush1.bf16.msra.mxu0 0
        %1272 = vmatprep.subr.bf16.mxu0 0
        %1273 = vmatpush1.bf16.msra.mxu0 0
        %1274 = vmatprep.mubr.bf16.mxu0 0
        %1275 = vmatmul.mubr.bf16.gmra.mrb[0].mxu0 %v1160
        %v1276 = vpop.f32.mrb[0].mxu0
        %v1277 = vadd.f32 0.0, %v1276
        %v1278 = vpop.f32.mrb[0].mxu0
        %v1279 = vadd.f32 0.0, %v1278
        %v1280 = vpop.f32.mrb[0].mxu0
        %v1281 = vadd.f32 0.0, %v1280
        %v1282 = vpop.f32.mrb[0].mxu0
        %v1283 = vadd.f32 0.0, %v1282
        %1284 = vdwg.mxu0
        %v1285 = vadd.f32 %v1277, 0.0
        %v1286 = vadd.f32 %v1281, 0.0
        %v1287 = vadd.f32 %v1120, %v1279
        %v1288 = vadd.f32 %v1123, %v1283
        %v1289 = vld [vmem:[#allocation2] sm:$0x80]
        %v1290 = vld [vmem:[#allocation12] sm:$0xff]
        %v1291 = vld [vmem:[#allocation12 + $0x8] sm:$0xff]
        %v1292 = vld [vmem:[#allocation12 + $0x10] sm:$0xff]
        %v1293 = vld [vmem:[#allocation12 + $0x18] sm:$0xff]
        %v1294 = vld [vmem:[#allocation12 + $0x20] sm:$0xff]
        %v1295 = vld [vmem:[#allocation12 + $0x28] sm:$0xff]
        %v1296 = vld [vmem:[#allocation12 + $0x30] sm:$0xff]
        %v1297 = vld [vmem:[#allocation12 + $0x38] sm:$0xff]
        %v1298 = vld [vmem:[#allocation12 + $0x40] sm:$0xff]
        %v1299 = vld [vmem:[#allocation12 + $0x48] sm:$0xff]
        %v1300 = vld [vmem:[#allocation12 + $0x50] sm:$0xff]
        %v1301 = vld [vmem:[#allocation12 + $0x58] sm:$0xff]
        %v1302 = vld [vmem:[#allocation12 + $0x60] sm:$0xff]
        %v1303 = vld [vmem:[#allocation12 + $0x68] sm:$0xff]
        %v1304 = vld [vmem:[#allocation12 + $0x70] sm:$0xff]
        %v1305 = vld [vmem:[#allocation12 + $0x78] sm:$0xff]
        %vm1308 = vcmask 1040384
        %v1309 = vrot.slane %v1289, 7
        %v1310 = vrot.slane %v1126, 7
        %v1311 = vsel %vm1308, %v1309, %v1310
        %v1329 = vunpack.c.l.b16 %v1290
        %v1330 = vunpack.c.h.b16 %v1290
        %v1331 = vunpack.c.l.b16 %v1291
        %v1332 = vunpack.c.h.b16 %v1291
        %v1333 = vunpack.c.l.b16 %v1292
        %v1334 = vunpack.c.h.b16 %v1292
        %v1335 = vunpack.c.l.b16 %v1293
        %v1336 = vunpack.c.h.b16 %v1293
        %v1337 = vunpack.c.l.b16 %v1294
        %v1338 = vunpack.c.h.b16 %v1294
        %v1339 = vunpack.c.l.b16 %v1295
        %v1340 = vunpack.c.h.b16 %v1295
        %v1341 = vunpack.c.l.b16 %v1296
        %v1342 = vunpack.c.h.b16 %v1296
        %v1343 = vunpack.c.l.b16 %v1297
        %v1344 = vunpack.c.h.b16 %v1297
        %v1345 = vunpack.c.l.b16 %v1298
        %v1346 = vunpack.c.h.b16 %v1298
        %v1347 = vunpack.c.l.b16 %v1299
        %v1348 = vunpack.c.h.b16 %v1299
        %v1349 = vunpack.c.l.b16 %v1300
        %v1350 = vunpack.c.h.b16 %v1300
        %v1351 = vunpack.c.l.b16 %v1301
        %v1352 = vunpack.c.h.b16 %v1301
        %v1353 = vunpack.c.l.b16 %v1302
        %v1354 = vunpack.c.h.b16 %v1302
        %v1355 = vunpack.c.l.b16 %v1303
        %v1356 = vunpack.c.h.b16 %v1303
        %v1357 = vunpack.c.l.b16 %v1304
        %v1358 = vunpack.c.h.b16 %v1304
        %v1359 = vunpack.c.l.b16 %v1305
        %v1360 = vunpack.c.h.b16 %v1305
        %v1361 = vpack.c.b16 %v1331, %v1329
        %v1362 = vpack.c.b16 %v1332, %v1330
        %v1363 = vpack.c.b16 %v1335, %v1333
        %v1364 = vpack.c.b16 %v1336, %v1334
        %v1365 = vpack.c.b16 %v1339, %v1337
        %v1366 = vpack.c.b16 %v1340, %v1338
        %v1367 = vpack.c.b16 %v1343, %v1341
        %v1368 = vpack.c.b16 %v1344, %v1342
        %v1369 = vpack.c.b16 %v1347, %v1345
        %v1370 = vpack.c.b16 %v1348, %v1346
        %v1371 = vpack.c.b16 %v1351, %v1349
        %v1372 = vpack.c.b16 %v1352, %v1350
        %v1373 = vpack.c.b16 %v1355, %v1353
        %v1374 = vpack.c.b16 %v1356, %v1354
        %v1375 = vpack.c.b16 %v1359, %v1357
        %v1376 = vpack.c.b16 %v1360, %v1358
        %1393 = vmatprep.subr.bf16.mxu0 %v1362
        %1394 = vmatpush1.bf16.msra.mxu0 %v1361
        %1395 = vmatprep.subr.bf16.mxu0 %v1364
        %1396 = vmatpush1.bf16.msra.mxu0 %v1363
        %1397 = vmatprep.subr.bf16.mxu0 %v1366
        %1398 = vmatpush1.bf16.msra.mxu0 %v1365
        %1399 = vmatprep.subr.bf16.mxu0 %v1368
        %1400 = vmatpush1.bf16.msra.mxu0 %v1367
        %1401 = vmatprep.subr.bf16.mxu0 %v1370
        %1402 = vmatpush1.bf16.msra.mxu0 %v1369
        %1403 = vmatprep.subr.bf16.mxu0 %v1372
        %1404 = vmatpush1.bf16.msra.mxu0 %v1371
        %1405 = vmatprep.subr.bf16.mxu0 %v1374
        %1406 = vmatpush1.bf16.msra.mxu0 %v1373
        %1407 = vmatprep.subr.bf16.mxu0 %v1376
        %1408 = vmatpush1.bf16.msra.mxu0 %v1375
        %1409 = vmatprep.subr.bf16.mxu0 0
        %1410 = vmatpush1.bf16.msra.mxu0 0
        %1411 = vmatprep.subr.bf16.mxu0 0
        %1412 = vmatpush1.bf16.msra.mxu0 0
        %1413 = vmatprep.subr.bf16.mxu0 0
        %1414 = vmatpush1.bf16.msra.mxu0 0
        %1415 = vmatprep.subr.bf16.mxu0 0
        %1416 = vmatpush1.bf16.msra.mxu0 0
        %1417 = vmatprep.subr.bf16.mxu0 0
        %1418 = vmatpush1.bf16.msra.mxu0 0
        %1419 = vmatprep.subr.bf16.mxu0 0
        %1420 = vmatpush1.bf16.msra.mxu0 0
        %1421 = vmatprep.subr.bf16.mxu0 0
        %1422 = vmatpush1.bf16.msra.mxu0 0
        %1423 = vmatprep.subr.bf16.mxu0 0
        %1424 = vmatpush1.bf16.msra.mxu0 0
        %1425 = vmatprep.mubr.bf16.mxu0 0
        %1426 = vmatmul.mubr.bf16.gmra.mrb[0].mxu0 %v1311
        %v1427 = vpop.f32.mrb[0].mxu0
        %v1428 = vadd.f32 0.0, %v1427
        %v1429 = vpop.f32.mrb[0].mxu0
        %v1430 = vadd.f32 0.0, %v1429
        %v1431 = vpop.f32.mrb[0].mxu0
        %v1432 = vadd.f32 0.0, %v1431
        %v1433 = vpop.f32.mrb[0].mxu0
        %v1434 = vadd.f32 0.0, %v1433
        %1435 = vdwg.mxu0
        %v1436 = vadd.f32 %v1285, %v1428
        %v1437 = vadd.f32 %v1286, %v1432
        %v1438 = vadd.f32 %v1287, %v1430
        %v1439 = vadd.f32 %v1288, %v1434
        %v1440 = vld [vmem:[#allocation2 + $0x8] sm:$0xff]
        %v1441 = vld [vmem:[#allocation14] sm:$0xff]
        %v1442 = vld [vmem:[#allocation14 + $0x8] sm:$0xf]
        %v1443 = vld [vmem:[#allocation14 + $0xc] sm:$0xff]
        %v1444 = vld [vmem:[#allocation14 + $0x14] sm:$0xf]
        %v1445 = vld [vmem:[#allocation14 + $0x18] sm:$0xff]
        %v1446 = vld [vmem:[#allocation14 + $0x20] sm:$0xf]
        %v1447 = vld [vmem:[#allocation14 + $0x24] sm:$0xff]
        %v1448 = vld [vmem:[#allocation14 + $0x2c] sm:$0xf]
        %v1449 = vld [vmem:[#allocation14 + $0x30] sm:$0xff]
        %v1450 = vld [vmem:[#allocation14 + $0x38] sm:$0xf]
        %v1451 = vld [vmem:[#allocation14 + $0x3c] sm:$0xff]
        %v1452 = vld [vmem:[#allocation14 + $0x44] sm:$0xf]
        %v1453 = vld [vmem:[#allocation14 + $0x48] sm:$0xff]
        %v1454 = vld [vmem:[#allocation14 + $0x50] sm:$0xf]
        %v1455 = vld [vmem:[#allocation14 + $0x54] sm:$0xff]
        %v1456 = vld [vmem:[#allocation14 + $0x5c] sm:$0xf]
        %v1457 = vld [vmem:[#allocation14 + $0x60] sm:$0xff]
        %v1458 = vld [vmem:[#allocation14 + $0x68] sm:$0xf]
        %v1459 = vld [vmem:[#allocation14 + $0x6c] sm:$0xff]
        %v1460 = vld [vmem:[#allocation14 + $0x74] sm:$0xf]
        %v1461 = vld [vmem:[#allocation14 + $0x78] sm:$0xff]
        %v1462 = vld [vmem:[#allocation14 + $0x80] sm:$0xf]
        %v1463 = vld [vmem:[#allocation14 + $0x84] sm:$0xff]
        %v1464 = vld [vmem:[#allocation14 + $0x8c] sm:$0xf]
        %v1465 = vld [vmem:[#allocation14 + $0x90] sm:$0xff]
        %v1466 = vld [vmem:[#allocation14 + $0x98] sm:$0xf]
        %v1467 = vld [vmem:[#allocation14 + $0x9c] sm:$0xff]
        %v1468 = vld [vmem:[#allocation14 + $0xa4] sm:$0xf]
        %v1469 = vld [vmem:[#allocation14 + $0xa8] sm:$0xff]
        %v1470 = vld [vmem:[#allocation14 + $0xb0] sm:$0xf]
        %v1471 = vld [vmem:[#allocation14 + $0xb4] sm:$0xff]
        %v1472 = vld [vmem:[#allocation14 + $0xbc] sm:$0xf]
        %vm1473 = vsmask.f32 256
        %v1475 = vshrl.u32 %v1289, 16
        %v1477 = vrot.slane %v1475, 7
        %v1479 = vshrl.u32 %v1440, 16
        %v1481 = vrot.slane %v1479, 7
        %v1482 = vshll.u32 %v1440, 16
        %v1484 = vor.u32 %v1481, %v1482
        %v1485 = vsel %vm1473, %v1477, %v1484
        %v1519 = vunpack.c.l.b16 %v1441
        %v1520 = vunpack.c.h.b16 %v1441
        %v1521 = vunpack.c.l.b16 %v1442
        %v1522 = vunpack.c.l.b16 %v1443
        %v1523 = vunpack.c.h.b16 %v1443
        %v1524 = vunpack.c.l.b16 %v1444
        %v1525 = vunpack.c.l.b16 %v1445
        %v1526 = vunpack.c.h.b16 %v1445
        %v1527 = vunpack.c.l.b16 %v1446
        %v1528 = vunpack.c.l.b16 %v1447
        %v1529 = vunpack.c.h.b16 %v1447
        %v1530 = vunpack.c.l.b16 %v1448
        %v1531 = vunpack.c.l.b16 %v1449
        %v1532 = vunpack.c.h.b16 %v1449
        %v1533 = vunpack.c.l.b16 %v1450
        %v1534 = vunpack.c.l.b16 %v1451
        %v1535 = vunpack.c.h.b16 %v1451
        %v1536 = vunpack.c.l.b16 %v1452
        %v1537 = vunpack.c.l.b16 %v1453
        %v1538 = vunpack.c.h.b16 %v1453
        %v1539 = vunpack.c.l.b16 %v1454
        %v1540 = vunpack.c.l.b16 %v1455
        %v1541 = vunpack.c.h.b16 %v1455
        %v1542 = vunpack.c.l.b16 %v1456
        %v1543 = vunpack.c.l.b16 %v1457
        %v1544 = vunpack.c.h.b16 %v1457
        %v1545 = vunpack.c.l.b16 %v1458
        %v1546 = vunpack.c.l.b16 %v1459
        %v1547 = vunpack.c.h.b16 %v1459
        %v1548 = vunpack.c.l.b16 %v1460
        %v1549 = vunpack.c.l.b16 %v1461
        %v1550 = vunpack.c.h.b16 %v1461
        %v1551 = vunpack.c.l.b16 %v1462
        %v1552 = vunpack.c.l.b16 %v1463
        %v1553 = vunpack.c.h.b16 %v1463
        %v1554 = vunpack.c.l.b16 %v1464
        %v1555 = vunpack.c.l.b16 %v1465
        %v1556 = vunpack.c.h.b16 %v1465
        %v1557 = vunpack.c.l.b16 %v1466
        %v1558 = vunpack.c.l.b16 %v1467
        %v1559 = vunpack.c.h.b16 %v1467
        %v1560 = vunpack.c.l.b16 %v1468
        %v1561 = vunpack.c.l.b16 %v1469
        %v1562 = vunpack.c.h.b16 %v1469
        %v1563 = vunpack.c.l.b16 %v1470
        %v1564 = vunpack.c.l.b16 %v1471
        %v1565 = vunpack.c.h.b16 %v1471
        %v1566 = vunpack.c.l.b16 %v1472
        %v1567 = vpack.c.b16 %v1522, %v1519
        %v1568 = vpack.c.b16 %v1523, %v1520
        %v1569 = vpack.c.b16 %v1524, %v1521
        %v1570 = vpack.c.b16 %v1528, %v1525
        %v1571 = vpack.c.b16 %v1529, %v1526
        %v1572 = vpack.c.b16 %v1530, %v1527
        %v1573 = vpack.c.b16 %v1534, %v1531
        %v1574 = vpack.c.b16 %v1535, %v1532
        %v1575 = vpack.c.b16 %v1536, %v1533
        %v1576 = vpack.c.b16 %v1540, %v1537
        %v1577 = vpack.c.b16 %v1541, %v1538
        %v1578 = vpack.c.b16 %v1542, %v1539
        %v1579 = vpack.c.b16 %v1546, %v1543
        %v1580 = vpack.c.b16 %v1547, %v1544
        %v1581 = vpack.c.b16 %v1548, %v1545
        %v1582 = vpack.c.b16 %v1552, %v1549
        %v1583 = vpack.c.b16 %v1553, %v1550
        %v1584 = vpack.c.b16 %v1554, %v1551
        %v1585 = vpack.c.b16 %v1558, %v1555
        %v1586 = vpack.c.b16 %v1559, %v1556
        %v1587 = vpack.c.b16 %v1560, %v1557
        %v1588 = vpack.c.b16 %v1564, %v1561
        %v1589 = vpack.c.b16 %v1565, %v1562
        %v1590 = vpack.c.b16 %v1566, %v1563
        %1615 = vmatprep.subr.bf16.mxu0 %v1568
        %1616 = vmatpush1.bf16.msra.mxu0 %v1567
        %1617 = vmatprep.subr.bf16.mxu0 %v1571
        %1618 = vmatpush1.bf16.msra.mxu0 %v1570
        %1619 = vmatprep.subr.bf16.mxu0 %v1574
        %1620 = vmatpush1.bf16.msra.mxu0 %v1573
        %1621 = vmatprep.subr.bf16.mxu0 %v1577
        %1622 = vmatpush1.bf16.msra.mxu0 %v1576
        %1623 = vmatprep.subr.bf16.mxu0 %v1580
        %1624 = vmatpush1.bf16.msra.mxu0 %v1579
        %1625 = vmatprep.subr.bf16.mxu0 %v1583
        %1626 = vmatpush1.bf16.msra.mxu0 %v1582
        %1627 = vmatprep.subr.bf16.mxu0 %v1586
        %1628 = vmatpush1.bf16.msra.mxu0 %v1585
        %1629 = vmatprep.subr.bf16.mxu0 %v1589
        %1630 = vmatpush1.bf16.msra.mxu0 %v1588
        %1631 = vmatprep.subr.bf16.mxu0 0
        %1632 = vmatpush1.bf16.msra.mxu0 0
        %1633 = vmatprep.subr.bf16.mxu0 0
        %1634 = vmatpush1.bf16.msra.mxu0 0
        %1635 = vmatprep.subr.bf16.mxu0 0
        %1636 = vmatpush1.bf16.msra.mxu0 0
        %1637 = vmatprep.subr.bf16.mxu0 0
        %1638 = vmatpush1.bf16.msra.mxu0 0
        %1639 = vmatprep.subr.bf16.mxu0 0
        %1640 = vmatpush1.bf16.msra.mxu0 0
        %1641 = vmatprep.subr.bf16.mxu0 0
        %1642 = vmatpush1.bf16.msra.mxu0 0
        %1643 = vmatprep.subr.bf16.mxu0 0
        %1644 = vmatpush1.bf16.msra.mxu0 0
        %1645 = vmatprep.subr.bf16.mxu0 0
        %1646 = vmatpush1.bf16.msra.mxu0 0
        %1647 = vmatprep.mubr.bf16.mxu0 0
        %1648 = vmatmul.mubr.bf16.gmra.mrb[0].mxu0 %v1485
        %v1649 = vpop.f32.mrb[0].mxu0
        %v1650 = vadd.f32 0.0, %v1649
        %v1651 = vpop.f32.mrb[0].mxu0
        %v1652 = vadd.f32 0.0, %v1651
        %v1653 = vpop.f32.mrb[0].mxu0
        %v1654 = vadd.f32 0.0, %v1653
        %v1655 = vpop.f32.mrb[0].mxu0
        %v1656 = vadd.f32 0.0, %v1655
        %1657 = vdwg.mxu0
        %1658 = vmatprep.subr.bf16.mxu0 0
        %1659 = vmatpush1.bf16.msra.mxu0 %v1569
        %1660 = vmatprep.subr.bf16.mxu0 0
        %1661 = vmatpush1.bf16.msra.mxu0 %v1572
        %1662 = vmatprep.subr.bf16.mxu0 0
        %1663 = vmatpush1.bf16.msra.mxu0 %v1575
        %1664 = vmatprep.subr.bf16.mxu0 0
        %1665 = vmatpush1.bf16.msra.mxu0 %v1578
        %1666 = vmatprep.subr.bf16.mxu0 0
        %1667 = vmatpush1.bf16.msra.mxu0 %v1581
        %1668 = vmatprep.subr.bf16.mxu0 0
        %1669 = vmatpush1.bf16.msra.mxu0 %v1584
        %1670 = vmatprep.subr.bf16.mxu0 0
        %1671 = vmatpush1.bf16.msra.mxu0 %v1587
        %1672 = vmatprep.subr.bf16.mxu0 0
        %1673 = vmatpush1.bf16.msra.mxu0 %v1590
        %1674 = vmatprep.subr.bf16.mxu0 0
        %1675 = vmatpush1.bf16.msra.mxu0 0
        %1676 = vmatprep.subr.bf16.mxu0 0
        %1677 = vmatpush1.bf16.msra.mxu0 0
        %1678 = vmatprep.subr.bf16.mxu0 0
        %1679 = vmatpush1.bf16.msra.mxu0 0
        %1680 = vmatprep.subr.bf16.mxu0 0
        %1681 = vmatpush1.bf16.msra.mxu0 0
        %1682 = vmatprep.subr.bf16.mxu0 0
        %1683 = vmatpush1.bf16.msra.mxu0 0
        %1684 = vmatprep.subr.bf16.mxu0 0
        %1685 = vmatpush1.bf16.msra.mxu0 0
        %1686 = vmatprep.subr.bf16.mxu0 0
        %1687 = vmatpush1.bf16.msra.mxu0 0
        %1688 = vmatprep.subr.bf16.mxu0 0
        %1689 = vmatpush1.bf16.msra.mxu0 0
        %1690 = vmatprep.mubr.bf16.mxu0 0
        %1691 = vmatmul.mubr.bf16.gmra.mrb[0].mxu0 %v1485
        %v1692 = vpop.f32.mrb[0].mxu0
        %v1693 = vadd.f32 0.0, %v1692
        %v1694 = vpop.f32.mrb[0].mxu0
        %v1695 = vpop.f32.mrb[0].mxu0
        %v1696 = vadd.f32 0.0, %v1695
        %v1697 = vpop.f32.mrb[0].mxu0
        %1698 = vdwg.mxu0
        %v1699 = vadd.f32 %v1650, 0.0
        %v1700 = vadd.f32 %v1654, 0.0
        %v1701 = vadd.f32 %v1436, %v1652
        %v1702 = vadd.f32 %v1437, %v1656
        %v1703 = vadd.f32 %v1438, %v1693
        %v1704 = vadd.f32 %v1439, %v1696
        %v1705 = vld [vmem:[#allocation15] sm:$0xff]
        %v1706 = vld [vmem:[#allocation15 + $0x8] sm:$0xff]
        %v1707 = vld [vmem:[#allocation15 + $0x10] sm:$0xff]
        %v1708 = vld [vmem:[#allocation15 + $0x18] sm:$0xff]
        %v1709 = vld [vmem:[#allocation15 + $0x20] sm:$0xff]
        %v1710 = vld [vmem:[#allocation15 + $0x28] sm:$0xff]
        %v1711 = vld [vmem:[#allocation15 + $0x30] sm:$0xff]
        %v1712 = vld [vmem:[#allocation15 + $0x38] sm:$0xff]
        %v1713 = vld [vmem:[#allocation15 + $0x40] sm:$0xff]
        %v1714 = vld [vmem:[#allocation15 + $0x48] sm:$0xff]
        %v1715 = vld [vmem:[#allocation15 + $0x50] sm:$0xff]
        %v1716 = vld [vmem:[#allocation15 + $0x58] sm:$0xff]
        %v1717 = vld [vmem:[#allocation15 + $0x60] sm:$0xff]
        %v1718 = vld [vmem:[#allocation15 + $0x68] sm:$0xff]
        %v1719 = vld [vmem:[#allocation15 + $0x70] sm:$0xff]
        %v1720 = vld [vmem:[#allocation15 + $0x78] sm:$0xff]
        %v1721 = vld [vmem:[#allocation15 + $0x80] sm:$0xff]
        %v1722 = vld [vmem:[#allocation15 + $0x88] sm:$0xff]
        %v1723 = vld [vmem:[#allocation15 + $0x90] sm:$0xff]
        %v1724 = vld [vmem:[#allocation15 + $0x98] sm:$0xff]
        %v1725 = vld [vmem:[#allocation15 + $0xa0] sm:$0xff]
        %v1726 = vld [vmem:[#allocation15 + $0xa8] sm:$0xff]
        %v1727 = vld [vmem:[#allocation15 + $0xb0] sm:$0xff]
        %v1728 = vld [vmem:[#allocation15 + $0xb8] sm:$0xff]
        %v1729 = vld [vmem:[#allocation15 + $0xc0] sm:$0xff]
        %v1730 = vld [vmem:[#allocation15 + $0xc8] sm:$0xff]
        %v1731 = vld [vmem:[#allocation15 + $0xd0] sm:$0xff]
        %v1732 = vld [vmem:[#allocation15 + $0xd8] sm:$0xff]
        %v1733 = vld [vmem:[#allocation15 + $0xe0] sm:$0xff]
        %v1734 = vld [vmem:[#allocation15 + $0xe8] sm:$0xff]
        %v1735 = vld [vmem:[#allocation15 + $0xf0] sm:$0xff]
        %v1736 = vld [vmem:[#allocation15 + $0xf8] sm:$0xff]
        %v1769 = vunpack.c.l.b16 %v1705
        %v1770 = vunpack.c.h.b16 %v1705
        %v1771 = vunpack.c.l.b16 %v1706
        %v1772 = vunpack.c.h.b16 %v1706
        %v1773 = vunpack.c.l.b16 %v1707
        %v1774 = vunpack.c.h.b16 %v1707
        %v1775 = vunpack.c.l.b16 %v1708
        %v1776 = vunpack.c.h.b16 %v1708
        %v1777 = vunpack.c.l.b16 %v1709
        %v1778 = vunpack.c.h.b16 %v1709
        %v1779 = vunpack.c.l.b16 %v1710
        %v1780 = vunpack.c.h.b16 %v1710
        %v1781 = vunpack.c.l.b16 %v1711
        %v1782 = vunpack.c.h.b16 %v1711
        %v1783 = vunpack.c.l.b16 %v1712
        %v1784 = vunpack.c.h.b16 %v1712
        %v1785 = vunpack.c.l.b16 %v1713
        %v1786 = vunpack.c.h.b16 %v1713
        %v1787 = vunpack.c.l.b16 %v1714
        %v1788 = vunpack.c.h.b16 %v1714
        %v1789 = vunpack.c.l.b16 %v1715
        %v1790 = vunpack.c.h.b16 %v1715
        %v1791 = vunpack.c.l.b16 %v1716
        %v1792 = vunpack.c.h.b16 %v1716
        %v1793 = vunpack.c.l.b16 %v1717
        %v1794 = vunpack.c.h.b16 %v1717
        %v1795 = vunpack.c.l.b16 %v1718
        %v1796 = vunpack.c.h.b16 %v1718
        %v1797 = vunpack.c.l.b16 %v1719
        %v1798 = vunpack.c.h.b16 %v1719
        %v1799 = vunpack.c.l.b16 %v1720
        %v1800 = vunpack.c.h.b16 %v1720
        %v1801 = vunpack.c.l.b16 %v1721
        %v1802 = vunpack.c.h.b16 %v1721
        %v1803 = vunpack.c.l.b16 %v1722
        %v1804 = vunpack.c.h.b16 %v1722
        %v1805 = vunpack.c.l.b16 %v1723
        %v1806 = vunpack.c.h.b16 %v1723
        %v1807 = vunpack.c.l.b16 %v1724
        %v1808 = vunpack.c.h.b16 %v1724
        %v1809 = vunpack.c.l.b16 %v1725
        %v1810 = vunpack.c.h.b16 %v1725
        %v1811 = vunpack.c.l.b16 %v1726
        %v1812 = vunpack.c.h.b16 %v1726
        %v1813 = vunpack.c.l.b16 %v1727
        %v1814 = vunpack.c.h.b16 %v1727
        %v1815 = vunpack.c.l.b16 %v1728
        %v1816 = vunpack.c.h.b16 %v1728
        %v1817 = vunpack.c.l.b16 %v1729
        %v1818 = vunpack.c.h.b16 %v1729
        %v1819 = vunpack.c.l.b16 %v1730
        %v1820 = vunpack.c.h.b16 %v1730
        %v1821 = vunpack.c.l.b16 %v1731
        %v1822 = vunpack.c.h.b16 %v1731
        %v1823 = vunpack.c.l.b16 %v1732
        %v1824 = vunpack.c.h.b16 %v1732
        %v1825 = vunpack.c.l.b16 %v1733
        %v1826 = vunpack.c.h.b16 %v1733
        %v1827 = vunpack.c.l.b16 %v1734
        %v1828 = vunpack.c.h.b16 %v1734
        %v1829 = vunpack.c.l.b16 %v1735
        %v1830 = vunpack.c.h.b16 %v1735
        %v1831 = vunpack.c.l.b16 %v1736
        %v1832 = vunpack.c.h.b16 %v1736
        %v1833 = vpack.c.b16 %v1773, %v1769
        %v1834 = vpack.c.b16 %v1774, %v1770
        %v1835 = vpack.c.b16 %v1775, %v1771
        %v1836 = vpack.c.b16 %v1776, %v1772
        %v1837 = vpack.c.b16 %v1781, %v1777
        %v1838 = vpack.c.b16 %v1782, %v1778
        %v1839 = vpack.c.b16 %v1783, %v1779
        %v1840 = vpack.c.b16 %v1784, %v1780
        %v1841 = vpack.c.b16 %v1789, %v1785
        %v1842 = vpack.c.b16 %v1790, %v1786
        %v1843 = vpack.c.b16 %v1791, %v1787
        %v1844 = vpack.c.b16 %v1792, %v1788
        %v1845 = vpack.c.b16 %v1797, %v1793
        %v1846 = vpack.c.b16 %v1798, %v1794
        %v1847 = vpack.c.b16 %v1799, %v1795
        %v1848 = vpack.c.b16 %v1800, %v1796
        %v1849 = vpack.c.b16 %v1805, %v1801
        %v1850 = vpack.c.b16 %v1806, %v1802
        %v1851 = vpack.c.b16 %v1807, %v1803
        %v1852 = vpack.c.b16 %v1808, %v1804
        %v1853 = vpack.c.b16 %v1813, %v1809
        %v1854 = vpack.c.b16 %v1814, %v1810
        %v1855 = vpack.c.b16 %v1815, %v1811
        %v1856 = vpack.c.b16 %v1816, %v1812
        %v1857 = vpack.c.b16 %v1821, %v1817
        %v1858 = vpack.c.b16 %v1822, %v1818
        %v1859 = vpack.c.b16 %v1823, %v1819
        %v1860 = vpack.c.b16 %v1824, %v1820
        %v1861 = vpack.c.b16 %v1829, %v1825
        %v1862 = vpack.c.b16 %v1830, %v1826
        %v1863 = vpack.c.b16 %v1831, %v1827
        %v1864 = vpack.c.b16 %v1832, %v1828
        %1897 = vmatprep.subr.bf16.mxu0 %v1834
        %1898 = vmatpush1.bf16.msra.mxu0 %v1833
        %1899 = vmatprep.subr.bf16.mxu0 %v1838
        %1900 = vmatpush1.bf16.msra.mxu0 %v1837
        %1901 = vmatprep.subr.bf16.mxu0 %v1842
        %1902 = vmatpush1.bf16.msra.mxu0 %v1841
        %1903 = vmatprep.subr.bf16.mxu0 %v1846
        %1904 = vmatpush1.bf16.msra.mxu0 %v1845
        %1905 = vmatprep.subr.bf16.mxu0 %v1850
        %1906 = vmatpush1.bf16.msra.mxu0 %v1849
        %1907 = vmatprep.subr.bf16.mxu0 %v1854
        %1908 = vmatpush1.bf16.msra.mxu0 %v1853
        %1909 = vmatprep.subr.bf16.mxu0 %v1858
        %1910 = vmatpush1.bf16.msra.mxu0 %v1857
        %1911 = vmatprep.subr.bf16.mxu0 %v1862
        %1912 = vmatpush1.bf16.msra.mxu0 %v1861
        %1913 = vmatprep.subr.bf16.mxu0 0
        %1914 = vmatpush1.bf16.msra.mxu0 0
        %1915 = vmatprep.subr.bf16.mxu0 0
        %1916 = vmatpush1.bf16.msra.mxu0 0
        %1917 = vmatprep.subr.bf16.mxu0 0
        %1918 = vmatpush1.bf16.msra.mxu0 0
        %1919 = vmatprep.subr.bf16.mxu0 0
        %1920 = vmatpush1.bf16.msra.mxu0 0
        %1921 = vmatprep.subr.bf16.mxu0 0
        %1922 = vmatpush1.bf16.msra.mxu0 0
        %1923 = vmatprep.subr.bf16.mxu0 0
        %1924 = vmatpush1.bf16.msra.mxu0 0
        %1925 = vmatprep.subr.bf16.mxu0 0
        %1926 = vmatpush1.bf16.msra.mxu0 0
        %1927 = vmatprep.subr.bf16.mxu0 0
        %1928 = vmatpush1.bf16.msra.mxu0 0
        %1929 = vmatprep.mubr.bf16.mxu0 0
        %1930 = vmatmul.mubr.bf16.gmra.mrb[0].mxu0 %v875
        %v1931 = vpop.f32.mrb[0].mxu0
        %v1932 = vadd.f32 0.0, %v1931
        %v1933 = vpop.f32.mrb[0].mxu0
        %v1934 = vadd.f32 0.0, %v1933
        %v1935 = vpop.f32.mrb[0].mxu0
        %v1936 = vadd.f32 0.0, %v1935
        %v1937 = vpop.f32.mrb[0].mxu0
        %v1938 = vadd.f32 0.0, %v1937
        %1939 = vdwg.mxu0
        %1940 = vmatprep.subr.bf16.mxu0 %v1836
        %1941 = vmatpush1.bf16.msra.mxu0 %v1835
        %1942 = vmatprep.subr.bf16.mxu0 %v1840
        %1943 = vmatpush1.bf16.msra.mxu0 %v1839
        %1944 = vmatprep.subr.bf16.mxu0 %v1844
        %1945 = vmatpush1.bf16.msra.mxu0 %v1843
        %1946 = vmatprep.subr.bf16.mxu0 %v1848
        %1947 = vmatpush1.bf16.msra.mxu0 %v1847
        %1948 = vmatprep.subr.bf16.mxu0 %v1852
        %1949 = vmatpush1.bf16.msra.mxu0 %v1851
        %1950 = vmatprep.subr.bf16.mxu0 %v1856
        %1951 = vmatpush1.bf16.msra.mxu0 %v1855
        %1952 = vmatprep.subr.bf16.mxu0 %v1860
        %1953 = vmatpush1.bf16.msra.mxu0 %v1859
        %1954 = vmatprep.subr.bf16.mxu0 %v1864
        %1955 = vmatpush1.bf16.msra.mxu0 %v1863
        %1956 = vmatprep.subr.bf16.mxu0 0
        %1957 = vmatpush1.bf16.msra.mxu0 0
        %1958 = vmatprep.subr.bf16.mxu0 0
        %1959 = vmatpush1.bf16.msra.mxu0 0
        %1960 = vmatprep.subr.bf16.mxu0 0
        %1961 = vmatpush1.bf16.msra.mxu0 0
        %1962 = vmatprep.subr.bf16.mxu0 0
        %1963 = vmatpush1.bf16.msra.mxu0 0
        %1964 = vmatprep.subr.bf16.mxu0 0
        %1965 = vmatpush1.bf16.msra.mxu0 0
        %1966 = vmatprep.subr.bf16.mxu0 0
        %1967 = vmatpush1.bf16.msra.mxu0 0
        %1968 = vmatprep.subr.bf16.mxu0 0
        %1969 = vmatpush1.bf16.msra.mxu0 0
        %1970 = vmatprep.subr.bf16.mxu0 0
        %1971 = vmatpush1.bf16.msra.mxu0 0
        %1972 = vmatprep.mubr.bf16.mxu0 0
        %1973 = vmatmul.mubr.bf16.gmra.mrb[0].mxu0 %v875
        %v1974 = vpop.f32.mrb[0].mxu0
        %v1975 = vadd.f32 0.0, %v1974
        %v1976 = vpop.f32.mrb[0].mxu0
        %v1977 = vadd.f32 0.0, %v1976
        %v1978 = vpop.f32.mrb[0].mxu0
        %v1979 = vadd.f32 0.0, %v1978
        %v1980 = vpop.f32.mrb[0].mxu0
        %v1981 = vadd.f32 0.0, %v1980
        %1982 = vdwg.mxu0
        %v1983 = vadd.f32 %v1932, 0.0
        %v1984 = vadd.f32 %v1936, 0.0
        %v1985 = vadd.f32 %v1699, %v1934
        %v1986 = vadd.f32 %v1700, %v1938
        %v1987 = vadd.f32 %v1701, %v1975
        %v1988 = vadd.f32 %v1702, %v1979
        %v1989 = vadd.f32 %v1703, %v1977
        %v1990 = vadd.f32 %v1704, %v1981
        %v1991 = vld [vmem:[#allocation2 + $0x8] sm:$0xff]
        %v1992 = vld [vmem:[#allocation2 + $0x10] sm:$0x1]
        %v1993 = vld [vmem:[#allocation17] sm:$0xff]
        %v1994 = vld [vmem:[#allocation17 + $0x8] sm:$0xf]
        %v1995 = vld [vmem:[#allocation17 + $0xc] sm:$0xff]
        %v1996 = vld [vmem:[#allocation17 + $0x14] sm:$0xf]
        %v1997 = vld [vmem:[#allocation17 + $0x18] sm:$0xff]
        %v1998 = vld [vmem:[#allocation17 + $0x20] sm:$0xf]
        %v1999 = vld [vmem:[#allocation17 + $0x24] sm:$0xff]
        %v2000 = vld [vmem:[#allocation17 + $0x2c] sm:$0xf]
        %v2001 = vld [vmem:[#allocation17 + $0x30] sm:$0xff]
        %v2002 = vld [vmem:[#allocation17 + $0x38] sm:$0xf]
        %v2003 = vld [vmem:[#allocation17 + $0x3c] sm:$0xff]
        %v2004 = vld [vmem:[#allocation17 + $0x44] sm:$0xf]
        %v2005 = vld [vmem:[#allocation17 + $0x48] sm:$0xff]
        %v2006 = vld [vmem:[#allocation17 + $0x50] sm:$0xf]
        %v2007 = vld [vmem:[#allocation17 + $0x54] sm:$0xff]
        %v2008 = vld [vmem:[#allocation17 + $0x5c] sm:$0xf]
        %v2009 = vld [vmem:[#allocation17 + $0x60] sm:$0xff]
        %v2010 = vld [vmem:[#allocation17 + $0x68] sm:$0xf]
        %v2011 = vld [vmem:[#allocation17 + $0x6c] sm:$0xff]
        %v2012 = vld [vmem:[#allocation17 + $0x74] sm:$0xf]
        %v2013 = vld [vmem:[#allocation17 + $0x78] sm:$0xff]
        %v2014 = vld [vmem:[#allocation17 + $0x80] sm:$0xf]
        %v2015 = vld [vmem:[#allocation17 + $0x84] sm:$0xff]
        %v2016 = vld [vmem:[#allocation17 + $0x8c] sm:$0xf]
        %v2017 = vld [vmem:[#allocation17 + $0x90] sm:$0xff]
        %v2018 = vld [vmem:[#allocation17 + $0x98] sm:$0xf]
        %v2019 = vld [vmem:[#allocation17 + $0x9c] sm:$0xff]
        %v2020 = vld [vmem:[#allocation17 + $0xa4] sm:$0xf]
        %v2021 = vld [vmem:[#allocation17 + $0xa8] sm:$0xff]
        %v2022 = vld [vmem:[#allocation17 + $0xb0] sm:$0xf]
        %v2023 = vld [vmem:[#allocation17 + $0xb4] sm:$0xff]
        %v2024 = vld [vmem:[#allocation17 + $0xbc] sm:$0xf]
        %vm2025 = vsmask.f32 7424
        %v2027 = vshrl.u32 %v1991, 16
        %v2029 = vshll.u32 %v1991, 16
        %v2031 = vrot.slane %v2029, 1
        %v2032 = vor.u32 %v2027, %v2031
        %v2034 = vshll.u32 %v1992, 16
        %v2036 = vrot.slane %v2034, 1
        %v2037 = vsel %vm2025, %v2032, %v2036
        %v2071 = vunpack.c.l.b16 %v1993
        %v2072 = vunpack.c.h.b16 %v1993
        %v2073 = vunpack.c.l.b16 %v1994
        %v2074 = vunpack.c.l.b16 %v1995
        %v2075 = vunpack.c.h.b16 %v1995
        %v2076 = vunpack.c.l.b16 %v1996
        %v2077 = vunpack.c.l.b16 %v1997
        %v2078 = vunpack.c.h.b16 %v1997
        %v2079 = vunpack.c.l.b16 %v1998
        %v2080 = vunpack.c.l.b16 %v1999
        %v2081 = vunpack.c.h.b16 %v1999
        %v2082 = vunpack.c.l.b16 %v2000
        %v2083 = vunpack.c.l.b16 %v2001
        %v2084 = vunpack.c.h.b16 %v2001
        %v2085 = vunpack.c.l.b16 %v2002
        %v2086 = vunpack.c.l.b16 %v2003
        %v2087 = vunpack.c.h.b16 %v2003
        %v2088 = vunpack.c.l.b16 %v2004
        %v2089 = vunpack.c.l.b16 %v2005
        %v2090 = vunpack.c.h.b16 %v2005
        %v2091 = vunpack.c.l.b16 %v2006
        %v2092 = vunpack.c.l.b16 %v2007
        %v2093 = vunpack.c.h.b16 %v2007
        %v2094 = vunpack.c.l.b16 %v2008
        %v2095 = vunpack.c.l.b16 %v2009
        %v2096 = vunpack.c.h.b16 %v2009
        %v2097 = vunpack.c.l.b16 %v2010
        %v2098 = vunpack.c.l.b16 %v2011
        %v2099 = vunpack.c.h.b16 %v2011
        %v2100 = vunpack.c.l.b16 %v2012
        %v2101 = vunpack.c.l.b16 %v2013
        %v2102 = vunpack.c.h.b16 %v2013
        %v2103 = vunpack.c.l.b16 %v2014
        %v2104 = vunpack.c.l.b16 %v2015
        %v2105 = vunpack.c.h.b16 %v2015
        %v2106 = vunpack.c.l.b16 %v2016
        %v2107 = vunpack.c.l.b16 %v2017
        %v2108 = vunpack.c.h.b16 %v2017
        %v2109 = vunpack.c.l.b16 %v2018
        %v2110 = vunpack.c.l.b16 %v2019
        %v2111 = vunpack.c.h.b16 %v2019
        %v2112 = vunpack.c.l.b16 %v2020
        %v2113 = vunpack.c.l.b16 %v2021
        %v2114 = vunpack.c.h.b16 %v2021
        %v2115 = vunpack.c.l.b16 %v2022
        %v2116 = vunpack.c.l.b16 %v2023
        %v2117 = vunpack.c.h.b16 %v2023
        %v2118 = vunpack.c.l.b16 %v2024
        %v2119 = vpack.c.b16 %v2074, %v2071
        %v2120 = vpack.c.b16 %v2075, %v2072
        %v2121 = vpack.c.b16 %v2076, %v2073
        %v2122 = vpack.c.b16 %v2080, %v2077
        %v2123 = vpack.c.b16 %v2081, %v2078
        %v2124 = vpack.c.b16 %v2082, %v2079
        %v2125 = vpack.c.b16 %v2086, %v2083
        %v2126 = vpack.c.b16 %v2087, %v2084
        %v2127 = vpack.c.b16 %v2088, %v2085
        %v2128 = vpack.c.b16 %v2092, %v2089
        %v2129 = vpack.c.b16 %v2093, %v2090
        %v2130 = vpack.c.b16 %v2094, %v2091
        %v2131 = vpack.c.b16 %v2098, %v2095
        %v2132 = vpack.c.b16 %v2099, %v2096
        %v2133 = vpack.c.b16 %v2100, %v2097
        %v2134 = vpack.c.b16 %v2104, %v2101
        %v2135 = vpack.c.b16 %v2105, %v2102
        %v2136 = vpack.c.b16 %v2106, %v2103
        %v2137 = vpack.c.b16 %v2110, %v2107
        %v2138 = vpack.c.b16 %v2111, %v2108
        %v2139 = vpack.c.b16 %v2112, %v2109
        %v2140 = vpack.c.b16 %v2116, %v2113
        %v2141 = vpack.c.b16 %v2117, %v2114
        %v2142 = vpack.c.b16 %v2118, %v2115
        %2167 = vmatprep.subr.bf16.mxu0 %v2120
        %2168 = vmatpush1.bf16.msra.mxu0 %v2119
        %2169 = vmatprep.subr.bf16.mxu0 %v2123
        %2170 = vmatpush1.bf16.msra.mxu0 %v2122
        %2171 = vmatprep.subr.bf16.mxu0 %v2126
        %2172 = vmatpush1.bf16.msra.mxu0 %v2125
        %2173 = vmatprep.subr.bf16.mxu0 %v2129
        %2174 = vmatpush1.bf16.msra.mxu0 %v2128
        %2175 = vmatprep.subr.bf16.mxu0 %v2132
        %2176 = vmatpush1.bf16.msra.mxu0 %v2131
        %2177 = vmatprep.subr.bf16.mxu0 %v2135
        %2178 = vmatpush1.bf16.msra.mxu0 %v2134
        %2179 = vmatprep.subr.bf16.mxu0 %v2138
        %2180 = vmatpush1.bf16.msra.mxu0 %v2137
        %2181 = vmatprep.subr.bf16.mxu0 %v2141
        %2182 = vmatpush1.bf16.msra.mxu0 %v2140
        %2183 = vmatprep.subr.bf16.mxu0 0
        %2184 = vmatpush1.bf16.msra.mxu0 0
        %2185 = vmatprep.subr.bf16.mxu0 0
        %2186 = vmatpush1.bf16.msra.mxu0 0
        %2187 = vmatprep.subr.bf16.mxu0 0
        %2188 = vmatpush1.bf16.msra.mxu0 0
        %2189 = vmatprep.subr.bf16.mxu0 0
        %2190 = vmatpush1.bf16.msra.mxu0 0
        %2191 = vmatprep.subr.bf16.mxu0 0
        %2192 = vmatpush1.bf16.msra.mxu0 0
        %2193 = vmatprep.subr.bf16.mxu0 0
        %2194 = vmatpush1.bf16.msra.mxu0 0
        %2195 = vmatprep.subr.bf16.mxu0 0
        %2196 = vmatpush1.bf16.msra.mxu0 0
        %2197 = vmatprep.subr.bf16.mxu0 0
        %2198 = vmatpush1.bf16.msra.mxu0 0
        %2199 = vmatprep.mubr.bf16.mxu0 0
        %2200 = vmatmul.mubr.bf16.gmra.mrb[0].mxu0 %v2037
        %v2201 = vpop.f32.mrb[0].mxu0
        %v2202 = vadd.f32 0.0, %v2201
        %v2203 = vpop.f32.mrb[0].mxu0
        %v2204 = vadd.f32 0.0, %v2203
        %v2205 = vpop.f32.mrb[0].mxu0
        %v2206 = vadd.f32 0.0, %v2205
        %v2207 = vpop.f32.mrb[0].mxu0
        %v2208 = vadd.f32 0.0, %v2207
        %2209 = vdwg.mxu0
        %2210 = vmatprep.subr.bf16.mxu0 0
        %2211 = vmatpush1.bf16.msra.mxu0 %v2121
        %2212 = vmatprep.subr.bf16.mxu0 0
        %2213 = vmatpush1.bf16.msra.mxu0 %v2124
        %2214 = vmatprep.subr.bf16.mxu0 0
        %2215 = vmatpush1.bf16.msra.mxu0 %v2127
        %2216 = vmatprep.subr.bf16.mxu0 0
        %2217 = vmatpush1.bf16.msra.mxu0 %v2130
        %2218 = vmatprep.subr.bf16.mxu0 0
        %2219 = vmatpush1.bf16.msra.mxu0 %v2133
        %2220 = vmatprep.subr.bf16.mxu0 0
        %2221 = vmatpush1.bf16.msra.mxu0 %v2136
        %2222 = vmatprep.subr.bf16.mxu0 0
        %2223 = vmatpush1.bf16.msra.mxu0 %v2139
        %2224 = vmatprep.subr.bf16.mxu0 0
        %2225 = vmatpush1.bf16.msra.mxu0 %v2142
        %2226 = vmatprep.subr.bf16.mxu0 0
        %2227 = vmatpush1.bf16.msra.mxu0 0
        %2228 = vmatprep.subr.bf16.mxu0 0
        %2229 = vmatpush1.bf16.msra.mxu0 0
        %2230 = vmatprep.subr.bf16.mxu0 0
        %2231 = vmatpush1.bf16.msra.mxu0 0
        %2232 = vmatprep.subr.bf16.mxu0 0
        %2233 = vmatpush1.bf16.msra.mxu0 0
        %2234 = vmatprep.subr.bf16.mxu0 0
        %2235 = vmatpush1.bf16.msra.mxu0 0
        %2236 = vmatprep.subr.bf16.mxu0 0
        %2237 = vmatpush1.bf16.msra.mxu0 0
        %2238 = vmatprep.subr.bf16.mxu0 0
        %2239 = vmatpush1.bf16.msra.mxu0 0
        %2240 = vmatprep.subr.bf16.mxu0 0
        %2241 = vmatpush1.bf16.msra.mxu0 0
        %2242 = vmatprep.mubr.bf16.mxu0 0
        %2243 = vmatmul.mubr.bf16.gmra.mrb[0].mxu0 %v2037
        %v2244 = vpop.f32.mrb[0].mxu0
        %v2245 = vadd.f32 0.0, %v2244
        %v2246 = vpop.f32.mrb[0].mxu0
        %v2247 = vpop.f32.mrb[0].mxu0
        %v2248 = vadd.f32 0.0, %v2247
        %v2249 = vpop.f32.mrb[0].mxu0
        %2250 = vdwg.mxu0
        %v2251 = vadd.f32 %v1985, %v2202
        %v2252 = vadd.f32 %v1986, %v2206
        %v2253 = vadd.f32 %v1987, %v2204
        %v2254 = vadd.f32 %v1988, %v2208
        %v2255 = vadd.f32 %v1989, %v2245
        %v2256 = vadd.f32 %v1990, %v2248
        %v2257 = vld [vmem:[#allocation2 + $0x8] sm:$0xfe]
        %v2258 = vld [vmem:[#allocation18] sm:$0xff]
        %v2259 = vld [vmem:[#allocation18 + $0x8] sm:$0xff]
        %v2260 = vld [vmem:[#allocation18 + $0x10] sm:$0xff]
        %v2261 = vld [vmem:[#allocation18 + $0x18] sm:$0xff]
        %v2262 = vld [vmem:[#allocation18 + $0x20] sm:$0xff]
        %v2263 = vld [vmem:[#allocation18 + $0x28] sm:$0xff]
        %v2264 = vld [vmem:[#allocation18 + $0x30] sm:$0xff]
        %v2265 = vld [vmem:[#allocation18 + $0x38] sm:$0xff]
        %v2266 = vld [vmem:[#allocation18 + $0x40] sm:$0xff]
        %v2267 = vld [vmem:[#allocation18 + $0x48] sm:$0xff]
        %v2268 = vld [vmem:[#allocation18 + $0x50] sm:$0xff]
        %v2269 = vld [vmem:[#allocation18 + $0x58] sm:$0xff]
        %v2270 = vld [vmem:[#allocation18 + $0x60] sm:$0xff]
        %v2271 = vld [vmem:[#allocation18 + $0x68] sm:$0xff]
        %v2272 = vld [vmem:[#allocation18 + $0x70] sm:$0xff]
        %v2273 = vld [vmem:[#allocation18 + $0x78] sm:$0xff]
        %vm2276 = vcmask 1046528
        %v2277 = vrot.slane %v2257, 1
        %v2278 = vrot.slane %v1992, 1
        %v2279 = vsel %vm2276, %v2277, %v2278
        %v2297 = vunpack.c.l.b16 %v2258
        %v2298 = vunpack.c.h.b16 %v2258
        %v2299 = vunpack.c.l.b16 %v2259
        %v2300 = vunpack.c.h.b16 %v2259
        %v2301 = vunpack.c.l.b16 %v2260
        %v2302 = vunpack.c.h.b16 %v2260
        %v2303 = vunpack.c.l.b16 %v2261
        %v2304 = vunpack.c.h.b16 %v2261
        %v2305 = vunpack.c.l.b16 %v2262
        %v2306 = vunpack.c.h.b16 %v2262
        %v2307 = vunpack.c.l.b16 %v2263
        %v2308 = vunpack.c.h.b16 %v2263
        %v2309 = vunpack.c.l.b16 %v2264
        %v2310 = vunpack.c.h.b16 %v2264
        %v2311 = vunpack.c.l.b16 %v2265
        %v2312 = vunpack.c.h.b16 %v2265
        %v2313 = vunpack.c.l.b16 %v2266
        %v2314 = vunpack.c.h.b16 %v2266
        %v2315 = vunpack.c.l.b16 %v2267
        %v2316 = vunpack.c.h.b16 %v2267
        %v2317 = vunpack.c.l.b16 %v2268
        %v2318 = vunpack.c.h.b16 %v2268
        %v2319 = vunpack.c.l.b16 %v2269
        %v2320 = vunpack.c.h.b16 %v2269
        %v2321 = vunpack.c.l.b16 %v2270
        %v2322 = vunpack.c.h.b16 %v2270
        %v2323 = vunpack.c.l.b16 %v2271
        %v2324 = vunpack.c.h.b16 %v2271
        %v2325 = vunpack.c.l.b16 %v2272
        %v2326 = vunpack.c.h.b16 %v2272
        %v2327 = vunpack.c.l.b16 %v2273
        %v2328 = vunpack.c.h.b16 %v2273
        %v2329 = vpack.c.b16 %v2299, %v2297
        %v2330 = vpack.c.b16 %v2300, %v2298
        %v2331 = vpack.c.b16 %v2303, %v2301
        %v2332 = vpack.c.b16 %v2304, %v2302
        %v2333 = vpack.c.b16 %v2307, %v2305
        %v2334 = vpack.c.b16 %v2308, %v2306
        %v2335 = vpack.c.b16 %v2311, %v2309
        %v2336 = vpack.c.b16 %v2312, %v2310
        %v2337 = vpack.c.b16 %v2315, %v2313
        %v2338 = vpack.c.b16 %v2316, %v2314
        %v2339 = vpack.c.b16 %v2319, %v2317
        %v2340 = vpack.c.b16 %v2320, %v2318
        %v2341 = vpack.c.b16 %v2323, %v2321
        %v2342 = vpack.c.b16 %v2324, %v2322
        %v2343 = vpack.c.b16 %v2327, %v2325
        %v2344 = vpack.c.b16 %v2328, %v2326
        %2361 = vmatprep.subr.bf16.mxu0 %v2330
        %2362 = vmatpush1.bf16.msra.mxu0 %v2329
        %2363 = vmatprep.subr.bf16.mxu0 %v2332
        %2364 = vmatpush1.bf16.msra.mxu0 %v2331
        %2365 = vmatprep.subr.bf16.mxu0 %v2334
        %2366 = vmatpush1.bf16.msra.mxu0 %v2333
        %2367 = vmatprep.subr.bf16.mxu0 %v2336
        %2368 = vmatpush1.bf16.msra.mxu0 %v2335
        %2369 = vmatprep.subr.bf16.mxu0 %v2338
        %2370 = vmatpush1.bf16.msra.mxu0 %v2337
        %2371 = vmatprep.subr.bf16.mxu0 %v2340
        %2372 = vmatpush1.bf16.msra.mxu0 %v2339
        %2373 = vmatprep.subr.bf16.mxu0 %v2342
        %2374 = vmatpush1.bf16.msra.mxu0 %v2341
        %2375 = vmatprep.subr.bf16.mxu0 %v2344
        %2376 = vmatpush1.bf16.msra.mxu0 %v2343
        %2377 = vmatprep.subr.bf16.mxu0 0
        %2378 = vmatpush1.bf16.msra.mxu0 0
        %2379 = vmatprep.subr.bf16.mxu0 0
        %2380 = vmatpush1.bf16.msra.mxu0 0
        %2381 = vmatprep.subr.bf16.mxu0 0
        %2382 = vmatpush1.bf16.msra.mxu0 0
        %2383 = vmatprep.subr.bf16.mxu0 0
        %2384 = vmatpush1.bf16.msra.mxu0 0
        %2385 = vmatprep.subr.bf16.mxu0 0
        %2386 = vmatpush1.bf16.msra.mxu0 0
        %2387 = vmatprep.subr.bf16.mxu0 0
        %2388 = vmatpush1.bf16.msra.mxu0 0
        %2389 = vmatprep.subr.bf16.mxu0 0
        %2390 = vmatpush1.bf16.msra.mxu0 0
        %2391 = vmatprep.subr.bf16.mxu0 0
        %2392 = vmatpush1.bf16.msra.mxu0 0
        %2393 = vmatprep.mubr.bf16.mxu0 0
        %2394 = vmatmul.mubr.bf16.gmra.mrb[0].mxu0 %v2279
        %v2395 = vpop.f32.mrb[0].mxu0
        %v2396 = vadd.f32 0.0, %v2395
        %v2397 = vpop.f32.mrb[0].mxu0
        %v2398 = vadd.f32 0.0, %v2397
        %v2399 = vpop.f32.mrb[0].mxu0
        %v2400 = vadd.f32 0.0, %v2399
        %v2401 = vpop.f32.mrb[0].mxu0
        %v2402 = vadd.f32 0.0, %v2401
        %2403 = vdwg.mxu0
        %v2404 = vadd.f32 %v2253, %v2396
        %v2405 = vadd.f32 %v2254, %v2400
        %v2406 = vadd.f32 %v2255, %v2398
        %v2407 = vadd.f32 %v2256, %v2402
        %v2408 = vld [vmem:[#allocation2 + $0x10] sm:$0x3]
        %v2409 = vld [vmem:[#allocation20] sm:$0xff]
        %v2410 = vld [vmem:[#allocation20 + $0x8] sm:$0xff]
        %v2411 = vld [vmem:[#allocation20 + $0x10] sm:$0xff]
        %v2412 = vld [vmem:[#allocation20 + $0x18] sm:$0xff]
        %v2413 = vld [vmem:[#allocation20 + $0x20] sm:$0xff]
        %v2414 = vld [vmem:[#allocation20 + $0x28] sm:$0xff]
        %v2415 = vld [vmem:[#allocation20 + $0x30] sm:$0xff]
        %v2416 = vld [vmem:[#allocation20 + $0x38] sm:$0xff]
        %v2417 = vld [vmem:[#allocation20 + $0x40] sm:$0xff]
        %v2418 = vld [vmem:[#allocation20 + $0x48] sm:$0xff]
        %v2419 = vld [vmem:[#allocation20 + $0x50] sm:$0xff]
        %v2420 = vld [vmem:[#allocation20 + $0x58] sm:$0xff]
        %v2421 = vld [vmem:[#allocation20 + $0x60] sm:$0xff]
        %v2422 = vld [vmem:[#allocation20 + $0x68] sm:$0xff]
        %v2423 = vld [vmem:[#allocation20 + $0x70] sm:$0xff]
        %v2424 = vld [vmem:[#allocation20 + $0x78] sm:$0xff]
        %vm2425 = vsmask.f32 6400
        %v2427 = vshrl.u32 %v2257, 16
        %v2429 = vrot.slane %v2427, 1
        %v2430 = vshll.u32 %v2257, 16
        %v2432 = vrot.slane %v2430, 2
        %v2433 = vor.u32 %v2429, %v2432
        %v2435 = vshrl.u32 %v2408, 16
        %v2437 = vrot.slane %v2435, 1
        %v2438 = vshll.u32 %v2408, 16
        %v2440 = vrot.slane %v2438, 2
        %v2441 = vor.u32 %v2437, %v2440
        %v2442 = vsel %vm2425, %v2433, %v2441
        %v2460 = vunpack.c.l.b16 %v2409
        %v2461 = vunpack.c.h.b16 %v2409
        %v2462 = vunpack.c.l.b16 %v2410
        %v2463 = vunpack.c.h.b16 %v2410
        %v2464 = vunpack.c.l.b16 %v2411
        %v2465 = vunpack.c.h.b16 %v2411
        %v2466 = vunpack.c.l.b16 %v2412
        %v2467 = vunpack.c.h.b16 %v2412
        %v2468 = vunpack.c.l.b16 %v2413
        %v2469 = vunpack.c.h.b16 %v2413
        %v2470 = vunpack.c.l.b16 %v2414
        %v2471 = vunpack.c.h.b16 %v2414
        %v2472 = vunpack.c.l.b16 %v2415
        %v2473 = vunpack.c.h.b16 %v2415
        %v2474 = vunpack.c.l.b16 %v2416
        %v2475 = vunpack.c.h.b16 %v2416
        %v2476 = vunpack.c.l.b16 %v2417
        %v2477 = vunpack.c.h.b16 %v2417
        %v2478 = vunpack.c.l.b16 %v2418
        %v2479 = vunpack.c.h.b16 %v2418
        %v2480 = vunpack.c.l.b16 %v2419
        %v2481 = vunpack.c.h.b16 %v2419
        %v2482 = vunpack.c.l.b16 %v2420
        %v2483 = vunpack.c.h.b16 %v2420
        %v2484 = vunpack.c.l.b16 %v2421
        %v2485 = vunpack.c.h.b16 %v2421
        %v2486 = vunpack.c.l.b16 %v2422
        %v2487 = vunpack.c.h.b16 %v2422
        %v2488 = vunpack.c.l.b16 %v2423
        %v2489 = vunpack.c.h.b16 %v2423
        %v2490 = vunpack.c.l.b16 %v2424
        %v2491 = vunpack.c.h.b16 %v2424
        %v2492 = vpack.c.b16 %v2462, %v2460
        %v2493 = vpack.c.b16 %v2463, %v2461
        %v2494 = vpack.c.b16 %v2466, %v2464
        %v2495 = vpack.c.b16 %v2467, %v2465
        %v2496 = vpack.c.b16 %v2470, %v2468
        %v2497 = vpack.c.b16 %v2471, %v2469
        %v2498 = vpack.c.b16 %v2474, %v2472
        %v2499 = vpack.c.b16 %v2475, %v2473
        %v2500 = vpack.c.b16 %v2478, %v2476
        %v2501 = vpack.c.b16 %v2479, %v2477
        %v2502 = vpack.c.b16 %v2482, %v2480
        %v2503 = vpack.c.b16 %v2483, %v2481
        %v2504 = vpack.c.b16 %v2486, %v2484
        %v2505 = vpack.c.b16 %v2487, %v2485
        %v2506 = vpack.c.b16 %v2490, %v2488
        %v2507 = vpack.c.b16 %v2491, %v2489
        %2524 = vmatprep.subr.bf16.mxu0 %v2493
        %2525 = vmatpush1.bf16.msra.mxu0 %v2492
        %2526 = vmatprep.subr.bf16.mxu0 %v2495
        %2527 = vmatpush1.bf16.msra.mxu0 %v2494
        %2528 = vmatprep.subr.bf16.mxu0 %v2497
        %2529 = vmatpush1.bf16.msra.mxu0 %v2496
        %2530 = vmatprep.subr.bf16.mxu0 %v2499
        %2531 = vmatpush1.bf16.msra.mxu0 %v2498
        %2532 = vmatprep.subr.bf16.mxu0 %v2501
        %2533 = vmatpush1.bf16.msra.mxu0 %v2500
        %2534 = vmatprep.subr.bf16.mxu0 %v2503
        %2535 = vmatpush1.bf16.msra.mxu0 %v2502
        %2536 = vmatprep.subr.bf16.mxu0 %v2505
        %2537 = vmatpush1.bf16.msra.mxu0 %v2504
        %2538 = vmatprep.subr.bf16.mxu0 %v2507
        %2539 = vmatpush1.bf16.msra.mxu0 %v2506
        %2540 = vmatprep.subr.bf16.mxu0 0
        %2541 = vmatpush1.bf16.msra.mxu0 0
        %2542 = vmatprep.subr.bf16.mxu0 0
        %2543 = vmatpush1.bf16.msra.mxu0 0
        %2544 = vmatprep.subr.bf16.mxu0 0
        %2545 = vmatpush1.bf16.msra.mxu0 0
        %2546 = vmatprep.subr.bf16.mxu0 0
        %2547 = vmatpush1.bf16.msra.mxu0 0
        %2548 = vmatprep.subr.bf16.mxu0 0
        %2549 = vmatpush1.bf16.msra.mxu0 0
        %2550 = vmatprep.subr.bf16.mxu0 0
        %2551 = vmatpush1.bf16.msra.mxu0 0
        %2552 = vmatprep.subr.bf16.mxu0 0
        %2553 = vmatpush1.bf16.msra.mxu0 0
        %2554 = vmatprep.subr.bf16.mxu0 0
        %2555 = vmatpush1.bf16.msra.mxu0 0
        %2556 = vmatprep.mubr.bf16.mxu0 0
        %2557 = vmatmul.mubr.bf16.gmra.mrb[0].mxu0 %v2442
        %v2558 = vpop.f32.mrb[0].mxu0
        %v2559 = vadd.f32 0.0, %v2558
        %v2560 = vpop.f32.mrb[0].mxu0
        %v2561 = vadd.f32 0.0, %v2560
        %v2562 = vpop.f32.mrb[0].mxu0
        %v2563 = vadd.f32 0.0, %v2562
        %v2564 = vpop.f32.mrb[0].mxu0
        %v2565 = vadd.f32 0.0, %v2564
        %2566 = vdwg.mxu0
        %v2567 = vadd.f32 %v2404, %v2559
        %v2568 = vadd.f32 %v2405, %v2563
        %v2569 = vadd.f32 %v2406, %v2561
        %v2570 = vadd.f32 %v2407, %v2565
        %v2571 = vld [vmem:[#allocation2 + $0x8] sm:$0xfc]
        %v2572 = vld [vmem:[#allocation21] sm:$0xf]
        %v2573 = vld [vmem:[#allocation21 + $0x4] sm:$0xf]
        %v2574 = vld [vmem:[#allocation21 + $0x8] sm:$0xf]
        %v2575 = vld [vmem:[#allocation21 + $0xc] sm:$0xf]
        %v2576 = vld [vmem:[#allocation21 + $0x10] sm:$0xf]
        %v2577 = vld [vmem:[#allocation21 + $0x14] sm:$0xf]
        %v2578 = vld [vmem:[#allocation21 + $0x18] sm:$0xf]
        %v2579 = vld [vmem:[#allocation21 + $0x1c] sm:$0xf]
        %v2580 = vld [vmem:[#allocation21 + $0x20] sm:$0xf]
        %v2581 = vld [vmem:[#allocation21 + $0x24] sm:$0xf]
        %v2582 = vld [vmem:[#allocation21 + $0x28] sm:$0xf]
        %v2583 = vld [vmem:[#allocation21 + $0x2c] sm:$0xf]
        %v2584 = vld [vmem:[#allocation21 + $0x30] sm:$0xf]
        %v2585 = vld [vmem:[#allocation21 + $0x34] sm:$0xf]
        %v2586 = vld [vmem:[#allocation21 + $0x38] sm:$0xf]
        %v2587 = vld [vmem:[#allocation21 + $0x3c] sm:$0xf]
        %vm2590 = vcmask 1045504
        %v2591 = vrot.slane %v2571, 2
        %v2592 = vrot.slane %v2408, 2
        %v2593 = vsel %vm2590, %v2591, %v2592
        %v2611 = vunpack.c.l.b16 %v2572
        %v2612 = vunpack.c.l.b16 %v2573
        %v2613 = vunpack.c.l.b16 %v2574
        %v2614 = vunpack.c.l.b16 %v2575
        %v2615 = vunpack.c.l.b16 %v2576
        %v2616 = vunpack.c.l.b16 %v2577
        %v2617 = vunpack.c.l.b16 %v2578
        %v2618 = vunpack.c.l.b16 %v2579
        %v2619 = vunpack.c.l.b16 %v2580
        %v2620 = vunpack.c.l.b16 %v2581
        %v2621 = vunpack.c.l.b16 %v2582
        %v2622 = vunpack.c.l.b16 %v2583
        %v2623 = vunpack.c.l.b16 %v2584
        %v2624 = vunpack.c.l.b16 %v2585
        %v2625 = vunpack.c.l.b16 %v2586
        %v2626 = vunpack.c.l.b16 %v2587
        %v2627 = vpack.c.b16 %v2612, %v2611
        %v2628 = vpack.c.b16 %v2614, %v2613
        %v2629 = vpack.c.b16 %v2616, %v2615
        %v2630 = vpack.c.b16 %v2618, %v2617
        %v2631 = vpack.c.b16 %v2620, %v2619
        %v2632 = vpack.c.b16 %v2622, %v2621
        %v2633 = vpack.c.b16 %v2624, %v2623
        %v2634 = vpack.c.b16 %v2626, %v2625
        %2643 = vmatprep.subr.bf16.mxu0 0
        %2644 = vmatpush1.bf16.msra.mxu0 %v2627
        %2645 = vmatprep.subr.bf16.mxu0 0
        %2646 = vmatpush1.bf16.msra.mxu0 %v2628
        %2647 = vmatprep.subr.bf16.mxu0 0
        %2648 = vmatpush1.bf16.msra.mxu0 %v2629
        %2649 = vmatprep.subr.bf16.mxu0 0
        %2650 = vmatpush1.bf16.msra.mxu0 %v2630
        %2651 = vmatprep.subr.bf16.mxu0 0
        %2652 = vmatpush1.bf16.msra.mxu0 %v2631
        %2653 = vmatprep.subr.bf16.mxu0 0
        %2654 = vmatpush1.bf16.msra.mxu0 %v2632
        %2655 = vmatprep.subr.bf16.mxu0 0
        %2656 = vmatpush1.bf16.msra.mxu0 %v2633
        %2657 = vmatprep.subr.bf16.mxu0 0
        %2658 = vmatpush1.bf16.msra.mxu0 %v2634
        %2659 = vmatprep.subr.bf16.mxu0 0
        %2660 = vmatpush1.bf16.msra.mxu0 0
        %2661 = vmatprep.subr.bf16.mxu0 0
        %2662 = vmatpush1.bf16.msra.mxu0 0
        %2663 = vmatprep.subr.bf16.mxu0 0
        %2664 = vmatpush1.bf16.msra.mxu0 0
        %2665 = vmatprep.subr.bf16.mxu0 0
        %2666 = vmatpush1.bf16.msra.mxu0 0
        %2667 = vmatprep.subr.bf16.mxu0 0
        %2668 = vmatpush1.bf16.msra.mxu0 0
        %2669 = vmatprep.subr.bf16.mxu0 0
        %2670 = vmatpush1.bf16.msra.mxu0 0
        %2671 = vmatprep.subr.bf16.mxu0 0
        %2672 = vmatpush1.bf16.msra.mxu0 0
        %2673 = vmatprep.subr.bf16.mxu0 0
        %2674 = vmatpush1.bf16.msra.mxu0 0
        %2675 = vmatprep.mubr.bf16.mxu0 0
        %2676 = vmatmul.mubr.bf16.gmra.mrb[0].mxu0 %v2593
        %v2677 = vpop.f32.mrb[0].mxu0
        %v2678 = vadd.f32 0.0, %v2677
        %v2679 = vpop.f32.mrb[0].mxu0
        %v2680 = vpop.f32.mrb[0].mxu0
        %v2681 = vadd.f32 0.0, %v2680
        %v2682 = vpop.f32.mrb[0].mxu0
        %2683 = vdwg.mxu0
        %v2684 = vadd.f32 %v2569, %v2678
        %v2685 = vadd.f32 %v2570, %v2681
        %v2686 = vld [vmem:[#allocation2 + $0x10] sm:$0x7]
        %v2687 = vld [vmem:[#allocation23] sm:$0xf]
        %v2688 = vld [vmem:[#allocation23 + $0x4] sm:$0xf]
        %v2689 = vld [vmem:[#allocation23 + $0x8] sm:$0xf]
        %v2690 = vld [vmem:[#allocation23 + $0xc] sm:$0xf]
        %v2691 = vld [vmem:[#allocation23 + $0x10] sm:$0xf]
        %v2692 = vld [vmem:[#allocation23 + $0x14] sm:$0xf]
        %v2693 = vld [vmem:[#allocation23 + $0x18] sm:$0xf]
        %v2694 = vld [vmem:[#allocation23 + $0x1c] sm:$0xf]
        %v2695 = vld [vmem:[#allocation23 + $0x20] sm:$0xf]
        %v2696 = vld [vmem:[#allocation23 + $0x24] sm:$0xf]
        %v2697 = vld [vmem:[#allocation23 + $0x28] sm:$0xf]
        %v2698 = vld [vmem:[#allocation23 + $0x2c] sm:$0xf]
        %v2699 = vld [vmem:[#allocation23 + $0x30] sm:$0xf]
        %v2700 = vld [vmem:[#allocation23 + $0x34] sm:$0xf]
        %v2701 = vld [vmem:[#allocation23 + $0x38] sm:$0xf]
        %v2702 = vld [vmem:[#allocation23 + $0x3c] sm:$0xf]
        %vm2703 = vsmask.f32 5376
        %v2705 = vshrl.u32 %v2571, 16
        %v2707 = vrot.slane %v2705, 2
        %v2708 = vshll.u32 %v2571, 16
        %v2710 = vrot.slane %v2708, 3
        %v2711 = vor.u32 %v2707, %v2710
        %v2713 = vshrl.u32 %v2686, 16
        %v2715 = vrot.slane %v2713, 2
        %v2716 = vshll.u32 %v2686, 16
        %v2718 = vrot.slane %v2716, 3
        %v2719 = vor.u32 %v2715, %v2718
        %v2720 = vsel %vm2703, %v2711, %v2719
        %v2738 = vunpack.c.l.b16 %v2687
        %v2739 = vunpack.c.l.b16 %v2688
        %v2740 = vunpack.c.l.b16 %v2689
        %v2741 = vunpack.c.l.b16 %v2690
        %v2742 = vunpack.c.l.b16 %v2691
        %v2743 = vunpack.c.l.b16 %v2692
        %v2744 = vunpack.c.l.b16 %v2693
        %v2745 = vunpack.c.l.b16 %v2694
        %v2746 = vunpack.c.l.b16 %v2695
        %v2747 = vunpack.c.l.b16 %v2696
        %v2748 = vunpack.c.l.b16 %v2697
        %v2749 = vunpack.c.l.b16 %v2698
        %v2750 = vunpack.c.l.b16 %v2699
        %v2751 = vunpack.c.l.b16 %v2700
        %v2752 = vunpack.c.l.b16 %v2701
        %v2753 = vunpack.c.l.b16 %v2702
        %v2754 = vpack.c.b16 %v2739, %v2738
        %v2755 = vpack.c.b16 %v2741, %v2740
        %v2756 = vpack.c.b16 %v2743, %v2742
        %v2757 = vpack.c.b16 %v2745, %v2744
        %v2758 = vpack.c.b16 %v2747, %v2746
        %v2759 = vpack.c.b16 %v2749, %v2748
        %v2760 = vpack.c.b16 %v2751, %v2750
        %v2761 = vpack.c.b16 %v2753, %v2752
        %2770 = vmatprep.subr.bf16.mxu0 0
        %2771 = vmatpush1.bf16.msra.mxu0 %v2754
        %2772 = vmatprep.subr.bf16.mxu0 0
        %2773 = vmatpush1.bf16.msra.mxu0 %v2755
        %2774 = vmatprep.subr.bf16.mxu0 0
        %2775 = vmatpush1.bf16.msra.mxu0 %v2756
        %2776 = vmatprep.subr.bf16.mxu0 0
        %2777 = vmatpush1.bf16.msra.mxu0 %v2757
        %2778 = vmatprep.subr.bf16.mxu0 0
        %2779 = vmatpush1.bf16.msra.mxu0 %v2758
        %2780 = vmatprep.subr.bf16.mxu0 0
        %2781 = vmatpush1.bf16.msra.mxu0 %v2759
        %2782 = vmatprep.subr.bf16.mxu0 0
        %2783 = vmatpush1.bf16.msra.mxu0 %v2760
        %2784 = vmatprep.subr.bf16.mxu0 0
        %2785 = vmatpush1.bf16.msra.mxu0 %v2761
        %2786 = vmatprep.subr.bf16.mxu0 0
        %2787 = vmatpush1.bf16.msra.mxu0 0
        %2788 = vmatprep.subr.bf16.mxu0 0
        %2789 = vmatpush1.bf16.msra.mxu0 0
        %2790 = vmatprep.subr.bf16.mxu0 0
        %2791 = vmatpush1.bf16.msra.mxu0 0
        %2792 = vmatprep.subr.bf16.mxu0 0
        %2793 = vmatpush1.bf16.msra.mxu0 0
        %2794 = vmatprep.subr.bf16.mxu0 0
        %2795 = vmatpush1.bf16.msra.mxu0 0
        %2796 = vmatprep.subr.bf16.mxu0 0
        %2797 = vmatpush1.bf16.msra.mxu0 0
        %2798 = vmatprep.subr.bf16.mxu0 0
        %2799 = vmatpush1.bf16.msra.mxu0 0
        %2800 = vmatprep.subr.bf16.mxu0 0
        %2801 = vmatpush1.bf16.msra.mxu0 0
        %2802 = vmatprep.mubr.bf16.mxu0 0
        %2803 = vmatmul.mubr.bf16.gmra.mrb[0].mxu0 %v2720
        %v2804 = vpop.f32.mrb[0].mxu0
        %v2805 = vadd.f32 0.0, %v2804
        %v2806 = vpop.f32.mrb[0].mxu0
        %v2807 = vpop.f32.mrb[0].mxu0
        %v2808 = vadd.f32 0.0, %v2807
        %v2809 = vpop.f32.mrb[0].mxu0
        %2810 = vdwg.mxu0
        %v2811 = vadd.f32 %v2684, %v2805
        %v2812 = vadd.f32 %v2685, %v2808
        %v2813 = vld [vmem:[%s13] sm:$0x1]
        %v2815 = vlaneseq
        %v2816 = vshrl.u32 %v2815, 7
        %v2817 = vsub.s32 0, %v2816
        %v2818 = vrot.slane %v2813, %v2817
        %v2820 = vadd.f32 %v1983, %v2818
        %v2821 = vadd.f32 %v1984, %v2818
        %v2822 = vmul.f32 %v2820, 0.5
        %v2823 = vmul.f32 %v2821, 0.5
        %v2824 = vtanh.pop %v2822
        %v2825 = vtanh.pop %v2823
        %v2826 = vadd.f32 %v2824, 1.0
        %v2827 = vadd.f32 %v2825, 1.0
        %v2828 = vmul.f32 %v2822, %v2826
        %v2829 = vmul.f32 %v2823, %v2827
        %v2830 = vpack.c.bf16 %v2829, %v2828
        %v2831 = vld [vmem:[%s14] sm:$0x1]
        %v2833 = vlaneseq
        %v2834 = vshrl.u32 %v2833, 7
        %v2835 = vsub.s32 0, %v2834
        %v2836 = vrot.slane %v2831, %v2835
        %v2838 = vadd.f32 %v2251, %v2836
        %v2839 = vadd.f32 %v2252, %v2836
        %v2840 = vmul.f32 %v2838, 0.5
        %v2841 = vmul.f32 %v2839, 0.5
        %v2842 = vtanh.pop %v2840
        %v2843 = vtanh.pop %v2841
        %v2844 = vadd.f32 %v2842, 1.0
        %v2845 = vadd.f32 %v2843, 1.0
        %v2846 = vmul.f32 %v2840, %v2844
        %v2847 = vmul.f32 %v2841, %v2845
        %v2848 = vpack.c.bf16 %v2847, %v2846
        %v2849 = vld [vmem:[%s15] sm:$0x1]
        %v2851 = vlaneseq
        %v2852 = vshrl.u32 %v2851, 7
        %v2853 = vsub.s32 0, %v2852
        %v2854 = vrot.slane %v2849, %v2853
        %v2856 = vadd.f32 %v2567, %v2854
        %v2857 = vadd.f32 %v2568, %v2854
        %v2858 = vmul.f32 %v2856, 0.5
        %v2859 = vmul.f32 %v2857, 0.5
        %v2860 = vtanh.pop %v2858
        %v2861 = vtanh.pop %v2859
        %v2862 = vadd.f32 %v2860, 1.0
        %v2863 = vadd.f32 %v2861, 1.0
        %v2864 = vmul.f32 %v2858, %v2862
        %v2865 = vmul.f32 %v2859, %v2863
        %v2866 = vpack.c.bf16 %v2865, %v2864
        %v2867 = vld [vmem:[%s16] sm:$0x1]
        %v2869 = vlaneseq
        %v2870 = vshrl.u32 %v2869, 7
        %v2871 = vsub.s32 0, %v2870
        %v2872 = vrot.slane %v2867, %v2871
        %v2874 = vadd.f32 %v2811, %v2872
        %v2875 = vadd.f32 %v2812, %v2872
        %v2876 = vmul.f32 %v2874, 0.5
        %v2877 = vmul.f32 %v2875, 0.5
        %v2878 = vtanh.pop %v2876
        %v2879 = vtanh.pop %v2877
        %v2880 = vadd.f32 %v2878, 1.0
        %v2881 = vadd.f32 %v2879, 1.0
        %v2882 = vmul.f32 %v2876, %v2880
        %v2883 = vmul.f32 %v2877, %v2881
        %v2884 = vpack.c.bf16 %v2883, %v2882
        %v2885 = vld [vmem:[#allocation24] sm:$0xf]
        %v2886 = vld [vmem:[#allocation24 + $0x4] sm:$0xf]
        %v2887 = vld [vmem:[#allocation24 + $0x8] sm:$0xf]
        %v2888 = vld [vmem:[#allocation24 + $0xc] sm:$0xf]
        %v2889 = vld [vmem:[#allocation24 + $0x10] sm:$0xf]
        %v2890 = vld [vmem:[#allocation24 + $0x14] sm:$0xf]
        %v2891 = vld [vmem:[#allocation24 + $0x18] sm:$0xf]
        %v2892 = vld [vmem:[#allocation24 + $0x1c] sm:$0xf]
        %v2893 = vld [vmem:[#allocation24 + $0x20] sm:$0xf]
        %v2894 = vld [vmem:[#allocation24 + $0x24] sm:$0xf]
        %v2895 = vld [vmem:[#allocation24 + $0x28] sm:$0xf]
        %v2896 = vld [vmem:[#allocation24 + $0x2c] sm:$0xf]
        %v2897 = vld [vmem:[#allocation24 + $0x30] sm:$0xf]
        %v2898 = vld [vmem:[#allocation24 + $0x34] sm:$0xf]
        %v2899 = vld [vmem:[#allocation24 + $0x38] sm:$0xf]
        %v2900 = vld [vmem:[#allocation24 + $0x3c] sm:$0xf]
        %v2901 = vld [vmem:[#allocation24 + $0x40] sm:$0xf]
        %v2902 = vld [vmem:[#allocation24 + $0x44] sm:$0xf]
        %v2903 = vld [vmem:[#allocation24 + $0x48] sm:$0xf]
        %v2904 = vld [vmem:[#allocation24 + $0x4c] sm:$0xf]
        %v2905 = vld [vmem:[#allocation24 + $0x50] sm:$0xf]
        %v2906 = vld [vmem:[#allocation24 + $0x54] sm:$0xf]
        %v2907 = vld [vmem:[#allocation24 + $0x58] sm:$0xf]
        %v2908 = vld [vmem:[#allocation24 + $0x5c] sm:$0xf]
        %v2909 = vld [vmem:[#allocation24 + $0x60] sm:$0xf]
        %v2910 = vld [vmem:[#allocation24 + $0x64] sm:$0xf]
        %v2911 = vld [vmem:[#allocation24 + $0x68] sm:$0xf]
        %v2912 = vld [vmem:[#allocation24 + $0x6c] sm:$0xf]
        %v2913 = vld [vmem:[#allocation24 + $0x70] sm:$0xf]
        %v2914 = vld [vmem:[#allocation24 + $0x74] sm:$0xf]
        %v2915 = vld [vmem:[#allocation24 + $0x78] sm:$0xf]
        %v2916 = vld [vmem:[#allocation24 + $0x7c] sm:$0xf]
        %v2917 = vld [vmem:[#allocation24 + $0x80] sm:$0xf]
        %v2918 = vld [vmem:[#allocation24 + $0x84] sm:$0xf]
        %v2919 = vld [vmem:[#allocation24 + $0x88] sm:$0xf]
        %v2920 = vld [vmem:[#allocation24 + $0x8c] sm:$0xf]
        %v2921 = vld [vmem:[#allocation24 + $0x90] sm:$0xf]
        %v2922 = vld [vmem:[#allocation24 + $0x94] sm:$0xf]
        %v2923 = vld [vmem:[#allocation24 + $0x98] sm:$0xf]
        %v2924 = vld [vmem:[#allocation24 + $0x9c] sm:$0xf]
        %v2925 = vld [vmem:[#allocation24 + $0xa0] sm:$0xf]
        %v2926 = vld [vmem:[#allocation24 + $0xa4] sm:$0xf]
        %v2927 = vld [vmem:[#allocation24 + $0xa8] sm:$0xf]
        %v2928 = vld [vmem:[#allocation24 + $0xac] sm:$0xf]
        %v2929 = vld [vmem:[#allocation24 + $0xb0] sm:$0xf]
        %v2930 = vld [vmem:[#allocation24 + $0xb4] sm:$0xf]
        %v2931 = vld [vmem:[#allocation24 + $0xb8] sm:$0xf]
        %v2932 = vld [vmem:[#allocation24 + $0xbc] sm:$0xf]
        %v2933 = vld [vmem:[#allocation24 + $0xc0] sm:$0xf]
        %v2934 = vld [vmem:[#allocation24 + $0xc4] sm:$0xf]
        %v2935 = vld [vmem:[#allocation24 + $0xc8] sm:$0xf]
        %v2936 = vld [vmem:[#allocation24 + $0xcc] sm:$0xf]
        %v2937 = vld [vmem:[#allocation24 + $0xd0] sm:$0xf]
        %v2938 = vld [vmem:[#allocation24 + $0xd4] sm:$0xf]
        %v2939 = vld [vmem:[#allocation24 + $0xd8] sm:$0xf]
        %v2940 = vld [vmem:[#allocation24 + $0xdc] sm:$0xf]
        %v2941 = vld [vmem:[#allocation24 + $0xe0] sm:$0xf]
        %v2942 = vld [vmem:[#allocation24 + $0xe4] sm:$0xf]
        %v2943 = vld [vmem:[#allocation24 + $0xe8] sm:$0xf]
        %v2944 = vld [vmem:[#allocation24 + $0xec] sm:$0xf]
        %v2945 = vld [vmem:[#allocation24 + $0xf0] sm:$0xf]
        %v2946 = vld [vmem:[#allocation24 + $0xf4] sm:$0xf]
        %v2947 = vld [vmem:[#allocation24 + $0xf8] sm:$0xf]
        %v2948 = vld [vmem:[#allocation24 + $0xfc] sm:$0xf]
        %v2949 = vld [vmem:[#allocation24 + $0x100] sm:$0xf]
        %v2950 = vld [vmem:[#allocation24 + $0x104] sm:$0xf]
        %v2951 = vld [vmem:[#allocation24 + $0x108] sm:$0xf]
        %v2952 = vld [vmem:[#allocation24 + $0x10c] sm:$0xf]
        %v2953 = vld [vmem:[#allocation24 + $0x110] sm:$0xf]
        %v2954 = vld [vmem:[#allocation24 + $0x114] sm:$0xf]
        %v2955 = vld [vmem:[#allocation24 + $0x118] sm:$0xf]
        %v2956 = vld [vmem:[#allocation24 + $0x11c] sm:$0xf]
        %v2957 = vld [vmem:[#allocation24 + $0x120] sm:$0xf]
        %v2958 = vld [vmem:[#allocation24 + $0x124] sm:$0xf]
        %v2959 = vld [vmem:[#allocation24 + $0x128] sm:$0xf]
        %v2960 = vld [vmem:[#allocation24 + $0x12c] sm:$0xf]
        %v2961 = vld [vmem:[#allocation24 + $0x130] sm:$0xf]
        %v2962 = vld [vmem:[#allocation24 + $0x134] sm:$0xf]
        %v2963 = vld [vmem:[#allocation24 + $0x138] sm:$0xf]
        %v2964 = vld [vmem:[#allocation24 + $0x13c] sm:$0xf]
        %v2965 = vld [vmem:[%s18] sm:$0x1]
        %v2967 = vlaneseq
        %v2968 = vshrl.u32 %v2967, 7
        %v2969 = vsub.s32 0, %v2968
        %v2970 = vrot.slane %v2965, %v2969
        %v3052 = vunpack.c.l.b16 %v2885
        %v3053 = vunpack.c.l.b16 %v2886
        %v3054 = vunpack.c.l.b16 %v2887
        %v3055 = vunpack.c.l.b16 %v2888
        %v3056 = vunpack.c.l.b16 %v2889
        %v3057 = vunpack.c.l.b16 %v2890
        %v3058 = vunpack.c.l.b16 %v2891
        %v3059 = vunpack.c.l.b16 %v2892
        %v3060 = vunpack.c.l.b16 %v2893
        %v3061 = vunpack.c.l.b16 %v2894
        %v3062 = vunpack.c.l.b16 %v2895
        %v3063 = vunpack.c.l.b16 %v2896
        %v3064 = vunpack.c.l.b16 %v2897
        %v3065 = vunpack.c.l.b16 %v2898
        %v3066 = vunpack.c.l.b16 %v2899
        %v3067 = vunpack.c.l.b16 %v2900
        %v3068 = vunpack.c.l.b16 %v2901
        %v3069 = vunpack.c.l.b16 %v2902
        %v3070 = vunpack.c.l.b16 %v2903
        %v3071 = vunpack.c.l.b16 %v2904
        %v3072 = vunpack.c.l.b16 %v2905
        %v3073 = vunpack.c.l.b16 %v2906
        %v3074 = vunpack.c.l.b16 %v2907
        %v3075 = vunpack.c.l.b16 %v2908
        %v3076 = vunpack.c.l.b16 %v2909
        %v3077 = vunpack.c.l.b16 %v2910
        %v3078 = vunpack.c.l.b16 %v2911
        %v3079 = vunpack.c.l.b16 %v2912
        %v3080 = vunpack.c.l.b16 %v2913
        %v3081 = vunpack.c.l.b16 %v2914
        %v3082 = vunpack.c.l.b16 %v2915
        %v3083 = vunpack.c.l.b16 %v2916
        %v3084 = vunpack.c.l.b16 %v2917
        %v3085 = vunpack.c.l.b16 %v2918
        %v3086 = vunpack.c.l.b16 %v2919
        %v3087 = vunpack.c.l.b16 %v2920
        %v3088 = vunpack.c.l.b16 %v2921
        %v3089 = vunpack.c.l.b16 %v2922
        %v3090 = vunpack.c.l.b16 %v2923
        %v3091 = vunpack.c.l.b16 %v2924
        %v3092 = vunpack.c.l.b16 %v2925
        %v3093 = vunpack.c.l.b16 %v2926
        %v3094 = vunpack.c.l.b16 %v2927
        %v3095 = vunpack.c.l.b16 %v2928
        %v3096 = vunpack.c.l.b16 %v2929
        %v3097 = vunpack.c.l.b16 %v2930
        %v3098 = vunpack.c.l.b16 %v2931
        %v3099 = vunpack.c.l.b16 %v2932
        %v3100 = vunpack.c.l.b16 %v2933
        %v3101 = vunpack.c.l.b16 %v2934
        %v3102 = vunpack.c.l.b16 %v2935
        %v3103 = vunpack.c.l.b16 %v2936
        %v3104 = vunpack.c.l.b16 %v2937
        %v3105 = vunpack.c.l.b16 %v2938
        %v3106 = vunpack.c.l.b16 %v2939
        %v3107 = vunpack.c.l.b16 %v2940
        %v3108 = vunpack.c.l.b16 %v2941
        %v3109 = vunpack.c.l.b16 %v2942
        %v3110 = vunpack.c.l.b16 %v2943
        %v3111 = vunpack.c.l.b16 %v2944
        %v3112 = vunpack.c.l.b16 %v2945
        %v3113 = vunpack.c.l.b16 %v2946
        %v3114 = vunpack.c.l.b16 %v2947
        %v3115 = vunpack.c.l.b16 %v2948
        %v3116 = vunpack.c.l.b16 %v2949
        %v3117 = vunpack.c.l.b16 %v2950
        %v3118 = vunpack.c.l.b16 %v2951
        %v3119 = vunpack.c.l.b16 %v2952
        %v3120 = vunpack.c.l.b16 %v2953
        %v3121 = vunpack.c.l.b16 %v2954
        %v3122 = vunpack.c.l.b16 %v2955
        %v3123 = vunpack.c.l.b16 %v2956
        %v3124 = vunpack.c.l.b16 %v2957
        %v3125 = vunpack.c.l.b16 %v2958
        %v3126 = vunpack.c.l.b16 %v2959
        %v3127 = vunpack.c.l.b16 %v2960
        %v3128 = vunpack.c.l.b16 %v2961
        %v3129 = vunpack.c.l.b16 %v2962
        %v3130 = vunpack.c.l.b16 %v2963
        %v3131 = vunpack.c.l.b16 %v2964
        %v3132 = vpack.c.b16 %v3053, %v3052
        %v3133 = vpack.c.b16 %v3055, %v3054
        %v3134 = vpack.c.b16 %v3057, %v3056
        %v3135 = vpack.c.b16 %v3059, %v3058
        %v3136 = vpack.c.b16 %v3061, %v3060
        %v3137 = vpack.c.b16 %v3063, %v3062
        %v3138 = vpack.c.b16 %v3065, %v3064
        %v3139 = vpack.c.b16 %v3067, %v3066
        %v3140 = vpack.c.b16 %v3069, %v3068
        %v3141 = vpack.c.b16 %v3071, %v3070
        %v3142 = vpack.c.b16 %v3073, %v3072
        %v3143 = vpack.c.b16 %v3075, %v3074
        %v3144 = vpack.c.b16 %v3077, %v3076
        %v3145 = vpack.c.b16 %v3079, %v3078
        %v3146 = vpack.c.b16 %v3081, %v3080
        %v3147 = vpack.c.b16 %v3083, %v3082
        %v3148 = vpack.c.b16 %v3085, %v3084
        %v3149 = vpack.c.b16 %v3087, %v3086
        %v3150 = vpack.c.b16 %v3089, %v3088
        %v3151 = vpack.c.b16 %v3091, %v3090
        %v3152 = vpack.c.b16 %v3093, %v3092
        %v3153 = vpack.c.b16 %v3095, %v3094
        %v3154 = vpack.c.b16 %v3097, %v3096
        %v3155 = vpack.c.b16 %v3099, %v3098
        %v3156 = vpack.c.b16 %v3101, %v3100
        %v3157 = vpack.c.b16 %v3103, %v3102
        %v3158 = vpack.c.b16 %v3105, %v3104
        %v3159 = vpack.c.b16 %v3107, %v3106
        %v3160 = vpack.c.b16 %v3109, %v3108
        %v3161 = vpack.c.b16 %v3111, %v3110
        %v3162 = vpack.c.b16 %v3113, %v3112
        %v3163 = vpack.c.b16 %v3115, %v3114
        %v3164 = vpack.c.b16 %v3117, %v3116
        %v3165 = vpack.c.b16 %v3119, %v3118
        %v3166 = vpack.c.b16 %v3121, %v3120
        %v3167 = vpack.c.b16 %v3123, %v3122
        %v3168 = vpack.c.b16 %v3125, %v3124
        %v3169 = vpack.c.b16 %v3127, %v3126
        %v3170 = vpack.c.b16 %v3129, %v3128
        %v3171 = vpack.c.b16 %v3131, %v3130
        %3212 = vmatprep.subr.bf16.mxu0 0
        %3213 = vmatpush1.bf16.msra.mxu0 %v3132
        %3214 = vmatprep.subr.bf16.mxu0 0
        %3215 = vmatpush1.bf16.msra.mxu0 %v3133
        %3216 = vmatprep.subr.bf16.mxu0 0
        %3217 = vmatpush1.bf16.msra.mxu0 %v3134
        %3218 = vmatprep.subr.bf16.mxu0 0
        %3219 = vmatpush1.bf16.msra.mxu0 %v3135
        %3220 = vmatprep.subr.bf16.mxu0 0
        %3221 = vmatpush1.bf16.msra.mxu0 %v3136
        %3222 = vmatprep.subr.bf16.mxu0 0
        %3223 = vmatpush1.bf16.msra.mxu0 %v3137
        %3224 = vmatprep.subr.bf16.mxu0 0
        %3225 = vmatpush1.bf16.msra.mxu0 %v3138
        %3226 = vmatprep.subr.bf16.mxu0 0
        %3227 = vmatpush1.bf16.msra.mxu0 %v3139
        %3228 = vmatprep.subr.bf16.mxu0 0
        %3229 = vmatpush1.bf16.msra.mxu0 %v3140
        %3230 = vmatprep.subr.bf16.mxu0 0
        %3231 = vmatpush1.bf16.msra.mxu0 %v3141
        %3232 = vmatprep.subr.bf16.mxu0 0
        %3233 = vmatpush1.bf16.msra.mxu0 %v3142
        %3234 = vmatprep.subr.bf16.mxu0 0
        %3235 = vmatpush1.bf16.msra.mxu0 %v3143
        %3236 = vmatprep.subr.bf16.mxu0 0
        %3237 = vmatpush1.bf16.msra.mxu0 %v3144
        %3238 = vmatprep.subr.bf16.mxu0 0
        %3239 = vmatpush1.bf16.msra.mxu0 %v3145
        %3240 = vmatprep.subr.bf16.mxu0 0
        %3241 = vmatpush1.bf16.msra.mxu0 %v3146
        %3242 = vmatprep.subr.bf16.mxu0 0
        %3243 = vmatpush1.bf16.msra.mxu0 %v3147
        %3244 = vmatprep.mubr.bf16.mxu0 %v2830
        %3245 = vmatmul.mubr.bf16.gmra.mrb[0].mxu0 %v875
        %v3246 = vpop.f32.mrb[0].mxu0
        %v3247 = vadd.f32 %v2970, %v3246
        %v3248 = vpop.f32.mrb[0].mxu0
        %v3249 = vpop.f32.mrb[0].mxu0
        %v3250 = vadd.f32 %v2970, %v3249
        %v3251 = vpop.f32.mrb[0].mxu0
        %3252 = vdwg.mxu0
        %3253 = vmatprep.subr.bf16.mxu0 0
        %3254 = vmatpush1.bf16.msra.mxu0 %v3148
        %3255 = vmatprep.subr.bf16.mxu0 0
        %3256 = vmatpush1.bf16.msra.mxu0 %v3149
        %3257 = vmatprep.subr.bf16.mxu0 0
        %3258 = vmatpush1.bf16.msra.mxu0 %v3150
        %3259 = vmatprep.subr.bf16.mxu0 0
        %3260 = vmatpush1.bf16.msra.mxu0 %v3151
        %3261 = vmatprep.subr.bf16.mxu0 0
        %3262 = vmatpush1.bf16.msra.mxu0 %v3152
        %3263 = vmatprep.subr.bf16.mxu0 0
        %3264 = vmatpush1.bf16.msra.mxu0 %v3153
        %3265 = vmatprep.subr.bf16.mxu0 0
        %3266 = vmatpush1.bf16.msra.mxu0 %v3154
        %3267 = vmatprep.subr.bf16.mxu0 0
        %3268 = vmatpush1.bf16.msra.mxu0 %v3155
        %3269 = vmatprep.subr.bf16.mxu0 0
        %3270 = vmatpush1.bf16.msra.mxu0 %v3156
        %3271 = vmatprep.subr.bf16.mxu0 0
        %3272 = vmatpush1.bf16.msra.mxu0 %v3157
        %3273 = vmatprep.subr.bf16.mxu0 0
        %3274 = vmatpush1.bf16.msra.mxu0 %v3158
        %3275 = vmatprep.subr.bf16.mxu0 0
        %3276 = vmatpush1.bf16.msra.mxu0 %v3159
        %3277 = vmatprep.subr.bf16.mxu0 0
        %3278 = vmatpush1.bf16.msra.mxu0 %v3160
        %3279 = vmatprep.subr.bf16.mxu0 0
        %3280 = vmatpush1.bf16.msra.mxu0 %v3161
        %3281 = vmatprep.subr.bf16.mxu0 0
        %3282 = vmatpush1.bf16.msra.mxu0 %v3162
        %3283 = vmatprep.subr.bf16.mxu0 0
        %3284 = vmatpush1.bf16.msra.mxu0 %v3163
        %3285 = vmatprep.mubr.bf16.mxu0 %v2866
        %3286 = vmatmul.mubr.bf16.gmra.mrb[0].mxu0 %v2848
        %v3287 = vpop.f32.mrb[0].mxu0
        %v3288 = vadd.f32 %v3247, %v3287
        %v3289 = vpop.f32.mrb[0].mxu0
        %v3290 = vpop.f32.mrb[0].mxu0
        %v3291 = vadd.f32 %v3250, %v3290
        %v3292 = vpop.f32.mrb[0].mxu0
        %3293 = vdwg.mxu0
        %3294 = vmatprep.subr.bf16.mxu0 0
        %3295 = vmatpush1.bf16.msra.mxu0 %v3164
        %3296 = vmatprep.subr.bf16.mxu0 0
        %3297 = vmatpush1.bf16.msra.mxu0 %v3165
        %3298 = vmatprep.subr.bf16.mxu0 0
        %3299 = vmatpush1.bf16.msra.mxu0 %v3166
        %3300 = vmatprep.subr.bf16.mxu0 0
        %3301 = vmatpush1.bf16.msra.mxu0 %v3167
        %3302 = vmatprep.subr.bf16.mxu0 0
        %3303 = vmatpush1.bf16.msra.mxu0 %v3168
        %3304 = vmatprep.subr.bf16.mxu0 0
        %3305 = vmatpush1.bf16.msra.mxu0 %v3169
        %3306 = vmatprep.subr.bf16.mxu0 0
        %3307 = vmatpush1.bf16.msra.mxu0 %v3170
        %3308 = vmatprep.subr.bf16.mxu0 0
        %3309 = vmatpush1.bf16.msra.mxu0 %v3171
        %3310 = vmatprep.subr.bf16.mxu0 0
        %3311 = vmatpush1.bf16.msra.mxu0 0
        %3312 = vmatprep.subr.bf16.mxu0 0
        %3313 = vmatpush1.bf16.msra.mxu0 0
        %3314 = vmatprep.subr.bf16.mxu0 0
        %3315 = vmatpush1.bf16.msra.mxu0 0
        %3316 = vmatprep.subr.bf16.mxu0 0
        %3317 = vmatpush1.bf16.msra.mxu0 0
        %3318 = vmatprep.subr.bf16.mxu0 0
        %3319 = vmatpush1.bf16.msra.mxu0 0
        %3320 = vmatprep.subr.bf16.mxu0 0
        %3321 = vmatpush1.bf16.msra.mxu0 0
        %3322 = vmatprep.subr.bf16.mxu0 0
        %3323 = vmatpush1.bf16.msra.mxu0 0
        %3324 = vmatprep.subr.bf16.mxu0 0
        %3325 = vmatpush1.bf16.msra.mxu0 0
        %3326 = vmatprep.mubr.bf16.mxu0 0
        %3327 = vmatmul.mubr.bf16.gmra.mrb[0].mxu0 %v2884
        %v3328 = vpop.f32.mrb[0].mxu0
        %v3329 = vadd.f32 %v3288, %v3328
        %v3330 = vpop.f32.mrb[0].mxu0
        %v3331 = vpop.f32.mrb[0].mxu0
        %v3332 = vadd.f32 %v3291, %v3331
        %v3333 = vpop.f32.mrb[0].mxu0
        %3334 = vdwg.mxu0
        %v3335 = vpack.c.bf16 %v3332, %v3329
        %v3337 = vunpack.c.l.b16 %v3335
        %v3338 = vunpack.c.h.b16 %v3335
        %v3339 = vpack.c.b16 %v3337, %v3337
        %v3340 = vpack.c.b16 %v3338, %v3338
        %3343 = vst [vmem:[%s856] sm:$0xf] %v3339
        %3344 = vst [vmem:[%s856 + $0x4] sm:$0xf] %v3340
        %s3345 = sand.u32 %s480, 1
        %s3346 = scalar_lea.sflag [#allocation5], %s3345
        %s3347 = sand.u32 %s480, 1
        %s3348 = smul.addr %s3347, 8
        %s3349 = scalar_lea.vmem [#allocation26], %s3348
        // Predicated region
        $region153: #{tpu_custom_call.1} parent=95 // pred_check
          %p3350 = pneg %p490
        $region154: #{tpu_custom_call.1} parent=95 // pred_check_branch
          %3352 = sbr.rel (%p3350) target = $region156
        $region155: #{tpu_custom_call.1} parent=95 // pred_region
          %s3353 = smul.u32 2, %s50
          %s3355 = ssub.s32 128, 128
          %3356 = vsyncadd %s3346, %s3355
          %s3357 = smul.addr %s49, 2
          %s3358 = sadd.s32 %s3353, %s3357
          %s3359 = smul.addr %s3358, 64
          %s3360 = scalar_lea.hbm %s19, %s3359
          %s3361 = sshll.u32 %s3349, 4
          %s3362 = int_to_ptr.vmem [resolvable:$true] %s3361
          %3367 = dma.vmem_to_hbm [thread:$0]  %s3362, 128, %s3360, %s3346, 64, 64, 4
        $region156: #{tpu_custom_call.1} parent=95 // pred_fallthru
          _
      $region96: #{tpu_custom_call.1} parent=5 // pred_fallthru
        _
      %p3368 = scmp.le.s32.totalorder 2, %s40
      // Predicated region
      $region157: #{tpu_custom_call.1} parent=5 // pred_check
        %p3369 = pneg %p3368
      $region158: #{tpu_custom_call.1} parent=5 // pred_check_branch
        %3371 = sbr.rel (%p3369) target = $region160
      $region159: #{tpu_custom_call.1} parent=5 // pred_region
        %s3372 = ssub.s32 %s40, 2
        // Predicated region
        $region161: #{tpu_custom_call.1} parent=159 // pred_check
          %p3373 = pneg %p496
        $region162: #{tpu_custom_call.1} parent=159 // pred_check_branch
          %3375 = sbr.rel (%p3373) target = $region164
        $region163: #{tpu_custom_call.1} parent=159 // pred_region
          %s3376 = sand.u32 %s481, 1
          %s3377 = scalar_lea.sflag [#allocation5], %s3376
          %s3378 = sand.u32 %s481, 1
          %s3379 = smul.addr %s3378, 8
          %s3380 = scalar_lea.vmem [#allocation26], %s3379
          %3381 = dma.done %s3377, 128
        $region164: #{tpu_custom_call.1} parent=159 // pred_fallthru
          _
      $region160: #{tpu_custom_call.1} parent=5 // pred_fallthru
        _
    $region6: #{tpu_custom_call.1} parent=1 // loop_footer
      %s44 = sadd.s32 1, %s40
    $region7: #{tpu_custom_call.1} parent=1 // loop_footer_branch
      %39 = sbr.rel target = $region3
    $region8: #{tpu_custom_call.1} parent=1 // loop_exit
      _
    %3382 = vsyncpa [#allocation4], 1
    %s3383 = scalar_lea.sflag [#allocation4], 1
    %3384 = vsyncpa %s3383, 1
    %3385 = vsyncpa [#allocation7], 1
    %s3386 = scalar_lea.sflag [#allocation7], 1
    %3387 = vsyncpa %s3386, 1
    %3388 = vsyncpa [#allocation10], 1
    %3389 = vsyncpa [#allocation13], 1
    %3390 = vsyncpa [#allocation16], 1
    %3391 = vsyncpa [#allocation19], 1
    %3392 = vsyncpa [#allocation22], 1
    %3393 = vsyncpa [#allocation25], 1
    %3394 = vsyncpa [#allocation5], 1
    %s3395 = scalar_lea.sflag [#allocation5], 1
    %3396 = vsyncpa %s3395, 1

</llo_original>
